<compile_context>
chip_gen: v6e
topology: v6e:2x2x1
jax: 0.10.0
libtpu: 0.0.40
codegen_flags: <defaults>
</compile_context>

<pallas_src>
import functools

import jax
import jax.numpy as jnp
from jax import lax
from jax.experimental import pallas as pl
from jax.experimental.pallas import tpu as pltpu


def _round_up(x, m):
    return ((x + m - 1) // m) * m


def _device_vmem_bytes():
    try:
        info = pltpu.get_tpu_info()
        v = getattr(info, "vmem_capacity_bytes", None)
        if v:
            return int(v)
    except Exception:
        pass
    return 64 * 1024 * 1024  # conservative (v7x per-TensorCore)


def _vmem_limit(est_bytes):
    cap = int(0.9 * _device_vmem_bytes())
    want = max(int(1.5 * est_bytes), 32 * 1024 * 1024)
    return int(min(want, cap))


# ----------------------------------------------------------------------------
# One-time parameter preprocessing (runs OUTSIDE jit, once per model).
# ----------------------------------------------------------------------------
def pack_params(params, param_dtype=jnp.bfloat16):
    """Pack PyTorch-layout LSTM/decoder weights into lane-padded, fused-gate,
    MXU-friendly arrays.  Gate order i, f, g, o; gate columns land on 128-lane
    boundaries; biases are pre-summed (b_ih + b_hh)."""
    lstm = params["lstm"]
    nlayers = len(lstm)
    ninp = lstm[0][0].shape[1]
    nhid = lstm[0][1].shape[1]
    nin_p = _round_up(ninp, 128)
    nhid_p = _round_up(nhid, 128)

    w_ih0 = jnp.zeros((nin_p, 4 * nhid_p), jnp.float32)
    w_ihr = jnp.zeros((max(nlayers - 1, 1), nhid_p, 4 * nhid_p), jnp.float32)
    w_hh = jnp.zeros((nlayers, nhid_p, 4 * nhid_p), jnp.float32)
    b = jnp.zeros((nlayers, 1, 4 * nhid_p), jnp.float32)

    for l, (wih, whh, bih, bhh) in enumerate(lstm):
        for g in range(4):
            col = slice(g * nhid_p, g * nhid_p + nhid)
            wg_ih = wih[g * nhid:(g + 1) * nhid, :].T
            wg_hh = whh[g * nhid:(g + 1) * nhid, :].T
            if l == 0:
                w_ih0 = w_ih0.at[:ninp, col].set(wg_ih)
            else:
                w_ihr = w_ihr.at[l - 1, :nhid, col].set(wg_ih)
            w_hh = w_hh.at[l, :nhid, col].set(wg_hh)
            b = b.at[l, 0, col].set(bih[g * nhid:(g + 1) * nhid]
                                    + bhh[g * nhid:(g + 1) * nhid])

    dec_w = params["dec_w"]
    dec_b = params["dec_b"]
    ntoken = dec_w.shape[0]
    ntoken_p = _round_up(ntoken, 128)
    dec_w_p = (jnp.zeros((nhid_p, ntoken_p), jnp.float32)
               .at[:nhid, :ntoken].set(dec_w.T).astype(param_dtype))
    dec_b_p = jnp.zeros((1, ntoken_p), jnp.float32).at[0, :ntoken].set(dec_b)

    return {
        "enc_w": params["enc_w"],
        "w_ih0": w_ih0.astype(param_dtype),
        "w_ihr": w_ihr.astype(param_dtype),
        "w_hh": w_hh.astype(param_dtype),
        "b": b,
        "dec_w": dec_w_p,
        "dec_b": dec_b_p,
    }


# ----------------------------------------------------------------------------
# Fused multi-layer LSTM kernel (layer-major over a time block, weights resident
# in single-buffered VMEM, time-blocked grid).
# ----------------------------------------------------------------------------
def fused_lstm_kernel(x_ref, wih0_hbm, wihr_hbm, whh_hbm, b_ref, h0_ref, c0_ref,
                      y_ref, hN_ref, cN_ref,
                      wih0_sc, wihr_sc, whh_sc, gx_sc, xs_sc, h_sc, c_sc, sems,
                      *, nlayers, nhid_p, nin_p, t_blk, seq_len, padded):
    blk = pl.program_id(0)
    batch_p = h_sc.shape[1]
    wdt = wih0_sc.dtype

    @pl.when(blk == 0)
    def _():
        # One-time weight DMA into single-buffered VMEM; state init is overlapped
        # between start and wait.
        cp0 = pltpu.make_async_copy(wih0_hbm, wih0_sc, sems.at[0])
        cp2 = pltpu.make_async_copy(whh_hbm, whh_sc, sems.at[2])
        cp0.start()
        cp2.start()
        if nlayers > 1:
            cp1 = pltpu.make_async_copy(wihr_hbm, wihr_sc, sems.at[1])
            cp1.start()
        h_sc[...] = h0_ref[...]
        c_sc[...] = c0_ref[...]
        cp0.wait()
        cp2.wait()
        if nlayers > 1:
            cp1.wait()

    for l in range(nlayers):
        # --- Batched input-to-hidden projection for the whole time block -----
        if l == 0:
            xin = x_ref[...].reshape(t_blk * batch_p, nin_p).astype(wdt)
            w_ih = wih0_sc[...]
        else:
            xin = xs_sc[...]
            w_ih = wihr_sc[l - 1]
        gx_sc[...] = jnp.dot(xin, w_ih, preferred_element_type=jnp.float32)

        whh_l = whh_sc[l]
        bias_l = b_ref[l]                       # (1, 4*nhid_p), broadcasts
        last_layer = (l == nlayers - 1)

        # --- Per-step recurrence: only h @ W_hh on the MXU -------------------
        def step(t, carry, l=l, whh_l=whh_l, bias_l=bias_l, last_layer=last_layer):
            row = pl.multiple_of(t * batch_p, batch_p)
            h = h_sc[l]
            c = c_sc[l]
            gates = (gx_sc[pl.ds(row, batch_p), :]
                     + jnp.dot(h.astype(wdt), whh_l,
                               preferred_element_type=jnp.float32)
                     + bias_l)
            # PyTorch gate order: input, forget, cell(g), output; math in f32.
            i_g = jax.nn.sigmoid(gates[:, 0 * nhid_p:1 * nhid_p])
            f_g = jax.nn.sigmoid(gates[:, 1 * nhid_p:2 * nhid_p])
            g_g = jnp.tanh(gates[:, 2 * nhid_p:3 * nhid_p])
            o_g = jax.nn.sigmoid(gates[:, 3 * nhid_p:4 * nhid_p])
            c_new = f_g * c + i_g * g_g
            h_new = o_g * jnp.tanh(c_new)
            if padded:
                valid = (blk * t_blk + t) < seq_len
                h_new = jnp.where(valid, h_new, h)
                c_new = jnp.where(valid, c_new, c)
            h_sc[l] = h_new
            c_sc[l] = c_new
            if last_layer:
                y_ref[t] = h_new.astype(y_ref.dtype)
            else:
                xs_sc[pl.ds(row, batch_p), :] = h_new.astype(xs_sc.dtype)
            return carry

        lax.fori_loop(0, t_blk, step, 0, unroll=True)

    @pl.when(blk == pl.num_programs(0) - 1)
    def _():
        hN_ref[...] = h_sc[...]
        cN_ref[...] = c_sc[...]


def fused_lstm(x_emb, packed, h0, c0, *, t_blk=16):
    """Runs the whole nlayers-deep LSTM stack in one Pallas kernel.

    x_emb: (seq, batch, ninp) f32, packed: dict from pack_params,
    h0/c0: (nlayers, batch, nhid) f32.
    Returns (y_padded[bf16, (seq_p, batch_p, nhid_p)], hN, cN)."""
    seq, batch, ninp = x_emb.shape
    nlayers, _, nhid = h0.shape
    w_ih0, w_ihr, w_hh, b = (packed["w_ih0"], packed["w_ihr"],
                             packed["w_hh"], packed["b"])
    param_dtype = w_ih0.dtype
    nin_p = w_ih0.shape[0]
    nhid_p = w_hh.shape[1]
    batch_p = _round_up(batch, 8)

    # Pick t_blk: prefer a divisor of seq close to the request (avoids padding).
    t_blk = max(1, min(t_blk, seq))
    if seq % t_blk:
        for cand in range(t_blk, max(t_blk // 2, 1) - 1, -1):
            if seq % cand == 0:
                t_blk = cand
                break
    padded = bool(seq % t_blk)
    seq_p = _round_up(seq, t_blk)
    n_blocks = seq_p // t_blk

    # Lane/sublane-pad activations; x in bf16 to halve its HBM traffic.
    x_p = (jnp.zeros((seq_p, batch_p, nin_p), param_dtype)
           .at[:seq, :batch, :ninp].set(x_emb.astype(param_dtype)))
    h0_p = jnp.zeros((nlayers, batch_p, nhid_p), jnp.float32).at[:, :batch, :nhid].set(h0)
    c0_p = jnp.zeros((nlayers, batch_p, nhid_p), jnp.float32).at[:, :batch, :nhid].set(c0)

    kernel = functools.partial(
        fused_lstm_kernel, nlayers=nlayers, nhid_p=nhid_p, nin_p=nin_p,
        t_blk=t_blk, seq_len=seq, padded=padded)

    wb = jnp.dtype(param_dtype).itemsize
    est_bytes = (
        (nin_p + max(nlayers - 1, 1) * nhid_p + nlayers * nhid_p) * 4 * nhid_p * wb  # resident W
        + 2 * t_blk * batch_p * nin_p * wb                 # x (double-buffered, bf16)
        + 2 * t_blk * batch_p * nhid_p * 2                 # y (double-buffered, bf16)
        + 2 * nlayers * 4 * nhid_p * 4                     # bias
        + 8 * nlayers * batch_p * nhid_p * 4               # h0/c0/hN/cN buffers
        + t_blk * batch_p * 4 * nhid_p * 4                 # gx scratch
        + t_blk * batch_p * nhid_p * wb                    # xs scratch
        + 2 * nlayers * batch_p * nhid_p * 4)              # h/c scratch

    grid_spec = pltpu.PrefetchScalarGridSpec(
        num_scalar_prefetch=0,
        grid=(n_blocks,),
        in_specs=[
            pl.BlockSpec((t_blk, batch_p, nin_p), lambda i: (i, 0, 0)),       # x block
            pl.BlockSpec(memory_space=pl.ANY),                                # W_ih layer0 (HBM)
            pl.BlockSpec(memory_space=pl.ANY),                                # W_ih layers>=1 (HBM)
            pl.BlockSpec(memory_space=pl.ANY),                                # W_hh (HBM)
            pl.BlockSpec((nlayers, 1, 4 * nhid_p), lambda i: (0, 0, 0)),      # bias
            pl.BlockSpec((nlayers, batch_p, nhid_p), lambda i: (0, 0, 0)),    # h0
            pl.BlockSpec((nlayers, batch_p, nhid_p), lambda i: (0, 0, 0)),    # c0
        ],
        out_specs=[
            pl.BlockSpec((t_blk, batch_p, nhid_p), lambda i: (i, 0, 0)),      # y (bf16)
            pl.BlockSpec((nlayers, batch_p, nhid_p), lambda i: (0, 0, 0)),    # hN
            pl.BlockSpec((nlayers, batch_p, nhid_p), lambda i: (0, 0, 0)),    # cN
        ],
        scratch_shapes=[
            pltpu.VMEM((nin_p, 4 * nhid_p), param_dtype),                     # W_ih layer0
            pltpu.VMEM((max(nlayers - 1, 1), nhid_p, 4 * nhid_p), param_dtype),  # W_ih rest
            pltpu.VMEM((nlayers, nhid_p, 4 * nhid_p), param_dtype),           # W_hh
            pltpu.VMEM((t_blk * batch_p, 4 * nhid_p), jnp.float32),           # gx (x-proj)
            pltpu.VMEM((t_blk * batch_p, nhid_p), param_dtype),               # xs (layer io)
            pltpu.VMEM((nlayers, batch_p, nhid_p), jnp.float32),              # h state
            pltpu.VMEM((nlayers, batch_p, nhid_p), jnp.float32),              # c state
            pltpu.SemaphoreType.DMA((3,)),                                    # weight DMA sems
        ],
    )

    out_shapes = (
        jax.ShapeDtypeStruct((seq_p, batch_p, nhid_p), param_dtype),    # per-step h (padded)
        jax.ShapeDtypeStruct((nlayers, batch_p, nhid_p), jnp.float32),  # final h
        jax.ShapeDtypeStruct((nlayers, batch_p, nhid_p), jnp.float32),  # final c
    )

    y_p, hN_p, cN_p = pl.pallas_call(
        kernel,
        out_shape=out_shapes,
        grid_spec=grid_spec,
        compiler_params=pltpu.CompilerParams(
            dimension_semantics=("arbitrary",),   # time recurrence is sequential
            vmem_limit_bytes=_vmem_limit(est_bytes)),
    )(x_p, w_ih0, w_ihr, w_hh, b, h0_p, c0_p)

    return y_p, hN_p[:, :batch, :nhid], cN_p[:, :batch, :nhid]


# ----------------------------------------------------------------------------
# Decoder: tiled (M, K) @ (K, N) + bias with f32 VMEM accumulator.
# tm covers all of M when it fits so the vocab weights stream from HBM once.
# ----------------------------------------------------------------------------
def decoder_kernel(x_ref, w_ref, b_ref, o_ref, acc_ref):
    k = pl.program_id(2)

    @pl.when(k == 0)
    def _():
        acc_ref[...] = jnp.zeros_like(acc_ref)

    acc_ref[...] += jnp.dot(x_ref[...], w_ref[...],
                            preferred_element_type=jnp.float32)

    @pl.when(k == pl.num_programs(2) - 1)
    def _():
        o_ref[...] = (acc_ref[...] + b_ref[...]).astype(o_ref.dtype)


def _pick_tile(total, candidates):
    for c in candidates:
        if c <= total and total % c == 0:
            return c
    return total


def decoder(x2d, dec_w_p, dec_b_p):
    """x2d: (M, K) bf16 (K already lane-padded), dec_w_p: (K, N_p) bf16,
    dec_b_p: (1, N_p) f32.  Returns (M, N_p) f32 logits."""
    M, K = x2d.shape
    N_p = dec_w_p.shape[1]
    xb = jnp.dtype(x2d.dtype).itemsize
    wb = jnp.dtype(dec_w_p.dtype).itemsize

    M_p = _round_up(M, 8)
    tn = _pick_tile(N_p, [512, 384, 256, 128])
    tk = _pick_tile(K, [1024, 512, 384, 256, 128])

    budget = max(16 * 1024 * 1024, int(0.45 * _device_vmem_bytes()))

    def fits(tm):
        return (2 * tm * tk * xb + 2 * tk * tn * wb
                + 3 * tm * tn * 4 + 2 * tn * 4) <= budget

    tm = 8
    for cand in [M_p] + [c for c in (1024, 512, 256, 128, 64, 32, 16, 8) if c < M_p]:
        if M_p % cand == 0 and fits(cand):
            tm = cand
            break

    x_p = x2d if M_p == M else jnp.zeros((M_p, K), x2d.dtype).at[:M, :].set(x2d)

    est_bytes = (2 * tm * tk * xb + 2 * tk * tn * wb + 3 * tm * tn * 4 + 2 * tn * 4)

    out = pl.pallas_call(
        decoder_kernel,
        out_shape=jax.ShapeDtypeStruct((M_p, N_p), jnp.float32),
        grid_spec=pltpu.PrefetchScalarGridSpec(
            num_scalar_prefetch=0,
            grid=(M_p // tm, N_p // tn, K // tk),
            in_specs=[
                pl.BlockSpec((tm, tk), lambda i, j, k: (i, k)),
                pl.BlockSpec((tk, tn), lambda i, j, k: (k, j)),
                pl.BlockSpec((1, tn), lambda i, j, k: (0, j)),
            ],
            out_specs=pl.BlockSpec((tm, tn), lambda i, j, k: (i, j)),
            scratch_shapes=[pltpu.VMEM((tm, tn), jnp.float32)],
        ),
        compiler_params=pltpu.CompilerParams(
            dimension_semantics=("parallel", "parallel", "arbitrary"),
            vmem_limit_bytes=_vmem_limit(est_bytes)),
    )(x_p, dec_w_p, dec_b_p)
    return out[:M]


# ----------------------------------------------------------------------------
# Parameter construction (matching module __init__ shapes)
# ----------------------------------------------------------------------------
def init_params(key, ntoken, ninp, nhid, nlayers):
    initrange = 0.1
    keys = jax.random.split(key, 2 + 4 * nlayers)
    enc_w = jax.random.uniform(keys[0], (ntoken, ninp), jnp.float32, -initrange, initrange)
    dec_w = jax.random.uniform(keys[1], (ntoken, nhid), jnp.float32, -initrange, initrange)
    dec_b = jnp.zeros((ntoken,), jnp.float32)

    lstm = []
    k = 2
    stdv = 1.0 / float(nhid) ** 0.5
    for layer in range(nlayers):
        in_f = ninp if layer == 0 else nhid
        wih = jax.random.uniform(keys[k + 0], (4 * nhid, in_f), jnp.float32, -stdv, stdv)
        whh = jax.random.uniform(keys[k + 1], (4 * nhid, nhid), jnp.float32, -stdv, stdv)
        bih = jax.random.uniform(keys[k + 2], (4 * nhid,), jnp.float32, -stdv, stdv)
        bhh = jax.random.uniform(keys[k + 3], (4 * nhid,), jnp.float32, -stdv, stdv)
        lstm.append((wih, whh, bih, bhh))
        k += 4
    return {"enc_w": enc_w, "dec_w": dec_w, "dec_b": dec_b, "lstm": lstm}


# ----------------------------------------------------------------------------
# Forward pass (matches RNNModel.forward, eval mode: dropout = identity)
# ----------------------------------------------------------------------------
def rnn_model_forward(packed, tokens, hidden):
    h0, c0 = hidden                                     # each (nlayers, batch, nhid)
    batch = h0.shape[1]
    seq = tokens.shape[0]
    ntoken = packed["enc_w"].shape[0]

    # Embedding gather + eval-mode dropout (identity) stay in plain JAX.
    # TODO(synk): fuse the embedding gather into the LSTM kernel (scalar-prefetched
    # token ids + row gather) once production vocab sizes make the HBM round-trip matter.
    emb = jnp.take(packed["enc_w"], tokens, axis=0)     # (seq, batch, ninp) f32

    # Fused nlayers-deep LSTM (bf16 lane-padded output feeds the decoder directly).
    y_p, hN, cN = fused_lstm(emb, packed, h0, c0)

    seq_p, batch_p, nhid_p = y_p.shape
    decoded_p = decoder(y_p.reshape(seq_p * batch_p, nhid_p),
                        packed["dec_w"], packed["dec_b"])
    decoded = decoded_p.reshape(seq_p, batch_p, -1)[:seq, :batch, :ntoken]
    return decoded, (hN, cN)


def init_hidden(nlayers, bsz, nhid):
    return (jnp.zeros((nlayers, bsz, nhid), jnp.float32),
            jnp.zeros((nlayers, bsz, nhid), jnp.float32))


# ----------------------------------------------------------------------------
# Pure-JAX reference (for numerical validation of the Pallas path)
# ----------------------------------------------------------------------------
def _reference_forward(params, tokens, hidden):
    h0, c0 = hidden
    x = jnp.take(params["enc_w"], tokens, axis=0)
    hs, cs = [], []
    for l, (wih, whh, bih, bhh) in enumerate(params["lstm"]):
        nhid = whh.shape[1]

        def step(carry, x_t, wih=wih, whh=whh, b=bih + bhh, nhid=nhid):
            h, c = carry
            gates = x_t @ wih.T + h @ whh.T + b
            i = jax.nn.sigmoid(gates[:, 0 * nhid:1 * nhid])
            f = jax.nn.sigmoid(gates[:, 1 * nhid:2 * nhid])
            g = jnp.tanh(gates[:, 2 * nhid:3 * nhid])
            o = jax.nn.sigmoid(gates[:, 3 * nhid:4 * nhid])
            c = f * c + i * g
            h = o * jnp.tanh(c)
            return (h, c), h

        (hN, cN), x = lax.scan(step, (h0[l], c0[l]), x)
        hs.append(hN)
        cs.append(cN)
    dec = x @ params["dec_w"].T + params["dec_b"]
    return dec, (jnp.stack(hs), jnp.stack(cs))


if __name__ == "__main__":
    # Small shapes consistent with the module's forward.
    ntoken, ninp, nhid, nlayers = 40, 16, 32, 2
    seq_len, batch = 8, 2

    key = jax.random.PRNGKey(0)
    pkey, tkey = jax.random.split(key)
    params = init_params(pkey, ntoken, ninp, nhid, nlayers)

    # One-time weight preprocessing (outside the jitted forward).
    packed = pack_params(params)

    tokens = jax.random.randint(tkey, (seq_len, batch), 0, ntoken, dtype=jnp.int32)
    hidden = init_hidden(nlayers, batch, nhid)

    fwd = jax.jit(rnn_model_forward)
    decoded, (hN, cN) = fwd(packed, tokens, hidden)
    jax.block_until_ready((decoded, hN, cN))

    assert decoded.shape == (seq_len, batch, ntoken)
    assert hN.shape == (nlayers, batch, nhid)
    assert cN.shape == (nlayers, batch, nhid)

    # Numerical check vs. pure-JAX reference (bf16 weights/activations -> loose tol).
    ref_dec, (ref_h, ref_c) = _reference_forward(params, tokens, hidden)
    assert float(jnp.max(jnp.abs(decoded - ref_dec))) < 5e-2
    assert float(jnp.max(jnp.abs(hN - ref_h))) < 5e-2
    assert float(jnp.max(jnp.abs(cN - ref_c))) < 5e-2

    print("KERNEL_OK")
</pallas_src>

<mosaic_0001>
module attributes {stable_mosaic.version = 11 : i64} {
  func.func @decoder_kernel(%arg0: i32, %arg1: i32, %arg2: i32, %arg3: memref<64x128xbf16, #tpu.memory_space<vmem>>, %arg4: memref<128x128xbf16, #tpu.memory_space<vmem>>, %arg5: memref<1x128xf32, #tpu.memory_space<vmem>>, %arg6: memref<64x128xf32, #tpu.memory_space<vmem>>, %arg7: memref<64x128xf32, #tpu.memory_space<vmem>>) attributes {dimension_semantics = [#tpu.dimension_semantics<parallel>, #tpu.dimension_semantics<parallel>, #tpu.dimension_semantics<arbitrary>], iteration_bounds = array<i64: 1, 1, 1>, scalar_prefetch = 0 : i64, scratch_operands = 1 : i64, tpu.core_type = #tpu.core_type<tc>, window_params = [{transform_indices = @transform_0, window_bounds = array<i64: 64, 128>}, {transform_indices = @transform_1, window_bounds = array<i64: 128, 128>}, {transform_indices = @transform_2, window_bounds = array<i64: 1, 128>}, {transform_indices = @transform_3, window_bounds = array<i64: 64, 128>}]} {
    %c0_i32 = arith.constant 0 : i32
    %0 = arith.cmpi eq, %arg2, %c0_i32 : i32
    %1 = arith.extui %0 : i1 to i32
    %c0_i32_0 = arith.constant 0 : i32
    %2 = arith.cmpi ne, %1, %c0_i32_0 : i32
    scf.if %2 {
      %cst_10 = arith.constant 0.000000e+00 : f32
      %12 = vector.broadcast %cst_10 : f32 to vector<64x128xf32>
      %c0_11 = arith.constant 0 : index
      %c0_12 = arith.constant 0 : index
      %13 = vector.load %arg7[%c0_11, %c0_12] : memref<64x128xf32, #tpu.memory_space<vmem>>, vector<64x128xf32>
      tpu.vector_store %arg7[%c0_11, %c0_12], %12 {strides = array<i32>} : memref<64x128xf32, #tpu.memory_space<vmem>>, vector<64x128xf32>,
    } else {
    }
    %c0 = arith.constant 0 : index
    %c0_1 = arith.constant 0 : index
    %3 = vector.load %arg7[%c0, %c0_1] : memref<64x128xf32, #tpu.memory_space<vmem>>, vector<64x128xf32>
    %c0_2 = arith.constant 0 : index
    %c0_3 = arith.constant 0 : index
    %4 = vector.load %arg3[%c0_2, %c0_3] : memref<64x128xbf16, #tpu.memory_space<vmem>>, vector<64x128xbf16>
    %c0_4 = arith.constant 0 : index
    %c0_5 = arith.constant 0 : index
    %5 = vector.load %arg4[%c0_4, %c0_5] : memref<128x128xbf16, #tpu.memory_space<vmem>>, vector<128x128xbf16>
    %cst = arith.constant dense<0.000000e+00> : vector<64x128xf32>
    %6 = tpu.matmul %4, %5, %cst {dimension_numbers = #tpu.dot_dimension_numbers<[1], [0], [0], [1], [0, 0, 1, 1], [], []>} : vector<64x128xbf16>, vector<128x128xbf16>, vector<64x128xf32> -> vector<64x128xf32>
    %7 = arith.addf %3, %6 : vector<64x128xf32>
    %c0_6 = arith.constant 0 : index
    %c0_7 = arith.constant 0 : index
    %8 = vector.load %arg7[%c0_6, %c0_7] : memref<64x128xf32, #tpu.memory_space<vmem>>, vector<64x128xf32>
    tpu.vector_store %arg7[%c0_6, %c0_7], %7 {strides = array<i32>} : memref<64x128xf32, #tpu.memory_space<vmem>>, vector<64x128xf32>,
    %c0_i32_8 = arith.constant 0 : i32
    %9 = arith.cmpi eq, %arg2, %c0_i32_8 : i32
    %10 = arith.extui %9 : i1 to i32
    %c0_i32_9 = arith.constant 0 : i32
    %11 = arith.cmpi ne, %10, %c0_i32_9 : i32
    scf.if %11 {
      %c0_10 = arith.constant 0 : index
      %c0_11 = arith.constant 0 : index
      %12 = vector.load %arg7[%c0_10, %c0_11] : memref<64x128xf32, #tpu.memory_space<vmem>>, vector<64x128xf32>
      %c0_12 = arith.constant 0 : index
      %c0_13 = arith.constant 0 : index
      %13 = vector.load %arg5[%c0_12, %c0_13] : memref<1x128xf32, #tpu.memory_space<vmem>>, vector<1x128xf32>
      %14 = vector.broadcast %13 : vector<1x128xf32> to vector<64x128xf32>
      %15 = arith.addf %12, %14 : vector<64x128xf32>
      %c0_14 = arith.constant 0 : index
      %c0_15 = arith.constant 0 : index
      %16 = vector.load %arg6[%c0_14, %c0_15] : memref<64x128xf32, #tpu.memory_space<vmem>>, vector<64x128xf32>
      tpu.vector_store %arg6[%c0_14, %c0_15], %15 {strides = array<i32>} : memref<64x128xf32, #tpu.memory_space<vmem>>, vector<64x128xf32>,
    } else {
    }
    return
  }
  func.func @transform_0(%arg0: i32, %arg1: i32, %arg2: i32) -> (i32, i32) {
    %c0_i32 = arith.constant 0 : i32
    return %arg0, %arg2 : i32, i32
  }
  func.func @transform_1(%arg0: i32, %arg1: i32, %arg2: i32) -> (i32, i32) {
    %c0_i32 = arith.constant 0 : i32
    return %arg2, %arg1 : i32, i32
  }
  func.func @transform_2(%arg0: i32, %arg1: i32, %arg2: i32) -> (i32, i32) {
    %c0_i32 = arith.constant 0 : i32
    %c0_i32_0 = arith.constant 0 : i32
    return %c0_i32, %arg1 : i32, i32
  }
  func.func @transform_3(%arg0: i32, %arg1: i32, %arg2: i32) -> (i32, i32) {
    %c0_i32 = arith.constant 0 : i32
    return %arg0, %arg1 : i32, i32
  }
}

module attributes {stable_mosaic.version = 11 : i64} {
  func.func @fused_lstm_kernel(%arg0: i32, %arg1: memref<8x8x128xbf16, #tpu.memory_space<vmem>>, %arg2: memref<128x512xbf16, #tpu.memory_space<any>>, %arg3: memref<1x128x512xbf16, #tpu.memory_space<any>>, %arg4: memref<2x128x512xbf16, #tpu.memory_space<any>>, %arg5: memref<2x1x512xf32, #tpu.memory_space<vmem>>, %arg6: memref<2x8x128xf32, #tpu.memory_space<vmem>>, %arg7: memref<2x8x128xf32, #tpu.memory_space<vmem>>, %arg8: memref<8x8x128xbf16, #tpu.memory_space<vmem>>, %arg9: memref<2x8x128xf32, #tpu.memory_space<vmem>>, %arg10: memref<2x8x128xf32, #tpu.memory_space<vmem>>, %arg11: memref<128x512xbf16, #tpu.memory_space<vmem>>, %arg12: memref<1x128x512xbf16, #tpu.memory_space<vmem>>, %arg13: memref<2x128x512xbf16, #tpu.memory_space<vmem>>, %arg14: memref<64x512xf32, #tpu.memory_space<vmem>>, %arg15: memref<64x128xbf16, #tpu.memory_space<vmem>>, %arg16: memref<2x8x128xf32, #tpu.memory_space<vmem>>, %arg17: memref<2x8x128xf32, #tpu.memory_space<vmem>>, %arg18: memref<3x!tpu.dma_semaphore, #tpu.memory_space<semaphore_mem>>) attributes {dimension_semantics = [#tpu.dimension_semantics<arbitrary>], iteration_bounds = array<i64: 1>, scalar_prefetch = 0 : i64, scratch_operands = 8 : i64, tpu.core_type = #tpu.core_type<tc>, window_params = [{transform_indices = @transform_0, window_bounds = array<i64: 8, 8, 128>}, {}, {}, {}, {pipeline_mode = #tpu.pipeline_mode<synchronous>, transform_indices = @transform_4, window_bounds = array<i64: 2, 1, 512>}, {pipeline_mode = #tpu.pipeline_mode<synchronous>, transform_indices = @transform_5, window_bounds = array<i64: 2, 8, 128>}, {pipeline_mode = #tpu.pipeline_mode<synchronous>, transform_indices = @transform_6, window_bounds = array<i64: 2, 8, 128>}, {transform_indices = @transform_7, window_bounds = array<i64: 8, 8, 128>}, {pipeline_mode = #tpu.pipeline_mode<synchronous>, transform_indices = @transform_8, window_bounds = array<i64: 2, 8, 128>}, {pipeline_mode = #tpu.pipeline_mode<synchronous>, transform_indices = @transform_9, window_bounds = array<i64: 2, 8, 128>}]} {
    %c0_i32 = arith.constant 0 : i32
    %0 = arith.cmpi eq, %arg0, %c0_i32 : i32
    %1 = arith.extui %0 : i1 to i32
    %c0_i32_0 = arith.constant 0 : i32
    %2 = arith.cmpi ne, %1, %c0_i32_0 : i32
    scf.if %2 {
      %c0_i32_350 = arith.constant 0 : i32
      %792 = tpu.memref_slice %arg18[%c0_i32_350] : memref<3x!tpu.dma_semaphore, #tpu.memory_space<semaphore_mem>> -> memref<1x!tpu.dma_semaphore, #tpu.memory_space<semaphore_mem>>
      %793 = tpu.memref_squeeze %792 : memref<1x!tpu.dma_semaphore, #tpu.memory_space<semaphore_mem>> -> memref<!tpu.dma_semaphore, #tpu.memory_space<semaphore_mem>>
      tpu.enqueue_dma source(%arg2 : memref<128x512xbf16, #tpu.memory_space<any>>) target(%arg11 : memref<128x512xbf16, #tpu.memory_space<vmem>>) target_semaphore(%793 : memref<!tpu.dma_semaphore, #tpu.memory_space<semaphore_mem>>)
      %c2_i32_351 = arith.constant 2 : i32
      %794 = tpu.memref_slice %arg18[%c2_i32_351] : memref<3x!tpu.dma_semaphore, #tpu.memory_space<semaphore_mem>> -> memref<1x!tpu.dma_semaphore, #tpu.memory_space<semaphore_mem>>
      %795 = tpu.memref_squeeze %794 : memref<1x!tpu.dma_semaphore, #tpu.memory_space<semaphore_mem>> -> memref<!tpu.dma_semaphore, #tpu.memory_space<semaphore_mem>>
      tpu.enqueue_dma source(%arg4 : memref<2x128x512xbf16, #tpu.memory_space<any>>) target(%arg13 : memref<2x128x512xbf16, #tpu.memory_space<vmem>>) target_semaphore(%795 : memref<!tpu.dma_semaphore, #tpu.memory_space<semaphore_mem>>)
      %c1_i32_352 = arith.constant 1 : i32
      %796 = tpu.memref_slice %arg18[%c1_i32_352] : memref<3x!tpu.dma_semaphore, #tpu.memory_space<semaphore_mem>> -> memref<1x!tpu.dma_semaphore, #tpu.memory_space<semaphore_mem>>
      %797 = tpu.memref_squeeze %796 : memref<1x!tpu.dma_semaphore, #tpu.memory_space<semaphore_mem>> -> memref<!tpu.dma_semaphore, #tpu.memory_space<semaphore_mem>>
      tpu.enqueue_dma source(%arg3 : memref<1x128x512xbf16, #tpu.memory_space<any>>) target(%arg12 : memref<1x128x512xbf16, #tpu.memory_space<vmem>>) target_semaphore(%797 : memref<!tpu.dma_semaphore, #tpu.memory_space<semaphore_mem>>)
      %c0_353 = arith.constant 0 : index
      %c0_354 = arith.constant 0 : index
      %c0_355 = arith.constant 0 : index
      %798 = vector.load %arg6[%c0_353, %c0_354, %c0_355] : memref<2x8x128xf32, #tpu.memory_space<vmem>>, vector<2x8x128xf32>
      %c0_356 = arith.constant 0 : index
      %c0_357 = arith.constant 0 : index
      %c0_358 = arith.constant 0 : index
      %799 = vector.load %arg16[%c0_356, %c0_357, %c0_358] : memref<2x8x128xf32, #tpu.memory_space<vmem>>, vector<2x8x128xf32>
      tpu.vector_store %arg16[%c0_356, %c0_357, %c0_358], %798 {strides = array<i32>} : memref<2x8x128xf32, #tpu.memory_space<vmem>>, vector<2x8x128xf32>,
      %c0_359 = arith.constant 0 : index
      %c0_360 = arith.constant 0 : index
      %c0_361 = arith.constant 0 : index
      %800 = vector.load %arg7[%c0_359, %c0_360, %c0_361] : memref<2x8x128xf32, #tpu.memory_space<vmem>>, vector<2x8x128xf32>
      %c0_362 = arith.constant 0 : index
      %c0_363 = arith.constant 0 : index
      %c0_364 = arith.constant 0 : index
      %801 = vector.load %arg17[%c0_362, %c0_363, %c0_364] : memref<2x8x128xf32, #tpu.memory_space<vmem>>, vector<2x8x128xf32>
      tpu.vector_store %arg17[%c0_362, %c0_363, %c0_364], %800 {strides = array<i32>} : memref<2x8x128xf32, #tpu.memory_space<vmem>>, vector<2x8x128xf32>,
      %c0_i32_365 = arith.constant 0 : i32
      %802 = tpu.memref_slice %arg18[%c0_i32_365] : memref<3x!tpu.dma_semaphore, #tpu.memory_space<semaphore_mem>> -> memref<1x!tpu.dma_semaphore, #tpu.memory_space<semaphore_mem>>
      %803 = tpu.memref_squeeze %802 : memref<1x!tpu.dma_semaphore, #tpu.memory_space<semaphore_mem>> -> memref<!tpu.dma_semaphore, #tpu.memory_space<semaphore_mem>>
      tpu.wait_dma2 semaphore(%803 : memref<!tpu.dma_semaphore, #tpu.memory_space<semaphore_mem>>) src(%arg2 : memref<128x512xbf16, #tpu.memory_space<any>>) dst(%arg11 : memref<128x512xbf16, #tpu.memory_space<vmem>>)
      %c2_i32_366 = arith.constant 2 : i32
      %804 = tpu.memref_slice %arg18[%c2_i32_366] : memref<3x!tpu.dma_semaphore, #tpu.memory_space<semaphore_mem>> -> memref<1x!tpu.dma_semaphore, #tpu.memory_space<semaphore_mem>>
      %805 = tpu.memref_squeeze %804 : memref<1x!tpu.dma_semaphore, #tpu.memory_space<semaphore_mem>> -> memref<!tpu.dma_semaphore, #tpu.memory_space<semaphore_mem>>
      tpu.wait_dma2 semaphore(%805 : memref<!tpu.dma_semaphore, #tpu.memory_space<semaphore_mem>>) src(%arg4 : memref<2x128x512xbf16, #tpu.memory_space<any>>) dst(%arg13 : memref<2x128x512xbf16, #tpu.memory_space<vmem>>)
      %c1_i32_367 = arith.constant 1 : i32
      %806 = tpu.memref_slice %arg18[%c1_i32_367] : memref<3x!tpu.dma_semaphore, #tpu.memory_space<semaphore_mem>> -> memref<1x!tpu.dma_semaphore, #tpu.memory_space<semaphore_mem>>
      %807 = tpu.memref_squeeze %806 : memref<1x!tpu.dma_semaphore, #tpu.memory_space<semaphore_mem>> -> memref<!tpu.dma_semaphore, #tpu.memory_space<semaphore_mem>>
      tpu.wait_dma2 semaphore(%807 : memref<!tpu.dma_semaphore, #tpu.memory_space<semaphore_mem>>) src(%arg3 : memref<1x128x512xbf16, #tpu.memory_space<any>>) dst(%arg12 : memref<1x128x512xbf16, #tpu.memory_space<vmem>>)
    } else {
    }
    %c0 = arith.constant 0 : index
    %c0_1 = arith.constant 0 : index
    %c0_2 = arith.constant 0 : index
    %3 = vector.load %arg1[%c0, %c0_1, %c0_2] : memref<8x8x128xbf16, #tpu.memory_space<vmem>>, vector<8x8x128xbf16>
    %4 = vector.shape_cast %3 : vector<8x8x128xbf16> to vector<64x128xbf16>
    %c0_3 = arith.constant 0 : index
    %c0_4 = arith.constant 0 : index
    %5 = vector.load %arg11[%c0_3, %c0_4] : memref<128x512xbf16, #tpu.memory_space<vmem>>, vector<128x512xbf16>
    %cst = arith.constant dense<0.000000e+00> : vector<64x512xf32>
    %6 = tpu.matmul %4, %5, %cst {dimension_numbers = #tpu.dot_dimension_numbers<[1], [0], [0], [1], [0, 0, 1, 1], [], []>} : vector<64x128xbf16>, vector<128x512xbf16>, vector<64x512xf32> -> vector<64x512xf32>
    %c0_5 = arith.constant 0 : index
    %c0_6 = arith.constant 0 : index
    %7 = vector.load %arg14[%c0_5, %c0_6] : memref<64x512xf32, #tpu.memory_space<vmem>>, vector<64x512xf32>
    tpu.vector_store %arg14[%c0_5, %c0_6], %6 {strides = array<i32>} : memref<64x512xf32, #tpu.memory_space<vmem>>, vector<64x512xf32>,
    %c0_7 = arith.constant 0 : index
    %c0_8 = arith.constant 0 : index
    %c0_9 = arith.constant 0 : index
    %8 = vector.load %arg13[%c0_7, %c0_8, %c0_9] : memref<2x128x512xbf16, #tpu.memory_space<vmem>>, vector<1x128x512xbf16>
    %9 = vector.shape_cast %8 : vector<1x128x512xbf16> to vector<128x512xbf16>
    %c0_10 = arith.constant 0 : index
    %c0_11 = arith.constant 0 : index
    %c0_12 = arith.constant 0 : index
    %10 = vector.load %arg5[%c0_10, %c0_11, %c0_12] : memref<2x1x512xf32, #tpu.memory_space<vmem>>, vector<1x1x512xf32>
    %11 = vector.shape_cast %10 : vector<1x1x512xf32> to vector<1x512xf32>
    %c0_i32_13 = arith.constant 0 : i32
    %c8_i32 = arith.constant 8 : i32
    %12 = arith.muli %c0_i32_13, %c8_i32 : i32
    %13 = tpu.assume_multiple %12, 8 : i32
    %c0_14 = arith.constant 0 : index
    %c0_15 = arith.constant 0 : index
    %c0_16 = arith.constant 0 : index
    %14 = vector.load %arg16[%c0_14, %c0_15, %c0_16] : memref<2x8x128xf32, #tpu.memory_space<vmem>>, vector<1x8x128xf32>
    %15 = vector.shape_cast %14 : vector<1x8x128xf32> to vector<8x128xf32>
    %c0_17 = arith.constant 0 : index
    %c0_18 = arith.constant 0 : index
    %c0_19 = arith.constant 0 : index
    %16 = vector.load %arg17[%c0_17, %c0_18, %c0_19] : memref<2x8x128xf32, #tpu.memory_space<vmem>>, vector<1x8x128xf32>
    %17 = vector.shape_cast %16 : vector<1x8x128xf32> to vector<8x128xf32>
    %18 = arith.index_cast %13 : i32 to index
    %c0_20 = arith.constant 0 : index
    %19 = vector.load %arg14[%18, %c0_20] : memref<64x512xf32, #tpu.memory_space<vmem>>, vector<8x512xf32>
    %20 = arith.truncf %15 : vector<8x128xf32> to vector<8x128xbf16>
    %cst_21 = arith.constant dense<0.000000e+00> : vector<8x512xf32>
    %21 = tpu.matmul %20, %9, %cst_21 {dimension_numbers = #tpu.dot_dimension_numbers<[1], [0], [0], [1], [0, 0, 1, 1], [], []>} : vector<8x128xbf16>, vector<128x512xbf16>, vector<8x512xf32> -> vector<8x512xf32>
    %22 = arith.addf %19, %21 : vector<8x512xf32>
    %23 = vector.broadcast %11 : vector<1x512xf32> to vector<8x512xf32>
    %24 = arith.addf %22, %23 : vector<8x512xf32>
    %25 = vector.extract_strided_slice %24 {offsets = [0, 0], sizes = [8, 128], strides = [1, 1]} : vector<8x512xf32> to vector<8x128xf32>
    %26 = arith.negf %25 : vector<8x128xf32>
    %27 = math.exp %26 : vector<8x128xf32>
    %cst_22 = arith.constant 1.000000e+00 : f32
    %28 = vector.broadcast %cst_22 : f32 to vector<8x128xf32>
    %29 = arith.addf %28, %27 : vector<8x128xf32>
    %30 = arith.divf %28, %29 : vector<8x128xf32>
    %31 = vector.extract_strided_slice %24 {offsets = [0, 128], sizes = [8, 128], strides = [1, 1]} : vector<8x512xf32> to vector<8x128xf32>
    %32 = arith.negf %31 : vector<8x128xf32>
    %33 = math.exp %32 : vector<8x128xf32>
    %cst_23 = arith.constant 1.000000e+00 : f32
    %34 = vector.broadcast %cst_23 : f32 to vector<8x128xf32>
    %35 = arith.addf %34, %33 : vector<8x128xf32>
    %36 = arith.divf %34, %35 : vector<8x128xf32>
    %37 = vector.extract_strided_slice %24 {offsets = [0, 256], sizes = [8, 128], strides = [1, 1]} : vector<8x512xf32> to vector<8x128xf32>
    %38 = math.tanh %37 : vector<8x128xf32>
    %39 = vector.extract_strided_slice %24 {offsets = [0, 384], sizes = [8, 128], strides = [1, 1]} : vector<8x512xf32> to vector<8x128xf32>
    %40 = arith.negf %39 : vector<8x128xf32>
    %41 = math.exp %40 : vector<8x128xf32>
    %cst_24 = arith.constant 1.000000e+00 : f32
    %42 = vector.broadcast %cst_24 : f32 to vector<8x128xf32>
    %43 = arith.addf %42, %41 : vector<8x128xf32>
    %44 = arith.divf %42, %43 : vector<8x128xf32>
    %45 = arith.mulf %36, %17 : vector<8x128xf32>
    %46 = arith.mulf %30, %38 : vector<8x128xf32>
    %47 = arith.addf %45, %46 : vector<8x128xf32>
    %48 = math.tanh %47 : vector<8x128xf32>
    %49 = arith.mulf %44, %48 : vector<8x128xf32>
    %c0_25 = arith.constant 0 : index
    %c0_26 = arith.constant 0 : index
    %c0_27 = arith.constant 0 : index
    %50 = vector.load %arg16[%c0_25, %c0_26, %c0_27] : memref<2x8x128xf32, #tpu.memory_space<vmem>>, vector<1x8x128xf32>
    %51 = vector.shape_cast %50 : vector<1x8x128xf32> to vector<8x128xf32>
    %52 = vector.shape_cast %49 : vector<8x128xf32> to vector<1x8x128xf32>
    tpu.vector_store %arg16[%c0_25, %c0_26, %c0_27], %52 {strides = array<i32>} : memref<2x8x128xf32, #tpu.memory_space<vmem>>, vector<1x8x128xf32>,
    %c0_28 = arith.constant 0 : index
    %c0_29 = arith.constant 0 : index
    %c0_30 = arith.constant 0 : index
    %53 = vector.load %arg17[%c0_28, %c0_29, %c0_30] : memref<2x8x128xf32, #tpu.memory_space<vmem>>, vector<1x8x128xf32>
    %54 = vector.shape_cast %53 : vector<1x8x128xf32> to vector<8x128xf32>
    %55 = vector.shape_cast %47 : vector<8x128xf32> to vector<1x8x128xf32>
    tpu.vector_store %arg17[%c0_28, %c0_29, %c0_30], %55 {strides = array<i32>} : memref<2x8x128xf32, #tpu.memory_space<vmem>>, vector<1x8x128xf32>,
    %56 = arith.truncf %49 : vector<8x128xf32> to vector<8x128xbf16>
    %57 = arith.index_cast %13 : i32 to index
    %c0_31 = arith.constant 0 : index
    %58 = vector.load %arg15[%57, %c0_31] : memref<64x128xbf16, #tpu.memory_space<vmem>>, vector<8x128xbf16>
    tpu.vector_store %arg15[%57, %c0_31], %56 {strides = array<i32>} : memref<64x128xbf16, #tpu.memory_space<vmem>>, vector<8x128xbf16>,
    %c1_i32 = arith.constant 1 : i32
    %c8_i32_32 = arith.constant 8 : i32
    %59 = arith.muli %c1_i32, %c8_i32_32 : i32
    %60 = tpu.assume_multiple %59, 8 : i32
    %c0_33 = arith.constant 0 : index
    %c0_34 = arith.constant 0 : index
    %c0_35 = arith.constant 0 : index
    %61 = vector.load %arg16[%c0_33, %c0_34, %c0_35] : memref<2x8x128xf32, #tpu.memory_space<vmem>>, vector<1x8x128xf32>
    %62 = vector.shape_cast %61 : vector<1x8x128xf32> to vector<8x128xf32>
    %c0_36 = arith.constant 0 : index
    %c0_37 = arith.constant 0 : index
    %c0_38 = arith.constant 0 : index
    %63 = vector.load %arg17[%c0_36, %c0_37, %c0_38] : memref<2x8x128xf32, #tpu.memory_space<vmem>>, vector<1x8x128xf32>
    %64 = vector.shape_cast %63 : vector<1x8x128xf32> to vector<8x128xf32>
    %65 = arith.index_cast %60 : i32 to index
    %c0_39 = arith.constant 0 : index
    %66 = vector.load %arg14[%65, %c0_39] : memref<64x512xf32, #tpu.memory_space<vmem>>, vector<8x512xf32>
    %67 = arith.truncf %62 : vector<8x128xf32> to vector<8x128xbf16>
    %cst_40 = arith.constant dense<0.000000e+00> : vector<8x512xf32>
    %68 = tpu.matmul %67, %9, %cst_40 {dimension_numbers = #tpu.dot_dimension_numbers<[1], [0], [0], [1], [0, 0, 1, 1], [], []>} : vector<8x128xbf16>, vector<128x512xbf16>, vector<8x512xf32> -> vector<8x512xf32>
    %69 = arith.addf %66, %68 : vector<8x512xf32>
    %70 = vector.broadcast %11 : vector<1x512xf32> to vector<8x512xf32>
    %71 = arith.addf %69, %70 : vector<8x512xf32>
    %72 = vector.extract_strided_slice %71 {offsets = [0, 0], sizes = [8, 128], strides = [1, 1]} : vector<8x512xf32> to vector<8x128xf32>
    %73 = arith.negf %72 : vector<8x128xf32>
    %74 = math.exp %73 : vector<8x128xf32>
    %cst_41 = arith.constant 1.000000e+00 : f32
    %75 = vector.broadcast %cst_41 : f32 to vector<8x128xf32>
    %76 = arith.addf %75, %74 : vector<8x128xf32>
    %77 = arith.divf %75, %76 : vector<8x128xf32>
    %78 = vector.extract_strided_slice %71 {offsets = [0, 128], sizes = [8, 128], strides = [1, 1]} : vector<8x512xf32> to vector<8x128xf32>
    %79 = arith.negf %78 : vector<8x128xf32>
    %80 = math.exp %79 : vector<8x128xf32>
    %cst_42 = arith.constant 1.000000e+00 : f32
    %81 = vector.broadcast %cst_42 : f32 to vector<8x128xf32>
    %82 = arith.addf %81, %80 : vector<8x128xf32>
    %83 = arith.divf %81, %82 : vector<8x128xf32>
    %84 = vector.extract_strided_slice %71 {offsets = [0, 256], sizes = [8, 128], strides = [1, 1]} : vector<8x512xf32> to vector<8x128xf32>
    %85 = math.tanh %84 : vector<8x128xf32>
    %86 = vector.extract_strided_slice %71 {offsets = [0, 384], sizes = [8, 128], strides = [1, 1]} : vector<8x512xf32> to vector<8x128xf32>
    %87 = arith.negf %86 : vector<8x128xf32>
    %88 = math.exp %87 : vector<8x128xf32>
    %cst_43 = arith.constant 1.000000e+00 : f32
    %89 = vector.broadcast %cst_43 : f32 to vector<8x128xf32>
    %90 = arith.addf %89, %88 : vector<8x128xf32>
    %91 = arith.divf %89, %90 : vector<8x128xf32>
    %92 = arith.mulf %83, %64 : vector<8x128xf32>
    %93 = arith.mulf %77, %85 : vector<8x128xf32>
    %94 = arith.addf %92, %93 : vector<8x128xf32>
    %95 = math.tanh %94 : vector<8x128xf32>
    %96 = arith.mulf %91, %95 : vector<8x128xf32>
    %c0_44 = arith.constant 0 : index
    %c0_45 = arith.constant 0 : index
    %c0_46 = arith.constant 0 : index
    %97 = vector.load %arg16[%c0_44, %c0_45, %c0_46] : memref<2x8x128xf32, #tpu.memory_space<vmem>>, vector<1x8x128xf32>
    %98 = vector.shape_cast %97 : vector<1x8x128xf32> to vector<8x128xf32>
    %99 = vector.shape_cast %96 : vector<8x128xf32> to vector<1x8x128xf32>
    tpu.vector_store %arg16[%c0_44, %c0_45, %c0_46], %99 {strides = array<i32>} : memref<2x8x128xf32, #tpu.memory_space<vmem>>, vector<1x8x128xf32>,
    %c0_47 = arith.constant 0 : index
    %c0_48 = arith.constant 0 : index
    %c0_49 = arith.constant 0 : index
    %100 = vector.load %arg17[%c0_47, %c0_48, %c0_49] : memref<2x8x128xf32, #tpu.memory_space<vmem>>, vector<1x8x128xf32>
    %101 = vector.shape_cast %100 : vector<1x8x128xf32> to vector<8x128xf32>
    %102 = vector.shape_cast %94 : vector<8x128xf32> to vector<1x8x128xf32>
    tpu.vector_store %arg17[%c0_47, %c0_48, %c0_49], %102 {strides = array<i32>} : memref<2x8x128xf32, #tpu.memory_space<vmem>>, vector<1x8x128xf32>,
    %103 = arith.truncf %96 : vector<8x128xf32> to vector<8x128xbf16>
    %104 = arith.index_cast %60 : i32 to index
    %c0_50 = arith.constant 0 : index
    %105 = vector.load %arg15[%104, %c0_50] : memref<64x128xbf16, #tpu.memory_space<vmem>>, vector<8x128xbf16>
    tpu.vector_store %arg15[%104, %c0_50], %103 {strides = array<i32>} : memref<64x128xbf16, #tpu.memory_space<vmem>>, vector<8x128xbf16>,
    %c2_i32 = arith.constant 2 : i32
    %c8_i32_51 = arith.constant 8 : i32
    %106 = arith.muli %c2_i32, %c8_i32_51 : i32
    %107 = tpu.assume_multiple %106, 8 : i32
    %c0_52 = arith.constant 0 : index
    %c0_53 = arith.constant 0 : index
    %c0_54 = arith.constant 0 : index
    %108 = vector.load %arg16[%c0_52, %c0_53, %c0_54] : memref<2x8x128xf32, #tpu.memory_space<vmem>>, vector<1x8x128xf32>
    %109 = vector.shape_cast %108 : vector<1x8x128xf32> to vector<8x128xf32>
    %c0_55 = arith.constant 0 : index
    %c0_56 = arith.constant 0 : index
    %c0_57 = arith.constant 0 : index
    %110 = vector.load %arg17[%c0_55, %c0_56, %c0_57] : memref<2x8x128xf32, #tpu.memory_space<vmem>>, vector<1x8x128xf32>
    %111 = vector.shape_cast %110 : vector<1x8x128xf32> to vector<8x128xf32>
    %112 = arith.index_cast %107 : i32 to index
    %c0_58 = arith.constant 0 : index
    %113 = vector.load %arg14[%112, %c0_58] : memref<64x512xf32, #tpu.memory_space<vmem>>, vector<8x512xf32>
    %114 = arith.truncf %109 : vector<8x128xf32> to vector<8x128xbf16>
    %cst_59 = arith.constant dense<0.000000e+00> : vector<8x512xf32>
    %115 = tpu.matmul %114, %9, %cst_59 {dimension_numbers = #tpu.dot_dimension_numbers<[1], [0], [0], [1], [0, 0, 1, 1], [], []>} : vector<8x128xbf16>, vector<128x512xbf16>, vector<8x512xf32> -> vector<8x512xf32>
    %116 = arith.addf %113, %115 : vector<8x512xf32>
    %117 = vector.broadcast %11 : vector<1x512xf32> to vector<8x512xf32>
    %118 = arith.addf %116, %117 : vector<8x512xf32>
    %119 = vector.extract_strided_slice %118 {offsets = [0, 0], sizes = [8, 128], strides = [1, 1]} : vector<8x512xf32> to vector<8x128xf32>
    %120 = arith.negf %119 : vector<8x128xf32>
    %121 = math.exp %120 : vector<8x128xf32>
    %cst_60 = arith.constant 1.000000e+00 : f32
    %122 = vector.broadcast %cst_60 : f32 to vector<8x128xf32>
    %123 = arith.addf %122, %121 : vector<8x128xf32>
    %124 = arith.divf %122, %123 : vector<8x128xf32>
    %125 = vector.extract_strided_slice %118 {offsets = [0, 128], sizes = [8, 128], strides = [1, 1]} : vector<8x512xf32> to vector<8x128xf32>
    %126 = arith.negf %125 : vector<8x128xf32>
    %127 = math.exp %126 : vector<8x128xf32>
    %cst_61 = arith.constant 1.000000e+00 : f32
    %128 = vector.broadcast %cst_61 : f32 to vector<8x128xf32>
    %129 = arith.addf %128, %127 : vector<8x128xf32>
    %130 = arith.divf %128, %129 : vector<8x128xf32>
    %131 = vector.extract_strided_slice %118 {offsets = [0, 256], sizes = [8, 128], strides = [1, 1]} : vector<8x512xf32> to vector<8x128xf32>
    %132 = math.tanh %131 : vector<8x128xf32>
    %133 = vector.extract_strided_slice %118 {offsets = [0, 384], sizes = [8, 128], strides = [1, 1]} : vector<8x512xf32> to vector<8x128xf32>
    %134 = arith.negf %133 : vector<8x128xf32>
    %135 = math.exp %134 : vector<8x128xf32>
    %cst_62 = arith.constant 1.000000e+00 : f32
    %136 = vector.broadcast %cst_62 : f32 to vector<8x128xf32>
    %137 = arith.addf %136, %135 : vector<8x128xf32>
    %138 = arith.divf %136, %137 : vector<8x128xf32>
    %139 = arith.mulf %130, %111 : vector<8x128xf32>
    %140 = arith.mulf %124, %132 : vector<8x128xf32>
    %141 = arith.addf %139, %140 : vector<8x128xf32>
    %142 = math.tanh %141 : vector<8x128xf32>
    %143 = arith.mulf %138, %142 : vector<8x128xf32>
    %c0_63 = arith.constant 0 : index
    %c0_64 = arith.constant 0 : index
    %c0_65 = arith.constant 0 : index
    %144 = vector.load %arg16[%c0_63, %c0_64, %c0_65] : memref<2x8x128xf32, #tpu.memory_space<vmem>>, vector<1x8x128xf32>
    %145 = vector.shape_cast %144 : vector<1x8x128xf32> to vector<8x128xf32>
    %146 = vector.shape_cast %143 : vector<8x128xf32> to vector<1x8x128xf32>
    tpu.vector_store %arg16[%c0_63, %c0_64, %c0_65], %146 {strides = array<i32>} : memref<2x8x128xf32, #tpu.memory_space<vmem>>, vector<1x8x128xf32>,
    %c0_66 = arith.constant 0 : index
    %c0_67 = arith.constant 0 : index
    %c0_68 = arith.constant 0 : index
    %147 = vector.load %arg17[%c0_66, %c0_67, %c0_68] : memref<2x8x128xf32, #tpu.memory_space<vmem>>, vector<1x8x128xf32>
    %148 = vector.shape_cast %147 : vector<1x8x128xf32> to vector<8x128xf32>
    %149 = vector.shape_cast %141 : vector<8x128xf32> to vector<1x8x128xf32>
    tpu.vector_store %arg17[%c0_66, %c0_67, %c0_68], %149 {strides = array<i32>} : memref<2x8x128xf32, #tpu.memory_space<vmem>>, vector<1x8x128xf32>,
    %150 = arith.truncf %143 : vector<8x128xf32> to vector<8x128xbf16>
    %151 = arith.index_cast %107 : i32 to index
    %c0_69 = arith.constant 0 : index
    %152 = vector.load %arg15[%151, %c0_69] : memref<64x128xbf16, #tpu.memory_space<vmem>>, vector<8x128xbf16>
    tpu.vector_store %arg15[%151, %c0_69], %150 {strides = array<i32>} : memref<64x128xbf16, #tpu.memory_space<vmem>>, vector<8x128xbf16>,
    %c3_i32 = arith.constant 3 : i32
    %c8_i32_70 = arith.constant 8 : i32
    %153 = arith.muli %c3_i32, %c8_i32_70 : i32
    %154 = tpu.assume_multiple %153, 8 : i32
    %c0_71 = arith.constant 0 : index
    %c0_72 = arith.constant 0 : index
    %c0_73 = arith.constant 0 : index
    %155 = vector.load %arg16[%c0_71, %c0_72, %c0_73] : memref<2x8x128xf32, #tpu.memory_space<vmem>>, vector<1x8x128xf32>
    %156 = vector.shape_cast %155 : vector<1x8x128xf32> to vector<8x128xf32>
    %c0_74 = arith.constant 0 : index
    %c0_75 = arith.constant 0 : index
    %c0_76 = arith.constant 0 : index
    %157 = vector.load %arg17[%c0_74, %c0_75, %c0_76] : memref<2x8x128xf32, #tpu.memory_space<vmem>>, vector<1x8x128xf32>
    %158 = vector.shape_cast %157 : vector<1x8x128xf32> to vector<8x128xf32>
    %159 = arith.index_cast %154 : i32 to index
    %c0_77 = arith.constant 0 : index
    %160 = vector.load %arg14[%159, %c0_77] : memref<64x512xf32, #tpu.memory_space<vmem>>, vector<8x512xf32>
    %161 = arith.truncf %156 : vector<8x128xf32> to vector<8x128xbf16>
    %cst_78 = arith.constant dense<0.000000e+00> : vector<8x512xf32>
    %162 = tpu.matmul %161, %9, %cst_78 {dimension_numbers = #tpu.dot_dimension_numbers<[1], [0], [0], [1], [0, 0, 1, 1], [], []>} : vector<8x128xbf16>, vector<128x512xbf16>, vector<8x512xf32> -> vector<8x512xf32>
    %163 = arith.addf %160, %162 : vector<8x512xf32>
    %164 = vector.broadcast %11 : vector<1x512xf32> to vector<8x512xf32>
    %165 = arith.addf %163, %164 : vector<8x512xf32>
    %166 = vector.extract_strided_slice %165 {offsets = [0, 0], sizes = [8, 128], strides = [1, 1]} : vector<8x512xf32> to vector<8x128xf32>
    %167 = arith.negf %166 : vector<8x128xf32>
    %168 = math.exp %167 : vector<8x128xf32>
    %cst_79 = arith.constant 1.000000e+00 : f32
    %169 = vector.broadcast %cst_79 : f32 to vector<8x128xf32>
    %170 = arith.addf %169, %168 : vector<8x128xf32>
    %171 = arith.divf %169, %170 : vector<8x128xf32>
    %172 = vector.extract_strided_slice %165 {offsets = [0, 128], sizes = [8, 128], strides = [1, 1]} : vector<8x512xf32> to vector<8x128xf32>
    %173 = arith.negf %172 : vector<8x128xf32>
    %174 = math.exp %173 : vector<8x128xf32>
    %cst_80 = arith.constant 1.000000e+00 : f32
    %175 = vector.broadcast %cst_80 : f32 to vector<8x128xf32>
    %176 = arith.addf %175, %174 : vector<8x128xf32>
    %177 = arith.divf %175, %176 : vector<8x128xf32>
    %178 = vector.extract_strided_slice %165 {offsets = [0, 256], sizes = [8, 128], strides = [1, 1]} : vector<8x512xf32> to vector<8x128xf32>
    %179 = math.tanh %178 : vector<8x128xf32>
    %180 = vector.extract_strided_slice %165 {offsets = [0, 384], sizes = [8, 128], strides = [1, 1]} : vector<8x512xf32> to vector<8x128xf32>
    %181 = arith.negf %180 : vector<8x128xf32>
    %182 = math.exp %181 : vector<8x128xf32>
    %cst_81 = arith.constant 1.000000e+00 : f32
    %183 = vector.broadcast %cst_81 : f32 to vector<8x128xf32>
    %184 = arith.addf %183, %182 : vector<8x128xf32>
    %185 = arith.divf %183, %184 : vector<8x128xf32>
    %186 = arith.mulf %177, %158 : vector<8x128xf32>
    %187 = arith.mulf %171, %179 : vector<8x128xf32>
    %188 = arith.addf %186, %187 : vector<8x128xf32>
    %189 = math.tanh %188 : vector<8x128xf32>
    %190 = arith.mulf %185, %189 : vector<8x128xf32>
    %c0_82 = arith.constant 0 : index
    %c0_83 = arith.constant 0 : index
    %c0_84 = arith.constant 0 : index
    %191 = vector.load %arg16[%c0_82, %c0_83, %c0_84] : memref<2x8x128xf32, #tpu.memory_space<vmem>>, vector<1x8x128xf32>
    %192 = vector.shape_cast %191 : vector<1x8x128xf32> to vector<8x128xf32>
    %193 = vector.shape_cast %190 : vector<8x128xf32> to vector<1x8x128xf32>
    tpu.vector_store %arg16[%c0_82, %c0_83, %c0_84], %193 {strides = array<i32>} : memref<2x8x128xf32, #tpu.memory_space<vmem>>, vector<1x8x128xf32>,
    %c0_85 = arith.constant 0 : index
    %c0_86 = arith.constant 0 : index
    %c0_87 = arith.constant 0 : index
    %194 = vector.load %arg17[%c0_85, %c0_86, %c0_87] : memref<2x8x128xf32, #tpu.memory_space<vmem>>, vector<1x8x128xf32>
    %195 = vector.shape_cast %194 : vector<1x8x128xf32> to vector<8x128xf32>
    %196 = vector.shape_cast %188 : vector<8x128xf32> to vector<1x8x128xf32>
    tpu.vector_store %arg17[%c0_85, %c0_86, %c0_87], %196 {strides = array<i32>} : memref<2x8x128xf32, #tpu.memory_space<vmem>>, vector<1x8x128xf32>,
    %197 = arith.truncf %190 : vector<8x128xf32> to vector<8x128xbf16>
    %198 = arith.index_cast %154 : i32 to index
    %c0_88 = arith.constant 0 : index
    %199 = vector.load %arg15[%198, %c0_88] : memref<64x128xbf16, #tpu.memory_space<vmem>>, vector<8x128xbf16>
    tpu.vector_store %arg15[%198, %c0_88], %197 {strides = array<i32>} : memref<64x128xbf16, #tpu.memory_space<vmem>>, vector<8x128xbf16>,
    %c4_i32 = arith.constant 4 : i32
    %c8_i32_89 = arith.constant 8 : i32
    %200 = arith.muli %c4_i32, %c8_i32_89 : i32
    %201 = tpu.assume_multiple %200, 8 : i32
    %c0_90 = arith.constant 0 : index
    %c0_91 = arith.constant 0 : index
    %c0_92 = arith.constant 0 : index
    %202 = vector.load %arg16[%c0_90, %c0_91, %c0_92] : memref<2x8x128xf32, #tpu.memory_space<vmem>>, vector<1x8x128xf32>
    %203 = vector.shape_cast %202 : vector<1x8x128xf32> to vector<8x128xf32>
    %c0_93 = arith.constant 0 : index
    %c0_94 = arith.constant 0 : index
    %c0_95 = arith.constant 0 : index
    %204 = vector.load %arg17[%c0_93, %c0_94, %c0_95] : memref<2x8x128xf32, #tpu.memory_space<vmem>>, vector<1x8x128xf32>
    %205 = vector.shape_cast %204 : vector<1x8x128xf32> to vector<8x128xf32>
    %206 = arith.index_cast %201 : i32 to index
    %c0_96 = arith.constant 0 : index
    %207 = vector.load %arg14[%206, %c0_96] : memref<64x512xf32, #tpu.memory_space<vmem>>, vector<8x512xf32>
    %208 = arith.truncf %203 : vector<8x128xf32> to vector<8x128xbf16>
    %cst_97 = arith.constant dense<0.000000e+00> : vector<8x512xf32>
    %209 = tpu.matmul %208, %9, %cst_97 {dimension_numbers = #tpu.dot_dimension_numbers<[1], [0], [0], [1], [0, 0, 1, 1], [], []>} : vector<8x128xbf16>, vector<128x512xbf16>, vector<8x512xf32> -> vector<8x512xf32>
    %210 = arith.addf %207, %209 : vector<8x512xf32>
    %211 = vector.broadcast %11 : vector<1x512xf32> to vector<8x512xf32>
    %212 = arith.addf %210, %211 : vector<8x512xf32>
    %213 = vector.extract_strided_slice %212 {offsets = [0, 0], sizes = [8, 128], strides = [1, 1]} : vector<8x512xf32> to vector<8x128xf32>
    %214 = arith.negf %213 : vector<8x128xf32>
    %215 = math.exp %214 : vector<8x128xf32>
    %cst_98 = arith.constant 1.000000e+00 : f32
    %216 = vector.broadcast %cst_98 : f32 to vector<8x128xf32>
    %217 = arith.addf %216, %215 : vector<8x128xf32>
    %218 = arith.divf %216, %217 : vector<8x128xf32>
    %219 = vector.extract_strided_slice %212 {offsets = [0, 128], sizes = [8, 128], strides = [1, 1]} : vector<8x512xf32> to vector<8x128xf32>
    %220 = arith.negf %219 : vector<8x128xf32>
    %221 = math.exp %220 : vector<8x128xf32>
    %cst_99 = arith.constant 1.000000e+00 : f32
    %222 = vector.broadcast %cst_99 : f32 to vector<8x128xf32>
    %223 = arith.addf %222, %221 : vector<8x128xf32>
    %224 = arith.divf %222, %223 : vector<8x128xf32>
    %225 = vector.extract_strided_slice %212 {offsets = [0, 256], sizes = [8, 128], strides = [1, 1]} : vector<8x512xf32> to vector<8x128xf32>
    %226 = math.tanh %225 : vector<8x128xf32>
    %227 = vector.extract_strided_slice %212 {offsets = [0, 384], sizes = [8, 128], strides = [1, 1]} : vector<8x512xf32> to vector<8x128xf32>
    %228 = arith.negf %227 : vector<8x128xf32>
    %229 = math.exp %228 : vector<8x128xf32>
    %cst_100 = arith.constant 1.000000e+00 : f32
    %230 = vector.broadcast %cst_100 : f32 to vector<8x128xf32>
    %231 = arith.addf %230, %229 : vector<8x128xf32>
    %232 = arith.divf %230, %231 : vector<8x128xf32>
    %233 = arith.mulf %224, %205 : vector<8x128xf32>
    %234 = arith.mulf %218, %226 : vector<8x128xf32>
    %235 = arith.addf %233, %234 : vector<8x128xf32>
    %236 = math.tanh %235 : vector<8x128xf32>
    %237 = arith.mulf %232, %236 : vector<8x128xf32>
    %c0_101 = arith.constant 0 : index
    %c0_102 = arith.constant 0 : index
    %c0_103 = arith.constant 0 : index
    %238 = vector.load %arg16[%c0_101, %c0_102, %c0_103] : memref<2x8x128xf32, #tpu.memory_space<vmem>>, vector<1x8x128xf32>
    %239 = vector.shape_cast %238 : vector<1x8x128xf32> to vector<8x128xf32>
    %240 = vector.shape_cast %237 : vector<8x128xf32> to vector<1x8x128xf32>
    tpu.vector_store %arg16[%c0_101, %c0_102, %c0_103], %240 {strides = array<i32>} : memref<2x8x128xf32, #tpu.memory_space<vmem>>, vector<1x8x128xf32>,
    %c0_104 = arith.constant 0 : index
    %c0_105 = arith.constant 0 : index
    %c0_106 = arith.constant 0 : index
    %241 = vector.load %arg17[%c0_104, %c0_105, %c0_106] : memref<2x8x128xf32, #tpu.memory_space<vmem>>, vector<1x8x128xf32>
    %242 = vector.shape_cast %241 : vector<1x8x128xf32> to vector<8x128xf32>
    %243 = vector.shape_cast %235 : vector<8x128xf32> to vector<1x8x128xf32>
    tpu.vector_store %arg17[%c0_104, %c0_105, %c0_106], %243 {strides = array<i32>} : memref<2x8x128xf32, #tpu.memory_space<vmem>>, vector<1x8x128xf32>,
    %244 = arith.truncf %237 : vector<8x128xf32> to vector<8x128xbf16>
    %245 = arith.index_cast %201 : i32 to index
    %c0_107 = arith.constant 0 : index
    %246 = vector.load %arg15[%245, %c0_107] : memref<64x128xbf16, #tpu.memory_space<vmem>>, vector<8x128xbf16>
    tpu.vector_store %arg15[%245, %c0_107], %244 {strides = array<i32>} : memref<64x128xbf16, #tpu.memory_space<vmem>>, vector<8x128xbf16>,
    %c5_i32 = arith.constant 5 : i32
    %c8_i32_108 = arith.constant 8 : i32
    %247 = arith.muli %c5_i32, %c8_i32_108 : i32
    %248 = tpu.assume_multiple %247, 8 : i32
    %c0_109 = arith.constant 0 : index
    %c0_110 = arith.constant 0 : index
    %c0_111 = arith.constant 0 : index
    %249 = vector.load %arg16[%c0_109, %c0_110, %c0_111] : memref<2x8x128xf32, #tpu.memory_space<vmem>>, vector<1x8x128xf32>
    %250 = vector.shape_cast %249 : vector<1x8x128xf32> to vector<8x128xf32>
    %c0_112 = arith.constant 0 : index
    %c0_113 = arith.constant 0 : index
    %c0_114 = arith.constant 0 : index
    %251 = vector.load %arg17[%c0_112, %c0_113, %c0_114] : memref<2x8x128xf32, #tpu.memory_space<vmem>>, vector<1x8x128xf32>
    %252 = vector.shape_cast %251 : vector<1x8x128xf32> to vector<8x128xf32>
    %253 = arith.index_cast %248 : i32 to index
    %c0_115 = arith.constant 0 : index
    %254 = vector.load %arg14[%253, %c0_115] : memref<64x512xf32, #tpu.memory_space<vmem>>, vector<8x512xf32>
    %255 = arith.truncf %250 : vector<8x128xf32> to vector<8x128xbf16>
    %cst_116 = arith.constant dense<0.000000e+00> : vector<8x512xf32>
    %256 = tpu.matmul %255, %9, %cst_116 {dimension_numbers = #tpu.dot_dimension_numbers<[1], [0], [0], [1], [0, 0, 1, 1], [], []>} : vector<8x128xbf16>, vector<128x512xbf16>, vector<8x512xf32> -> vector<8x512xf32>
    %257 = arith.addf %254, %256 : vector<8x512xf32>
    %258 = vector.broadcast %11 : vector<1x512xf32> to vector<8x512xf32>
    %259 = arith.addf %257, %258 : vector<8x512xf32>
    %260 = vector.extract_strided_slice %259 {offsets = [0, 0], sizes = [8, 128], strides = [1, 1]} : vector<8x512xf32> to vector<8x128xf32>
    %261 = arith.negf %260 : vector<8x128xf32>
    %262 = math.exp %261 : vector<8x128xf32>
    %cst_117 = arith.constant 1.000000e+00 : f32
    %263 = vector.broadcast %cst_117 : f32 to vector<8x128xf32>
    %264 = arith.addf %263, %262 : vector<8x128xf32>
    %265 = arith.divf %263, %264 : vector<8x128xf32>
    %266 = vector.extract_strided_slice %259 {offsets = [0, 128], sizes = [8, 128], strides = [1, 1]} : vector<8x512xf32> to vector<8x128xf32>
    %267 = arith.negf %266 : vector<8x128xf32>
    %268 = math.exp %267 : vector<8x128xf32>
    %cst_118 = arith.constant 1.000000e+00 : f32
    %269 = vector.broadcast %cst_118 : f32 to vector<8x128xf32>
    %270 = arith.addf %269, %268 : vector<8x128xf32>
    %271 = arith.divf %269, %270 : vector<8x128xf32>
    %272 = vector.extract_strided_slice %259 {offsets = [0, 256], sizes = [8, 128], strides = [1, 1]} : vector<8x512xf32> to vector<8x128xf32>
    %273 = math.tanh %272 : vector<8x128xf32>
    %274 = vector.extract_strided_slice %259 {offsets = [0, 384], sizes = [8, 128], strides = [1, 1]} : vector<8x512xf32> to vector<8x128xf32>
    %275 = arith.negf %274 : vector<8x128xf32>
    %276 = math.exp %275 : vector<8x128xf32>
    %cst_119 = arith.constant 1.000000e+00 : f32
    %277 = vector.broadcast %cst_119 : f32 to vector<8x128xf32>
    %278 = arith.addf %277, %276 : vector<8x128xf32>
    %279 = arith.divf %277, %278 : vector<8x128xf32>
    %280 = arith.mulf %271, %252 : vector<8x128xf32>
    %281 = arith.mulf %265, %273 : vector<8x128xf32>
    %282 = arith.addf %280, %281 : vector<8x128xf32>
    %283 = math.tanh %282 : vector<8x128xf32>
    %284 = arith.mulf %279, %283 : vector<8x128xf32>
    %c0_120 = arith.constant 0 : index
    %c0_121 = arith.constant 0 : index
    %c0_122 = arith.constant 0 : index
    %285 = vector.load %arg16[%c0_120, %c0_121, %c0_122] : memref<2x8x128xf32, #tpu.memory_space<vmem>>, vector<1x8x128xf32>
    %286 = vector.shape_cast %285 : vector<1x8x128xf32> to vector<8x128xf32>
    %287 = vector.shape_cast %284 : vector<8x128xf32> to vector<1x8x128xf32>
    tpu.vector_store %arg16[%c0_120, %c0_121, %c0_122], %287 {strides = array<i32>} : memref<2x8x128xf32, #tpu.memory_space<vmem>>, vector<1x8x128xf32>,
    %c0_123 = arith.constant 0 : index
    %c0_124 = arith.constant 0 : index
    %c0_125 = arith.constant 0 : index
    %288 = vector.load %arg17[%c0_123, %c0_124, %c0_125] : memref<2x8x128xf32, #tpu.memory_space<vmem>>, vector<1x8x128xf32>
    %289 = vector.shape_cast %288 : vector<1x8x128xf32> to vector<8x128xf32>
    %290 = vector.shape_cast %282 : vector<8x128xf32> to vector<1x8x128xf32>
    tpu.vector_store %arg17[%c0_123, %c0_124, %c0_125], %290 {strides = array<i32>} : memref<2x8x128xf32, #tpu.memory_space<vmem>>, vector<1x8x128xf32>,
    %291 = arith.truncf %284 : vector<8x128xf32> to vector<8x128xbf16>
    %292 = arith.index_cast %248 : i32 to index
    %c0_126 = arith.constant 0 : index
    %293 = vector.load %arg15[%292, %c0_126] : memref<64x128xbf16, #tpu.memory_space<vmem>>, vector<8x128xbf16>
    tpu.vector_store %arg15[%292, %c0_126], %291 {strides = array<i32>} : memref<64x128xbf16, #tpu.memory_space<vmem>>, vector<8x128xbf16>,
    %c6_i32 = arith.constant 6 : i32
    %c8_i32_127 = arith.constant 8 : i32
    %294 = arith.muli %c6_i32, %c8_i32_127 : i32
    %295 = tpu.assume_multiple %294, 8 : i32
    %c0_128 = arith.constant 0 : index
    %c0_129 = arith.constant 0 : index
    %c0_130 = arith.constant 0 : index
    %296 = vector.load %arg16[%c0_128, %c0_129, %c0_130] : memref<2x8x128xf32, #tpu.memory_space<vmem>>, vector<1x8x128xf32>
    %297 = vector.shape_cast %296 : vector<1x8x128xf32> to vector<8x128xf32>
    %c0_131 = arith.constant 0 : index
    %c0_132 = arith.constant 0 : index
    %c0_133 = arith.constant 0 : index
    %298 = vector.load %arg17[%c0_131, %c0_132, %c0_133] : memref<2x8x128xf32, #tpu.memory_space<vmem>>, vector<1x8x128xf32>
    %299 = vector.shape_cast %298 : vector<1x8x128xf32> to vector<8x128xf32>
    %300 = arith.index_cast %295 : i32 to index
    %c0_134 = arith.constant 0 : index
    %301 = vector.load %arg14[%300, %c0_134] : memref<64x512xf32, #tpu.memory_space<vmem>>, vector<8x512xf32>
    %302 = arith.truncf %297 : vector<8x128xf32> to vector<8x128xbf16>
    %cst_135 = arith.constant dense<0.000000e+00> : vector<8x512xf32>
    %303 = tpu.matmul %302, %9, %cst_135 {dimension_numbers = #tpu.dot_dimension_numbers<[1], [0], [0], [1], [0, 0, 1, 1], [], []>} : vector<8x128xbf16>, vector<128x512xbf16>, vector<8x512xf32> -> vector<8x512xf32>
    %304 = arith.addf %301, %303 : vector<8x512xf32>
    %305 = vector.broadcast %11 : vector<1x512xf32> to vector<8x512xf32>
    %306 = arith.addf %304, %305 : vector<8x512xf32>
    %307 = vector.extract_strided_slice %306 {offsets = [0, 0], sizes = [8, 128], strides = [1, 1]} : vector<8x512xf32> to vector<8x128xf32>
    %308 = arith.negf %307 : vector<8x128xf32>
    %309 = math.exp %308 : vector<8x128xf32>
    %cst_136 = arith.constant 1.000000e+00 : f32
    %310 = vector.broadcast %cst_136 : f32 to vector<8x128xf32>
    %311 = arith.addf %310, %309 : vector<8x128xf32>
    %312 = arith.divf %310, %311 : vector<8x128xf32>
    %313 = vector.extract_strided_slice %306 {offsets = [0, 128], sizes = [8, 128], strides = [1, 1]} : vector<8x512xf32> to vector<8x128xf32>
    %314 = arith.negf %313 : vector<8x128xf32>
    %315 = math.exp %314 : vector<8x128xf32>
    %cst_137 = arith.constant 1.000000e+00 : f32
    %316 = vector.broadcast %cst_137 : f32 to vector<8x128xf32>
    %317 = arith.addf %316, %315 : vector<8x128xf32>
    %318 = arith.divf %316, %317 : vector<8x128xf32>
    %319 = vector.extract_strided_slice %306 {offsets = [0, 256], sizes = [8, 128], strides = [1, 1]} : vector<8x512xf32> to vector<8x128xf32>
    %320 = math.tanh %319 : vector<8x128xf32>
    %321 = vector.extract_strided_slice %306 {offsets = [0, 384], sizes = [8, 128], strides = [1, 1]} : vector<8x512xf32> to vector<8x128xf32>
    %322 = arith.negf %321 : vector<8x128xf32>
    %323 = math.exp %322 : vector<8x128xf32>
    %cst_138 = arith.constant 1.000000e+00 : f32
    %324 = vector.broadcast %cst_138 : f32 to vector<8x128xf32>
    %325 = arith.addf %324, %323 : vector<8x128xf32>
    %326 = arith.divf %324, %325 : vector<8x128xf32>
    %327 = arith.mulf %318, %299 : vector<8x128xf32>
    %328 = arith.mulf %312, %320 : vector<8x128xf32>
    %329 = arith.addf %327, %328 : vector<8x128xf32>
    %330 = math.tanh %329 : vector<8x128xf32>
    %331 = arith.mulf %326, %330 : vector<8x128xf32>
    %c0_139 = arith.constant 0 : index
    %c0_140 = arith.constant 0 : index
    %c0_141 = arith.constant 0 : index
    %332 = vector.load %arg16[%c0_139, %c0_140, %c0_141] : memref<2x8x128xf32, #tpu.memory_space<vmem>>, vector<1x8x128xf32>
    %333 = vector.shape_cast %332 : vector<1x8x128xf32> to vector<8x128xf32>
    %334 = vector.shape_cast %331 : vector<8x128xf32> to vector<1x8x128xf32>
    tpu.vector_store %arg16[%c0_139, %c0_140, %c0_141], %334 {strides = array<i32>} : memref<2x8x128xf32, #tpu.memory_space<vmem>>, vector<1x8x128xf32>,
    %c0_142 = arith.constant 0 : index
    %c0_143 = arith.constant 0 : index
    %c0_144 = arith.constant 0 : index
    %335 = vector.load %arg17[%c0_142, %c0_143, %c0_144] : memref<2x8x128xf32, #tpu.memory_space<vmem>>, vector<1x8x128xf32>
    %336 = vector.shape_cast %335 : vector<1x8x128xf32> to vector<8x128xf32>
    %337 = vector.shape_cast %329 : vector<8x128xf32> to vector<1x8x128xf32>
    tpu.vector_store %arg17[%c0_142, %c0_143, %c0_144], %337 {strides = array<i32>} : memref<2x8x128xf32, #tpu.memory_space<vmem>>, vector<1x8x128xf32>,
    %338 = arith.truncf %331 : vector<8x128xf32> to vector<8x128xbf16>
    %339 = arith.index_cast %295 : i32 to index
    %c0_145 = arith.constant 0 : index
    %340 = vector.load %arg15[%339, %c0_145] : memref<64x128xbf16, #tpu.memory_space<vmem>>, vector<8x128xbf16>
    tpu.vector_store %arg15[%339, %c0_145], %338 {strides = array<i32>} : memref<64x128xbf16, #tpu.memory_space<vmem>>, vector<8x128xbf16>,
    %c7_i32 = arith.constant 7 : i32
    %c8_i32_146 = arith.constant 8 : i32
    %341 = arith.muli %c7_i32, %c8_i32_146 : i32
    %342 = tpu.assume_multiple %341, 8 : i32
    %c0_147 = arith.constant 0 : index
    %c0_148 = arith.constant 0 : index
    %c0_149 = arith.constant 0 : index
    %343 = vector.load %arg16[%c0_147, %c0_148, %c0_149] : memref<2x8x128xf32, #tpu.memory_space<vmem>>, vector<1x8x128xf32>
    %344 = vector.shape_cast %343 : vector<1x8x128xf32> to vector<8x128xf32>
    %c0_150 = arith.constant 0 : index
    %c0_151 = arith.constant 0 : index
    %c0_152 = arith.constant 0 : index
    %345 = vector.load %arg17[%c0_150, %c0_151, %c0_152] : memref<2x8x128xf32, #tpu.memory_space<vmem>>, vector<1x8x128xf32>
    %346 = vector.shape_cast %345 : vector<1x8x128xf32> to vector<8x128xf32>
    %347 = arith.index_cast %342 : i32 to index
    %c0_153 = arith.constant 0 : index
    %348 = vector.load %arg14[%347, %c0_153] : memref<64x512xf32, #tpu.memory_space<vmem>>, vector<8x512xf32>
    %349 = arith.truncf %344 : vector<8x128xf32> to vector<8x128xbf16>
    %cst_154 = arith.constant dense<0.000000e+00> : vector<8x512xf32>
    %350 = tpu.matmul %349, %9, %cst_154 {dimension_numbers = #tpu.dot_dimension_numbers<[1], [0], [0], [1], [0, 0, 1, 1], [], []>} : vector<8x128xbf16>, vector<128x512xbf16>, vector<8x512xf32> -> vector<8x512xf32>
    %351 = arith.addf %348, %350 : vector<8x512xf32>
    %352 = vector.broadcast %11 : vector<1x512xf32> to vector<8x512xf32>
    %353 = arith.addf %351, %352 : vector<8x512xf32>
    %354 = vector.extract_strided_slice %353 {offsets = [0, 0], sizes = [8, 128], strides = [1, 1]} : vector<8x512xf32> to vector<8x128xf32>
    %355 = arith.negf %354 : vector<8x128xf32>
    %356 = math.exp %355 : vector<8x128xf32>
    %cst_155 = arith.constant 1.000000e+00 : f32
    %357 = vector.broadcast %cst_155 : f32 to vector<8x128xf32>
    %358 = arith.addf %357, %356 : vector<8x128xf32>
    %359 = arith.divf %357, %358 : vector<8x128xf32>
    %360 = vector.extract_strided_slice %353 {offsets = [0, 128], sizes = [8, 128], strides = [1, 1]} : vector<8x512xf32> to vector<8x128xf32>
    %361 = arith.negf %360 : vector<8x128xf32>
    %362 = math.exp %361 : vector<8x128xf32>
    %cst_156 = arith.constant 1.000000e+00 : f32
    %363 = vector.broadcast %cst_156 : f32 to vector<8x128xf32>
    %364 = arith.addf %363, %362 : vector<8x128xf32>
    %365 = arith.divf %363, %364 : vector<8x128xf32>
    %366 = vector.extract_strided_slice %353 {offsets = [0, 256], sizes = [8, 128], strides = [1, 1]} : vector<8x512xf32> to vector<8x128xf32>
    %367 = math.tanh %366 : vector<8x128xf32>
    %368 = vector.extract_strided_slice %353 {offsets = [0, 384], sizes = [8, 128], strides = [1, 1]} : vector<8x512xf32> to vector<8x128xf32>
    %369 = arith.negf %368 : vector<8x128xf32>
    %370 = math.exp %369 : vector<8x128xf32>
    %cst_157 = arith.constant 1.000000e+00 : f32
    %371 = vector.broadcast %cst_157 : f32 to vector<8x128xf32>
    %372 = arith.addf %371, %370 : vector<8x128xf32>
    %373 = arith.divf %371, %372 : vector<8x128xf32>
    %374 = arith.mulf %365, %346 : vector<8x128xf32>
    %375 = arith.mulf %359, %367 : vector<8x128xf32>
    %376 = arith.addf %374, %375 : vector<8x128xf32>
    %377 = math.tanh %376 : vector<8x128xf32>
    %378 = arith.mulf %373, %377 : vector<8x128xf32>
    %c0_158 = arith.constant 0 : index
    %c0_159 = arith.constant 0 : index
    %c0_160 = arith.constant 0 : index
    %379 = vector.load %arg16[%c0_158, %c0_159, %c0_160] : memref<2x8x128xf32, #tpu.memory_space<vmem>>, vector<1x8x128xf32>
    %380 = vector.shape_cast %379 : vector<1x8x128xf32> to vector<8x128xf32>
    %381 = vector.shape_cast %378 : vector<8x128xf32> to vector<1x8x128xf32>
    tpu.vector_store %arg16[%c0_158, %c0_159, %c0_160], %381 {strides = array<i32>} : memref<2x8x128xf32, #tpu.memory_space<vmem>>, vector<1x8x128xf32>,
    %c0_161 = arith.constant 0 : index
    %c0_162 = arith.constant 0 : index
    %c0_163 = arith.constant 0 : index
    %382 = vector.load %arg17[%c0_161, %c0_162, %c0_163] : memref<2x8x128xf32, #tpu.memory_space<vmem>>, vector<1x8x128xf32>
    %383 = vector.shape_cast %382 : vector<1x8x128xf32> to vector<8x128xf32>
    %384 = vector.shape_cast %376 : vector<8x128xf32> to vector<1x8x128xf32>
    tpu.vector_store %arg17[%c0_161, %c0_162, %c0_163], %384 {strides = array<i32>} : memref<2x8x128xf32, #tpu.memory_space<vmem>>, vector<1x8x128xf32>,
    %385 = arith.truncf %378 : vector<8x128xf32> to vector<8x128xbf16>
    %386 = arith.index_cast %342 : i32 to index
    %c0_164 = arith.constant 0 : index
    %387 = vector.load %arg15[%386, %c0_164] : memref<64x128xbf16, #tpu.memory_space<vmem>>, vector<8x128xbf16>
    tpu.vector_store %arg15[%386, %c0_164], %385 {strides = array<i32>} : memref<64x128xbf16, #tpu.memory_space<vmem>>, vector<8x128xbf16>,
    %c8_i32_165 = arith.constant 8 : i32
    %c0_166 = arith.constant 0 : index
    %c0_167 = arith.constant 0 : index
    %388 = vector.load %arg15[%c0_166, %c0_167] : memref<64x128xbf16, #tpu.memory_space<vmem>>, vector<64x128xbf16>
    %c0_168 = arith.constant 0 : index
    %c0_169 = arith.constant 0 : index
    %c0_170 = arith.constant 0 : index
    %389 = vector.load %arg12[%c0_168, %c0_169, %c0_170] : memref<1x128x512xbf16, #tpu.memory_space<vmem>>, vector<1x128x512xbf16>
    %390 = vector.shape_cast %389 : vector<1x128x512xbf16> to vector<128x512xbf16>
    %cst_171 = arith.constant dense<0.000000e+00> : vector<64x512xf32>
    %391 = tpu.matmul %388, %390, %cst_171 {dimension_numbers = #tpu.dot_dimension_numbers<[1], [0], [0], [1], [0, 0, 1, 1], [], []>} : vector<64x128xbf16>, vector<128x512xbf16>, vector<64x512xf32> -> vector<64x512xf32>
    %c0_172 = arith.constant 0 : index
    %c0_173 = arith.constant 0 : index
    %392 = vector.load %arg14[%c0_172, %c0_173] : memref<64x512xf32, #tpu.memory_space<vmem>>, vector<64x512xf32>
    tpu.vector_store %arg14[%c0_172, %c0_173], %391 {strides = array<i32>} : memref<64x512xf32, #tpu.memory_space<vmem>>, vector<64x512xf32>,
    %c1 = arith.constant 1 : index
    %c0_174 = arith.constant 0 : index
    %c0_175 = arith.constant 0 : index
    %393 = vector.load %arg13[%c1, %c0_174, %c0_175] : memref<2x128x512xbf16, #tpu.memory_space<vmem>>, vector<1x128x512xbf16>
    %394 = vector.shape_cast %393 : vector<1x128x512xbf16> to vector<128x512xbf16>
    %c1_176 = arith.constant 1 : index
    %c0_177 = arith.constant 0 : index
    %c0_178 = arith.constant 0 : index
    %395 = vector.load %arg5[%c1_176, %c0_177, %c0_178] : memref<2x1x512xf32, #tpu.memory_space<vmem>>, vector<1x1x512xf32>
    %396 = vector.shape_cast %395 : vector<1x1x512xf32> to vector<1x512xf32>
    %c0_i32_179 = arith.constant 0 : i32
    %c8_i32_180 = arith.constant 8 : i32
    %397 = arith.muli %c0_i32_179, %c8_i32_180 : i32
    %398 = tpu.assume_multiple %397, 8 : i32
    %c1_181 = arith.constant 1 : index
    %c0_182 = arith.constant 0 : index
    %c0_183 = arith.constant 0 : index
    %399 = vector.load %arg16[%c1_181, %c0_182, %c0_183] : memref<2x8x128xf32, #tpu.memory_space<vmem>>, vector<1x8x128xf32>
    %400 = vector.shape_cast %399 : vector<1x8x128xf32> to vector<8x128xf32>
    %c1_184 = arith.constant 1 : index
    %c0_185 = arith.constant 0 : index
    %c0_186 = arith.constant 0 : index
    %401 = vector.load %arg17[%c1_184, %c0_185, %c0_186] : memref<2x8x128xf32, #tpu.memory_space<vmem>>, vector<1x8x128xf32>
    %402 = vector.shape_cast %401 : vector<1x8x128xf32> to vector<8x128xf32>
    %403 = arith.index_cast %398 : i32 to index
    %c0_187 = arith.constant 0 : index
    %404 = vector.load %arg14[%403, %c0_187] : memref<64x512xf32, #tpu.memory_space<vmem>>, vector<8x512xf32>
    %405 = arith.truncf %400 : vector<8x128xf32> to vector<8x128xbf16>
    %cst_188 = arith.constant dense<0.000000e+00> : vector<8x512xf32>
    %406 = tpu.matmul %405, %394, %cst_188 {dimension_numbers = #tpu.dot_dimension_numbers<[1], [0], [0], [1], [0, 0, 1, 1], [], []>} : vector<8x128xbf16>, vector<128x512xbf16>, vector<8x512xf32> -> vector<8x512xf32>
    %407 = arith.addf %404, %406 : vector<8x512xf32>
    %408 = vector.broadcast %396 : vector<1x512xf32> to vector<8x512xf32>
    %409 = arith.addf %407, %408 : vector<8x512xf32>
    %410 = vector.extract_strided_slice %409 {offsets = [0, 0], sizes = [8, 128], strides = [1, 1]} : vector<8x512xf32> to vector<8x128xf32>
    %411 = arith.negf %410 : vector<8x128xf32>
    %412 = math.exp %411 : vector<8x128xf32>
    %cst_189 = arith.constant 1.000000e+00 : f32
    %413 = vector.broadcast %cst_189 : f32 to vector<8x128xf32>
    %414 = arith.addf %413, %412 : vector<8x128xf32>
    %415 = arith.divf %413, %414 : vector<8x128xf32>
    %416 = vector.extract_strided_slice %409 {offsets = [0, 128], sizes = [8, 128], strides = [1, 1]} : vector<8x512xf32> to vector<8x128xf32>
    %417 = arith.negf %416 : vector<8x128xf32>
    %418 = math.exp %417 : vector<8x128xf32>
    %cst_190 = arith.constant 1.000000e+00 : f32
    %419 = vector.broadcast %cst_190 : f32 to vector<8x128xf32>
    %420 = arith.addf %419, %418 : vector<8x128xf32>
    %421 = arith.divf %419, %420 : vector<8x128xf32>
    %422 = vector.extract_strided_slice %409 {offsets = [0, 256], sizes = [8, 128], strides = [1, 1]} : vector<8x512xf32> to vector<8x128xf32>
    %423 = math.tanh %422 : vector<8x128xf32>
    %424 = vector.extract_strided_slice %409 {offsets = [0, 384], sizes = [8, 128], strides = [1, 1]} : vector<8x512xf32> to vector<8x128xf32>
    %425 = arith.negf %424 : vector<8x128xf32>
    %426 = math.exp %425 : vector<8x128xf32>
    %cst_191 = arith.constant 1.000000e+00 : f32
    %427 = vector.broadcast %cst_191 : f32 to vector<8x128xf32>
    %428 = arith.addf %427, %426 : vector<8x128xf32>
    %429 = arith.divf %427, %428 : vector<8x128xf32>
    %430 = arith.mulf %421, %402 : vector<8x128xf32>
    %431 = arith.mulf %415, %423 : vector<8x128xf32>
    %432 = arith.addf %430, %431 : vector<8x128xf32>
    %433 = math.tanh %432 : vector<8x128xf32>
    %434 = arith.mulf %429, %433 : vector<8x128xf32>
    %c1_192 = arith.constant 1 : index
    %c0_193 = arith.constant 0 : index
    %c0_194 = arith.constant 0 : index
    %435 = vector.load %arg16[%c1_192, %c0_193, %c0_194] : memref<2x8x128xf32, #tpu.memory_space<vmem>>, vector<1x8x128xf32>
    %436 = vector.shape_cast %435 : vector<1x8x128xf32> to vector<8x128xf32>
    %437 = vector.shape_cast %434 : vector<8x128xf32> to vector<1x8x128xf32>
    tpu.vector_store %arg16[%c1_192, %c0_193, %c0_194], %437 {strides = array<i32>} : memref<2x8x128xf32, #tpu.memory_space<vmem>>, vector<1x8x128xf32>,
    %c1_195 = arith.constant 1 : index
    %c0_196 = arith.constant 0 : index
    %c0_197 = arith.constant 0 : index
    %438 = vector.load %arg17[%c1_195, %c0_196, %c0_197] : memref<2x8x128xf32, #tpu.memory_space<vmem>>, vector<1x8x128xf32>
    %439 = vector.shape_cast %438 : vector<1x8x128xf32> to vector<8x128xf32>
    %440 = vector.shape_cast %432 : vector<8x128xf32> to vector<1x8x128xf32>
    tpu.vector_store %arg17[%c1_195, %c0_196, %c0_197], %440 {strides = array<i32>} : memref<2x8x128xf32, #tpu.memory_space<vmem>>, vector<1x8x128xf32>,
    %441 = arith.truncf %434 : vector<8x128xf32> to vector<8x128xbf16>
    %442 = arith.index_cast %c0_i32_179 : i32 to index
    %c0_198 = arith.constant 0 : index
    %c0_199 = arith.constant 0 : index
    %443 = vector.load %arg8[%442, %c0_198, %c0_199] : memref<8x8x128xbf16, #tpu.memory_space<vmem>>, vector<1x8x128xbf16>
    %444 = vector.shape_cast %443 : vector<1x8x128xbf16> to vector<8x128xbf16>
    %445 = vector.shape_cast %441 : vector<8x128xbf16> to vector<1x8x128xbf16>
    tpu.vector_store %arg8[%442, %c0_198, %c0_199], %445 {strides = array<i32>} : memref<8x8x128xbf16, #tpu.memory_space<vmem>>, vector<1x8x128xbf16>,
    %c1_i32_200 = arith.constant 1 : i32
    %c8_i32_201 = arith.constant 8 : i32
    %446 = arith.muli %c1_i32_200, %c8_i32_201 : i32
    %447 = tpu.assume_multiple %446, 8 : i32
    %c1_202 = arith.constant 1 : index
    %c0_203 = arith.constant 0 : index
    %c0_204 = arith.constant 0 : index
    %448 = vector.load %arg16[%c1_202, %c0_203, %c0_204] : memref<2x8x128xf32, #tpu.memory_space<vmem>>, vector<1x8x128xf32>
    %449 = vector.shape_cast %448 : vector<1x8x128xf32> to vector<8x128xf32>
    %c1_205 = arith.constant 1 : index
    %c0_206 = arith.constant 0 : index
    %c0_207 = arith.constant 0 : index
    %450 = vector.load %arg17[%c1_205, %c0_206, %c0_207] : memref<2x8x128xf32, #tpu.memory_space<vmem>>, vector<1x8x128xf32>
    %451 = vector.shape_cast %450 : vector<1x8x128xf32> to vector<8x128xf32>
    %452 = arith.index_cast %447 : i32 to index
    %c0_208 = arith.constant 0 : index
    %453 = vector.load %arg14[%452, %c0_208] : memref<64x512xf32, #tpu.memory_space<vmem>>, vector<8x512xf32>
    %454 = arith.truncf %449 : vector<8x128xf32> to vector<8x128xbf16>
    %cst_209 = arith.constant dense<0.000000e+00> : vector<8x512xf32>
    %455 = tpu.matmul %454, %394, %cst_209 {dimension_numbers = #tpu.dot_dimension_numbers<[1], [0], [0], [1], [0, 0, 1, 1], [], []>} : vector<8x128xbf16>, vector<128x512xbf16>, vector<8x512xf32> -> vector<8x512xf32>
    %456 = arith.addf %453, %455 : vector<8x512xf32>
    %457 = vector.broadcast %396 : vector<1x512xf32> to vector<8x512xf32>
    %458 = arith.addf %456, %457 : vector<8x512xf32>
    %459 = vector.extract_strided_slice %458 {offsets = [0, 0], sizes = [8, 128], strides = [1, 1]} : vector<8x512xf32> to vector<8x128xf32>
    %460 = arith.negf %459 : vector<8x128xf32>
    %461 = math.exp %460 : vector<8x128xf32>
    %cst_210 = arith.constant 1.000000e+00 : f32
    %462 = vector.broadcast %cst_210 : f32 to vector<8x128xf32>
    %463 = arith.addf %462, %461 : vector<8x128xf32>
    %464 = arith.divf %462, %463 : vector<8x128xf32>
    %465 = vector.extract_strided_slice %458 {offsets = [0, 128], sizes = [8, 128], strides = [1, 1]} : vector<8x512xf32> to vector<8x128xf32>
    %466 = arith.negf %465 : vector<8x128xf32>
    %467 = math.exp %466 : vector<8x128xf32>
    %cst_211 = arith.constant 1.000000e+00 : f32
    %468 = vector.broadcast %cst_211 : f32 to vector<8x128xf32>
    %469 = arith.addf %468, %467 : vector<8x128xf32>
    %470 = arith.divf %468, %469 : vector<8x128xf32>
    %471 = vector.extract_strided_slice %458 {offsets = [0, 256], sizes = [8, 128], strides = [1, 1]} : vector<8x512xf32> to vector<8x128xf32>
    %472 = math.tanh %471 : vector<8x128xf32>
    %473 = vector.extract_strided_slice %458 {offsets = [0, 384], sizes = [8, 128], strides = [1, 1]} : vector<8x512xf32> to vector<8x128xf32>
    %474 = arith.negf %473 : vector<8x128xf32>
    %475 = math.exp %474 : vector<8x128xf32>
    %cst_212 = arith.constant 1.000000e+00 : f32
    %476 = vector.broadcast %cst_212 : f32 to vector<8x128xf32>
    %477 = arith.addf %476, %475 : vector<8x128xf32>
    %478 = arith.divf %476, %477 : vector<8x128xf32>
    %479 = arith.mulf %470, %451 : vector<8x128xf32>
    %480 = arith.mulf %464, %472 : vector<8x128xf32>
    %481 = arith.addf %479, %480 : vector<8x128xf32>
    %482 = math.tanh %481 : vector<8x128xf32>
    %483 = arith.mulf %478, %482 : vector<8x128xf32>
    %c1_213 = arith.constant 1 : index
    %c0_214 = arith.constant 0 : index
    %c0_215 = arith.constant 0 : index
    %484 = vector.load %arg16[%c1_213, %c0_214, %c0_215] : memref<2x8x128xf32, #tpu.memory_space<vmem>>, vector<1x8x128xf32>
    %485 = vector.shape_cast %484 : vector<1x8x128xf32> to vector<8x128xf32>
    %486 = vector.shape_cast %483 : vector<8x128xf32> to vector<1x8x128xf32>
    tpu.vector_store %arg16[%c1_213, %c0_214, %c0_215], %486 {strides = array<i32>} : memref<2x8x128xf32, #tpu.memory_space<vmem>>, vector<1x8x128xf32>,
    %c1_216 = arith.constant 1 : index
    %c0_217 = arith.constant 0 : index
    %c0_218 = arith.constant 0 : index
    %487 = vector.load %arg17[%c1_216, %c0_217, %c0_218] : memref<2x8x128xf32, #tpu.memory_space<vmem>>, vector<1x8x128xf32>
    %488 = vector.shape_cast %487 : vector<1x8x128xf32> to vector<8x128xf32>
    %489 = vector.shape_cast %481 : vector<8x128xf32> to vector<1x8x128xf32>
    tpu.vector_store %arg17[%c1_216, %c0_217, %c0_218], %489 {strides = array<i32>} : memref<2x8x128xf32, #tpu.memory_space<vmem>>, vector<1x8x128xf32>,
    %490 = arith.truncf %483 : vector<8x128xf32> to vector<8x128xbf16>
    %491 = arith.index_cast %c1_i32_200 : i32 to index
    %c0_219 = arith.constant 0 : index
    %c0_220 = arith.constant 0 : index
    %492 = vector.load %arg8[%491, %c0_219, %c0_220] : memref<8x8x128xbf16, #tpu.memory_space<vmem>>, vector<1x8x128xbf16>
    %493 = vector.shape_cast %492 : vector<1x8x128xbf16> to vector<8x128xbf16>
    %494 = vector.shape_cast %490 : vector<8x128xbf16> to vector<1x8x128xbf16>
    tpu.vector_store %arg8[%491, %c0_219, %c0_220], %494 {strides = array<i32>} : memref<8x8x128xbf16, #tpu.memory_space<vmem>>, vector<1x8x128xbf16>,
    %c2_i32_221 = arith.constant 2 : i32
    %c8_i32_222 = arith.constant 8 : i32
    %495 = arith.muli %c2_i32_221, %c8_i32_222 : i32
    %496 = tpu.assume_multiple %495, 8 : i32
    %c1_223 = arith.constant 1 : index
    %c0_224 = arith.constant 0 : index
    %c0_225 = arith.constant 0 : index
    %497 = vector.load %arg16[%c1_223, %c0_224, %c0_225] : memref<2x8x128xf32, #tpu.memory_space<vmem>>, vector<1x8x128xf32>
    %498 = vector.shape_cast %497 : vector<1x8x128xf32> to vector<8x128xf32>
    %c1_226 = arith.constant 1 : index
    %c0_227 = arith.constant 0 : index
    %c0_228 = arith.constant 0 : index
    %499 = vector.load %arg17[%c1_226, %c0_227, %c0_228] : memref<2x8x128xf32, #tpu.memory_space<vmem>>, vector<1x8x128xf32>
    %500 = vector.shape_cast %499 : vector<1x8x128xf32> to vector<8x128xf32>
    %501 = arith.index_cast %496 : i32 to index
    %c0_229 = arith.constant 0 : index
    %502 = vector.load %arg14[%501, %c0_229] : memref<64x512xf32, #tpu.memory_space<vmem>>, vector<8x512xf32>
    %503 = arith.truncf %498 : vector<8x128xf32> to vector<8x128xbf16>
    %cst_230 = arith.constant dense<0.000000e+00> : vector<8x512xf32>
    %504 = tpu.matmul %503, %394, %cst_230 {dimension_numbers = #tpu.dot_dimension_numbers<[1], [0], [0], [1], [0, 0, 1, 1], [], []>} : vector<8x128xbf16>, vector<128x512xbf16>, vector<8x512xf32> -> vector<8x512xf32>
    %505 = arith.addf %502, %504 : vector<8x512xf32>
    %506 = vector.broadcast %396 : vector<1x512xf32> to vector<8x512xf32>
    %507 = arith.addf %505, %506 : vector<8x512xf32>
    %508 = vector.extract_strided_slice %507 {offsets = [0, 0], sizes = [8, 128], strides = [1, 1]} : vector<8x512xf32> to vector<8x128xf32>
    %509 = arith.negf %508 : vector<8x128xf32>
    %510 = math.exp %509 : vector<8x128xf32>
    %cst_231 = arith.constant 1.000000e+00 : f32
    %511 = vector.broadcast %cst_231 : f32 to vector<8x128xf32>
    %512 = arith.addf %511, %510 : vector<8x128xf32>
    %513 = arith.divf %511, %512 : vector<8x128xf32>
    %514 = vector.extract_strided_slice %507 {offsets = [0, 128], sizes = [8, 128], strides = [1, 1]} : vector<8x512xf32> to vector<8x128xf32>
    %515 = arith.negf %514 : vector<8x128xf32>
    %516 = math.exp %515 : vector<8x128xf32>
    %cst_232 = arith.constant 1.000000e+00 : f32
    %517 = vector.broadcast %cst_232 : f32 to vector<8x128xf32>
    %518 = arith.addf %517, %516 : vector<8x128xf32>
    %519 = arith.divf %517, %518 : vector<8x128xf32>
    %520 = vector.extract_strided_slice %507 {offsets = [0, 256], sizes = [8, 128], strides = [1, 1]} : vector<8x512xf32> to vector<8x128xf32>
    %521 = math.tanh %520 : vector<8x128xf32>
    %522 = vector.extract_strided_slice %507 {offsets = [0, 384], sizes = [8, 128], strides = [1, 1]} : vector<8x512xf32> to vector<8x128xf32>
    %523 = arith.negf %522 : vector<8x128xf32>
    %524 = math.exp %523 : vector<8x128xf32>
    %cst_233 = arith.constant 1.000000e+00 : f32
    %525 = vector.broadcast %cst_233 : f32 to vector<8x128xf32>
    %526 = arith.addf %525, %524 : vector<8x128xf32>
    %527 = arith.divf %525, %526 : vector<8x128xf32>
    %528 = arith.mulf %519, %500 : vector<8x128xf32>
    %529 = arith.mulf %513, %521 : vector<8x128xf32>
    %530 = arith.addf %528, %529 : vector<8x128xf32>
    %531 = math.tanh %530 : vector<8x128xf32>
    %532 = arith.mulf %527, %531 : vector<8x128xf32>
    %c1_234 = arith.constant 1 : index
    %c0_235 = arith.constant 0 : index
    %c0_236 = arith.constant 0 : index
    %533 = vector.load %arg16[%c1_234, %c0_235, %c0_236] : memref<2x8x128xf32, #tpu.memory_space<vmem>>, vector<1x8x128xf32>
    %534 = vector.shape_cast %533 : vector<1x8x128xf32> to vector<8x128xf32>
    %535 = vector.shape_cast %532 : vector<8x128xf32> to vector<1x8x128xf32>
    tpu.vector_store %arg16[%c1_234, %c0_235, %c0_236], %535 {strides = array<i32>} : memref<2x8x128xf32, #tpu.memory_space<vmem>>, vector<1x8x128xf32>,
    %c1_237 = arith.constant 1 : index
    %c0_238 = arith.constant 0 : index
    %c0_239 = arith.constant 0 : index
    %536 = vector.load %arg17[%c1_237, %c0_238, %c0_239] : memref<2x8x128xf32, #tpu.memory_space<vmem>>, vector<1x8x128xf32>
    %537 = vector.shape_cast %536 : vector<1x8x128xf32> to vector<8x128xf32>
    %538 = vector.shape_cast %530 : vector<8x128xf32> to vector<1x8x128xf32>
    tpu.vector_store %arg17[%c1_237, %c0_238, %c0_239], %538 {strides = array<i32>} : memref<2x8x128xf32, #tpu.memory_space<vmem>>, vector<1x8x128xf32>,
    %539 = arith.truncf %532 : vector<8x128xf32> to vector<8x128xbf16>
    %540 = arith.index_cast %c2_i32_221 : i32 to index
    %c0_240 = arith.constant 0 : index
    %c0_241 = arith.constant 0 : index
    %541 = vector.load %arg8[%540, %c0_240, %c0_241] : memref<8x8x128xbf16, #tpu.memory_space<vmem>>, vector<1x8x128xbf16>
    %542 = vector.shape_cast %541 : vector<1x8x128xbf16> to vector<8x128xbf16>
    %543 = vector.shape_cast %539 : vector<8x128xbf16> to vector<1x8x128xbf16>
    tpu.vector_store %arg8[%540, %c0_240, %c0_241], %543 {strides = array<i32>} : memref<8x8x128xbf16, #tpu.memory_space<vmem>>, vector<1x8x128xbf16>,
    %c3_i32_242 = arith.constant 3 : i32
    %c8_i32_243 = arith.constant 8 : i32
    %544 = arith.muli %c3_i32_242, %c8_i32_243 : i32
    %545 = tpu.assume_multiple %544, 8 : i32
    %c1_244 = arith.constant 1 : index
    %c0_245 = arith.constant 0 : index
    %c0_246 = arith.constant 0 : index
    %546 = vector.load %arg16[%c1_244, %c0_245, %c0_246] : memref<2x8x128xf32, #tpu.memory_space<vmem>>, vector<1x8x128xf32>
    %547 = vector.shape_cast %546 : vector<1x8x128xf32> to vector<8x128xf32>
    %c1_247 = arith.constant 1 : index
    %c0_248 = arith.constant 0 : index
    %c0_249 = arith.constant 0 : index
    %548 = vector.load %arg17[%c1_247, %c0_248, %c0_249] : memref<2x8x128xf32, #tpu.memory_space<vmem>>, vector<1x8x128xf32>
    %549 = vector.shape_cast %548 : vector<1x8x128xf32> to vector<8x128xf32>
    %550 = arith.index_cast %545 : i32 to index
    %c0_250 = arith.constant 0 : index
    %551 = vector.load %arg14[%550, %c0_250] : memref<64x512xf32, #tpu.memory_space<vmem>>, vector<8x512xf32>
    %552 = arith.truncf %547 : vector<8x128xf32> to vector<8x128xbf16>
    %cst_251 = arith.constant dense<0.000000e+00> : vector<8x512xf32>
    %553 = tpu.matmul %552, %394, %cst_251 {dimension_numbers = #tpu.dot_dimension_numbers<[1], [0], [0], [1], [0, 0, 1, 1], [], []>} : vector<8x128xbf16>, vector<128x512xbf16>, vector<8x512xf32> -> vector<8x512xf32>
    %554 = arith.addf %551, %553 : vector<8x512xf32>
    %555 = vector.broadcast %396 : vector<1x512xf32> to vector<8x512xf32>
    %556 = arith.addf %554, %555 : vector<8x512xf32>
    %557 = vector.extract_strided_slice %556 {offsets = [0, 0], sizes = [8, 128], strides = [1, 1]} : vector<8x512xf32> to vector<8x128xf32>
    %558 = arith.negf %557 : vector<8x128xf32>
    %559 = math.exp %558 : vector<8x128xf32>
    %cst_252 = arith.constant 1.000000e+00 : f32
    %560 = vector.broadcast %cst_252 : f32 to vector<8x128xf32>
    %561 = arith.addf %560, %559 : vector<8x128xf32>
    %562 = arith.divf %560, %561 : vector<8x128xf32>
    %563 = vector.extract_strided_slice %556 {offsets = [0, 128], sizes = [8, 128], strides = [1, 1]} : vector<8x512xf32> to vector<8x128xf32>
    %564 = arith.negf %563 : vector<8x128xf32>
    %565 = math.exp %564 : vector<8x128xf32>
    %cst_253 = arith.constant 1.000000e+00 : f32
    %566 = vector.broadcast %cst_253 : f32 to vector<8x128xf32>
    %567 = arith.addf %566, %565 : vector<8x128xf32>
    %568 = arith.divf %566, %567 : vector<8x128xf32>
    %569 = vector.extract_strided_slice %556 {offsets = [0, 256], sizes = [8, 128], strides = [1, 1]} : vector<8x512xf32> to vector<8x128xf32>
    %570 = math.tanh %569 : vector<8x128xf32>
    %571 = vector.extract_strided_slice %556 {offsets = [0, 384], sizes = [8, 128], strides = [1, 1]} : vector<8x512xf32> to vector<8x128xf32>
    %572 = arith.negf %571 : vector<8x128xf32>
    %573 = math.exp %572 : vector<8x128xf32>
    %cst_254 = arith.constant 1.000000e+00 : f32
    %574 = vector.broadcast %cst_254 : f32 to vector<8x128xf32>
    %575 = arith.addf %574, %573 : vector<8x128xf32>
    %576 = arith.divf %574, %575 : vector<8x128xf32>
    %577 = arith.mulf %568, %549 : vector<8x128xf32>
    %578 = arith.mulf %562, %570 : vector<8x128xf32>
    %579 = arith.addf %577, %578 : vector<8x128xf32>
    %580 = math.tanh %579 : vector<8x128xf32>
    %581 = arith.mulf %576, %580 : vector<8x128xf32>
    %c1_255 = arith.constant 1 : index
    %c0_256 = arith.constant 0 : index
    %c0_257 = arith.constant 0 : index
    %582 = vector.load %arg16[%c1_255, %c0_256, %c0_257] : memref<2x8x128xf32, #tpu.memory_space<vmem>>, vector<1x8x128xf32>
    %583 = vector.shape_cast %582 : vector<1x8x128xf32> to vector<8x128xf32>
    %584 = vector.shape_cast %581 : vector<8x128xf32> to vector<1x8x128xf32>
    tpu.vector_store %arg16[%c1_255, %c0_256, %c0_257], %584 {strides = array<i32>} : memref<2x8x128xf32, #tpu.memory_space<vmem>>, vector<1x8x128xf32>,
    %c1_258 = arith.constant 1 : index
    %c0_259 = arith.constant 0 : index
    %c0_260 = arith.constant 0 : index
    %585 = vector.load %arg17[%c1_258, %c0_259, %c0_260] : memref<2x8x128xf32, #tpu.memory_space<vmem>>, vector<1x8x128xf32>
    %586 = vector.shape_cast %585 : vector<1x8x128xf32> to vector<8x128xf32>
    %587 = vector.shape_cast %579 : vector<8x128xf32> to vector<1x8x128xf32>
    tpu.vector_store %arg17[%c1_258, %c0_259, %c0_260], %587 {strides = array<i32>} : memref<2x8x128xf32, #tpu.memory_space<vmem>>, vector<1x8x128xf32>,
    %588 = arith.truncf %581 : vector<8x128xf32> to vector<8x128xbf16>
    %589 = arith.index_cast %c3_i32_242 : i32 to index
    %c0_261 = arith.constant 0 : index
    %c0_262 = arith.constant 0 : index
    %590 = vector.load %arg8[%589, %c0_261, %c0_262] : memref<8x8x128xbf16, #tpu.memory_space<vmem>>, vector<1x8x128xbf16>
    %591 = vector.shape_cast %590 : vector<1x8x128xbf16> to vector<8x128xbf16>
    %592 = vector.shape_cast %588 : vector<8x128xbf16> to vector<1x8x128xbf16>
    tpu.vector_store %arg8[%589, %c0_261, %c0_262], %592 {strides = array<i32>} : memref<8x8x128xbf16, #tpu.memory_space<vmem>>, vector<1x8x128xbf16>,
    %c4_i32_263 = arith.constant 4 : i32
    %c8_i32_264 = arith.constant 8 : i32
    %593 = arith.muli %c4_i32_263, %c8_i32_264 : i32
    %594 = tpu.assume_multiple %593, 8 : i32
    %c1_265 = arith.constant 1 : index
    %c0_266 = arith.constant 0 : index
    %c0_267 = arith.constant 0 : index
    %595 = vector.load %arg16[%c1_265, %c0_266, %c0_267] : memref<2x8x128xf32, #tpu.memory_space<vmem>>, vector<1x8x128xf32>
    %596 = vector.shape_cast %595 : vector<1x8x128xf32> to vector<8x128xf32>
    %c1_268 = arith.constant 1 : index
    %c0_269 = arith.constant 0 : index
    %c0_270 = arith.constant 0 : index
    %597 = vector.load %arg17[%c1_268, %c0_269, %c0_270] : memref<2x8x128xf32, #tpu.memory_space<vmem>>, vector<1x8x128xf32>
    %598 = vector.shape_cast %597 : vector<1x8x128xf32> to vector<8x128xf32>
    %599 = arith.index_cast %594 : i32 to index
    %c0_271 = arith.constant 0 : index
    %600 = vector.load %arg14[%599, %c0_271] : memref<64x512xf32, #tpu.memory_space<vmem>>, vector<8x512xf32>
    %601 = arith.truncf %596 : vector<8x128xf32> to vector<8x128xbf16>
    %cst_272 = arith.constant dense<0.000000e+00> : vector<8x512xf32>
    %602 = tpu.matmul %601, %394, %cst_272 {dimension_numbers = #tpu.dot_dimension_numbers<[1], [0], [0], [1], [0, 0, 1, 1], [], []>} : vector<8x128xbf16>, vector<128x512xbf16>, vector<8x512xf32> -> vector<8x512xf32>
    %603 = arith.addf %600, %602 : vector<8x512xf32>
    %604 = vector.broadcast %396 : vector<1x512xf32> to vector<8x512xf32>
    %605 = arith.addf %603, %604 : vector<8x512xf32>
    %606 = vector.extract_strided_slice %605 {offsets = [0, 0], sizes = [8, 128], strides = [1, 1]} : vector<8x512xf32> to vector<8x128xf32>
    %607 = arith.negf %606 : vector<8x128xf32>
    %608 = math.exp %607 : vector<8x128xf32>
    %cst_273 = arith.constant 1.000000e+00 : f32
    %609 = vector.broadcast %cst_273 : f32 to vector<8x128xf32>
    %610 = arith.addf %609, %608 : vector<8x128xf32>
    %611 = arith.divf %609, %610 : vector<8x128xf32>
    %612 = vector.extract_strided_slice %605 {offsets = [0, 128], sizes = [8, 128], strides = [1, 1]} : vector<8x512xf32> to vector<8x128xf32>
    %613 = arith.negf %612 : vector<8x128xf32>
    %614 = math.exp %613 : vector<8x128xf32>
    %cst_274 = arith.constant 1.000000e+00 : f32
    %615 = vector.broadcast %cst_274 : f32 to vector<8x128xf32>
    %616 = arith.addf %615, %614 : vector<8x128xf32>
    %617 = arith.divf %615, %616 : vector<8x128xf32>
    %618 = vector.extract_strided_slice %605 {offsets = [0, 256], sizes = [8, 128], strides = [1, 1]} : vector<8x512xf32> to vector<8x128xf32>
    %619 = math.tanh %618 : vector<8x128xf32>
    %620 = vector.extract_strided_slice %605 {offsets = [0, 384], sizes = [8, 128], strides = [1, 1]} : vector<8x512xf32> to vector<8x128xf32>
    %621 = arith.negf %620 : vector<8x128xf32>
    %622 = math.exp %621 : vector<8x128xf32>
    %cst_275 = arith.constant 1.000000e+00 : f32
    %623 = vector.broadcast %cst_275 : f32 to vector<8x128xf32>
    %624 = arith.addf %623, %622 : vector<8x128xf32>
    %625 = arith.divf %623, %624 : vector<8x128xf32>
    %626 = arith.mulf %617, %598 : vector<8x128xf32>
    %627 = arith.mulf %611, %619 : vector<8x128xf32>
    %628 = arith.addf %626, %627 : vector<8x128xf32>
    %629 = math.tanh %628 : vector<8x128xf32>
    %630 = arith.mulf %625, %629 : vector<8x128xf32>
    %c1_276 = arith.constant 1 : index
    %c0_277 = arith.constant 0 : index
    %c0_278 = arith.constant 0 : index
    %631 = vector.load %arg16[%c1_276, %c0_277, %c0_278] : memref<2x8x128xf32, #tpu.memory_space<vmem>>, vector<1x8x128xf32>
    %632 = vector.shape_cast %631 : vector<1x8x128xf32> to vector<8x128xf32>
    %633 = vector.shape_cast %630 : vector<8x128xf32> to vector<1x8x128xf32>
    tpu.vector_store %arg16[%c1_276, %c0_277, %c0_278], %633 {strides = array<i32>} : memref<2x8x128xf32, #tpu.memory_space<vmem>>, vector<1x8x128xf32>,
    %c1_279 = arith.constant 1 : index
    %c0_280 = arith.constant 0 : index
    %c0_281 = arith.constant 0 : index
    %634 = vector.load %arg17[%c1_279, %c0_280, %c0_281] : memref<2x8x128xf32, #tpu.memory_space<vmem>>, vector<1x8x128xf32>
    %635 = vector.shape_cast %634 : vector<1x8x128xf32> to vector<8x128xf32>
    %636 = vector.shape_cast %628 : vector<8x128xf32> to vector<1x8x128xf32>
    tpu.vector_store %arg17[%c1_279, %c0_280, %c0_281], %636 {strides = array<i32>} : memref<2x8x128xf32, #tpu.memory_space<vmem>>, vector<1x8x128xf32>,
    %637 = arith.truncf %630 : vector<8x128xf32> to vector<8x128xbf16>
    %638 = arith.index_cast %c4_i32_263 : i32 to index
    %c0_282 = arith.constant 0 : index
    %c0_283 = arith.constant 0 : index
    %639 = vector.load %arg8[%638, %c0_282, %c0_283] : memref<8x8x128xbf16, #tpu.memory_space<vmem>>, vector<1x8x128xbf16>
    %640 = vector.shape_cast %639 : vector<1x8x128xbf16> to vector<8x128xbf16>
    %641 = vector.shape_cast %637 : vector<8x128xbf16> to vector<1x8x128xbf16>
    tpu.vector_store %arg8[%638, %c0_282, %c0_283], %641 {strides = array<i32>} : memref<8x8x128xbf16, #tpu.memory_space<vmem>>, vector<1x8x128xbf16>,
    %c5_i32_284 = arith.constant 5 : i32
    %c8_i32_285 = arith.constant 8 : i32
    %642 = arith.muli %c5_i32_284, %c8_i32_285 : i32
    %643 = tpu.assume_multiple %642, 8 : i32
    %c1_286 = arith.constant 1 : index
    %c0_287 = arith.constant 0 : index
    %c0_288 = arith.constant 0 : index
    %644 = vector.load %arg16[%c1_286, %c0_287, %c0_288] : memref<2x8x128xf32, #tpu.memory_space<vmem>>, vector<1x8x128xf32>
    %645 = vector.shape_cast %644 : vector<1x8x128xf32> to vector<8x128xf32>
    %c1_289 = arith.constant 1 : index
    %c0_290 = arith.constant 0 : index
    %c0_291 = arith.constant 0 : index
    %646 = vector.load %arg17[%c1_289, %c0_290, %c0_291] : memref<2x8x128xf32, #tpu.memory_space<vmem>>, vector<1x8x128xf32>
    %647 = vector.shape_cast %646 : vector<1x8x128xf32> to vector<8x128xf32>
    %648 = arith.index_cast %643 : i32 to index
    %c0_292 = arith.constant 0 : index
    %649 = vector.load %arg14[%648, %c0_292] : memref<64x512xf32, #tpu.memory_space<vmem>>, vector<8x512xf32>
    %650 = arith.truncf %645 : vector<8x128xf32> to vector<8x128xbf16>
    %cst_293 = arith.constant dense<0.000000e+00> : vector<8x512xf32>
    %651 = tpu.matmul %650, %394, %cst_293 {dimension_numbers = #tpu.dot_dimension_numbers<[1], [0], [0], [1], [0, 0, 1, 1], [], []>} : vector<8x128xbf16>, vector<128x512xbf16>, vector<8x512xf32> -> vector<8x512xf32>
    %652 = arith.addf %649, %651 : vector<8x512xf32>
    %653 = vector.broadcast %396 : vector<1x512xf32> to vector<8x512xf32>
    %654 = arith.addf %652, %653 : vector<8x512xf32>
    %655 = vector.extract_strided_slice %654 {offsets = [0, 0], sizes = [8, 128], strides = [1, 1]} : vector<8x512xf32> to vector<8x128xf32>
    %656 = arith.negf %655 : vector<8x128xf32>
    %657 = math.exp %656 : vector<8x128xf32>
    %cst_294 = arith.constant 1.000000e+00 : f32
    %658 = vector.broadcast %cst_294 : f32 to vector<8x128xf32>
    %659 = arith.addf %658, %657 : vector<8x128xf32>
    %660 = arith.divf %658, %659 : vector<8x128xf32>
    %661 = vector.extract_strided_slice %654 {offsets = [0, 128], sizes = [8, 128], strides = [1, 1]} : vector<8x512xf32> to vector<8x128xf32>
    %662 = arith.negf %661 : vector<8x128xf32>
    %663 = math.exp %662 : vector<8x128xf32>
    %cst_295 = arith.constant 1.000000e+00 : f32
    %664 = vector.broadcast %cst_295 : f32 to vector<8x128xf32>
    %665 = arith.addf %664, %663 : vector<8x128xf32>
    %666 = arith.divf %664, %665 : vector<8x128xf32>
    %667 = vector.extract_strided_slice %654 {offsets = [0, 256], sizes = [8, 128], strides = [1, 1]} : vector<8x512xf32> to vector<8x128xf32>
    %668 = math.tanh %667 : vector<8x128xf32>
    %669 = vector.extract_strided_slice %654 {offsets = [0, 384], sizes = [8, 128], strides = [1, 1]} : vector<8x512xf32> to vector<8x128xf32>
    %670 = arith.negf %669 : vector<8x128xf32>
    %671 = math.exp %670 : vector<8x128xf32>
    %cst_296 = arith.constant 1.000000e+00 : f32
    %672 = vector.broadcast %cst_296 : f32 to vector<8x128xf32>
    %673 = arith.addf %672, %671 : vector<8x128xf32>
    %674 = arith.divf %672, %673 : vector<8x128xf32>
    %675 = arith.mulf %666, %647 : vector<8x128xf32>
    %676 = arith.mulf %660, %668 : vector<8x128xf32>
    %677 = arith.addf %675, %676 : vector<8x128xf32>
    %678 = math.tanh %677 : vector<8x128xf32>
    %679 = arith.mulf %674, %678 : vector<8x128xf32>
    %c1_297 = arith.constant 1 : index
    %c0_298 = arith.constant 0 : index
    %c0_299 = arith.constant 0 : index
    %680 = vector.load %arg16[%c1_297, %c0_298, %c0_299] : memref<2x8x128xf32, #tpu.memory_space<vmem>>, vector<1x8x128xf32>
    %681 = vector.shape_cast %680 : vector<1x8x128xf32> to vector<8x128xf32>
    %682 = vector.shape_cast %679 : vector<8x128xf32> to vector<1x8x128xf32>
    tpu.vector_store %arg16[%c1_297, %c0_298, %c0_299], %682 {strides = array<i32>} : memref<2x8x128xf32, #tpu.memory_space<vmem>>, vector<1x8x128xf32>,
    %c1_300 = arith.constant 1 : index
    %c0_301 = arith.constant 0 : index
    %c0_302 = arith.constant 0 : index
    %683 = vector.load %arg17[%c1_300, %c0_301, %c0_302] : memref<2x8x128xf32, #tpu.memory_space<vmem>>, vector<1x8x128xf32>
    %684 = vector.shape_cast %683 : vector<1x8x128xf32> to vector<8x128xf32>
    %685 = vector.shape_cast %677 : vector<8x128xf32> to vector<1x8x128xf32>
    tpu.vector_store %arg17[%c1_300, %c0_301, %c0_302], %685 {strides = array<i32>} : memref<2x8x128xf32, #tpu.memory_space<vmem>>, vector<1x8x128xf32>,
    %686 = arith.truncf %679 : vector<8x128xf32> to vector<8x128xbf16>
    %687 = arith.index_cast %c5_i32_284 : i32 to index
    %c0_303 = arith.constant 0 : index
    %c0_304 = arith.constant 0 : index
    %688 = vector.load %arg8[%687, %c0_303, %c0_304] : memref<8x8x128xbf16, #tpu.memory_space<vmem>>, vector<1x8x128xbf16>
    %689 = vector.shape_cast %688 : vector<1x8x128xbf16> to vector<8x128xbf16>
    %690 = vector.shape_cast %686 : vector<8x128xbf16> to vector<1x8x128xbf16>
    tpu.vector_store %arg8[%687, %c0_303, %c0_304], %690 {strides = array<i32>} : memref<8x8x128xbf16, #tpu.memory_space<vmem>>, vector<1x8x128xbf16>,
    %c6_i32_305 = arith.constant 6 : i32
    %c8_i32_306 = arith.constant 8 : i32
    %691 = arith.muli %c6_i32_305, %c8_i32_306 : i32
    %692 = tpu.assume_multiple %691, 8 : i32
    %c1_307 = arith.constant 1 : index
    %c0_308 = arith.constant 0 : index
    %c0_309 = arith.constant 0 : index
    %693 = vector.load %arg16[%c1_307, %c0_308, %c0_309] : memref<2x8x128xf32, #tpu.memory_space<vmem>>, vector<1x8x128xf32>
    %694 = vector.shape_cast %693 : vector<1x8x128xf32> to vector<8x128xf32>
    %c1_310 = arith.constant 1 : index
    %c0_311 = arith.constant 0 : index
    %c0_312 = arith.constant 0 : index
    %695 = vector.load %arg17[%c1_310, %c0_311, %c0_312] : memref<2x8x128xf32, #tpu.memory_space<vmem>>, vector<1x8x128xf32>
    %696 = vector.shape_cast %695 : vector<1x8x128xf32> to vector<8x128xf32>
    %697 = arith.index_cast %692 : i32 to index
    %c0_313 = arith.constant 0 : index
    %698 = vector.load %arg14[%697, %c0_313] : memref<64x512xf32, #tpu.memory_space<vmem>>, vector<8x512xf32>
    %699 = arith.truncf %694 : vector<8x128xf32> to vector<8x128xbf16>
    %cst_314 = arith.constant dense<0.000000e+00> : vector<8x512xf32>
    %700 = tpu.matmul %699, %394, %cst_314 {dimension_numbers = #tpu.dot_dimension_numbers<[1], [0], [0], [1], [0, 0, 1, 1], [], []>} : vector<8x128xbf16>, vector<128x512xbf16>, vector<8x512xf32> -> vector<8x512xf32>
    %701 = arith.addf %698, %700 : vector<8x512xf32>
    %702 = vector.broadcast %396 : vector<1x512xf32> to vector<8x512xf32>
    %703 = arith.addf %701, %702 : vector<8x512xf32>
    %704 = vector.extract_strided_slice %703 {offsets = [0, 0], sizes = [8, 128], strides = [1, 1]} : vector<8x512xf32> to vector<8x128xf32>
    %705 = arith.negf %704 : vector<8x128xf32>
    %706 = math.exp %705 : vector<8x128xf32>
    %cst_315 = arith.constant 1.000000e+00 : f32
    %707 = vector.broadcast %cst_315 : f32 to vector<8x128xf32>
    %708 = arith.addf %707, %706 : vector<8x128xf32>
    %709 = arith.divf %707, %708 : vector<8x128xf32>
    %710 = vector.extract_strided_slice %703 {offsets = [0, 128], sizes = [8, 128], strides = [1, 1]} : vector<8x512xf32> to vector<8x128xf32>
    %711 = arith.negf %710 : vector<8x128xf32>
    %712 = math.exp %711 : vector<8x128xf32>
    %cst_316 = arith.constant 1.000000e+00 : f32
    %713 = vector.broadcast %cst_316 : f32 to vector<8x128xf32>
    %714 = arith.addf %713, %712 : vector<8x128xf32>
    %715 = arith.divf %713, %714 : vector<8x128xf32>
    %716 = vector.extract_strided_slice %703 {offsets = [0, 256], sizes = [8, 128], strides = [1, 1]} : vector<8x512xf32> to vector<8x128xf32>
    %717 = math.tanh %716 : vector<8x128xf32>
    %718 = vector.extract_strided_slice %703 {offsets = [0, 384], sizes = [8, 128], strides = [1, 1]} : vector<8x512xf32> to vector<8x128xf32>
    %719 = arith.negf %718 : vector<8x128xf32>
    %720 = math.exp %719 : vector<8x128xf32>
    %cst_317 = arith.constant 1.000000e+00 : f32
    %721 = vector.broadcast %cst_317 : f32 to vector<8x128xf32>
    %722 = arith.addf %721, %720 : vector<8x128xf32>
    %723 = arith.divf %721, %722 : vector<8x128xf32>
    %724 = arith.mulf %715, %696 : vector<8x128xf32>
    %725 = arith.mulf %709, %717 : vector<8x128xf32>
    %726 = arith.addf %724, %725 : vector<8x128xf32>
    %727 = math.tanh %726 : vector<8x128xf32>
    %728 = arith.mulf %723, %727 : vector<8x128xf32>
    %c1_318 = arith.constant 1 : index
    %c0_319 = arith.constant 0 : index
    %c0_320 = arith.constant 0 : index
    %729 = vector.load %arg16[%c1_318, %c0_319, %c0_320] : memref<2x8x128xf32, #tpu.memory_space<vmem>>, vector<1x8x128xf32>
    %730 = vector.shape_cast %729 : vector<1x8x128xf32> to vector<8x128xf32>
    %731 = vector.shape_cast %728 : vector<8x128xf32> to vector<1x8x128xf32>
    tpu.vector_store %arg16[%c1_318, %c0_319, %c0_320], %731 {strides = array<i32>} : memref<2x8x128xf32, #tpu.memory_space<vmem>>, vector<1x8x128xf32>,
    %c1_321 = arith.constant 1 : index
    %c0_322 = arith.constant 0 : index
    %c0_323 = arith.constant 0 : index
    %732 = vector.load %arg17[%c1_321, %c0_322, %c0_323] : memref<2x8x128xf32, #tpu.memory_space<vmem>>, vector<1x8x128xf32>
    %733 = vector.shape_cast %732 : vector<1x8x128xf32> to vector<8x128xf32>
    %734 = vector.shape_cast %726 : vector<8x128xf32> to vector<1x8x128xf32>
    tpu.vector_store %arg17[%c1_321, %c0_322, %c0_323], %734 {strides = array<i32>} : memref<2x8x128xf32, #tpu.memory_space<vmem>>, vector<1x8x128xf32>,
    %735 = arith.truncf %728 : vector<8x128xf32> to vector<8x128xbf16>
    %736 = arith.index_cast %c6_i32_305 : i32 to index
    %c0_324 = arith.constant 0 : index
    %c0_325 = arith.constant 0 : index
    %737 = vector.load %arg8[%736, %c0_324, %c0_325] : memref<8x8x128xbf16, #tpu.memory_space<vmem>>, vector<1x8x128xbf16>
    %738 = vector.shape_cast %737 : vector<1x8x128xbf16> to vector<8x128xbf16>
    %739 = vector.shape_cast %735 : vector<8x128xbf16> to vector<1x8x128xbf16>
    tpu.vector_store %arg8[%736, %c0_324, %c0_325], %739 {strides = array<i32>} : memref<8x8x128xbf16, #tpu.memory_space<vmem>>, vector<1x8x128xbf16>,
    %c7_i32_326 = arith.constant 7 : i32
    %c8_i32_327 = arith.constant 8 : i32
    %740 = arith.muli %c7_i32_326, %c8_i32_327 : i32
    %741 = tpu.assume_multiple %740, 8 : i32
    %c1_328 = arith.constant 1 : index
    %c0_329 = arith.constant 0 : index
    %c0_330 = arith.constant 0 : index
    %742 = vector.load %arg16[%c1_328, %c0_329, %c0_330] : memref<2x8x128xf32, #tpu.memory_space<vmem>>, vector<1x8x128xf32>
    %743 = vector.shape_cast %742 : vector<1x8x128xf32> to vector<8x128xf32>
    %c1_331 = arith.constant 1 : index
    %c0_332 = arith.constant 0 : index
    %c0_333 = arith.constant 0 : index
    %744 = vector.load %arg17[%c1_331, %c0_332, %c0_333] : memref<2x8x128xf32, #tpu.memory_space<vmem>>, vector<1x8x128xf32>
    %745 = vector.shape_cast %744 : vector<1x8x128xf32> to vector<8x128xf32>
    %746 = arith.index_cast %741 : i32 to index
    %c0_334 = arith.constant 0 : index
    %747 = vector.load %arg14[%746, %c0_334] : memref<64x512xf32, #tpu.memory_space<vmem>>, vector<8x512xf32>
    %748 = arith.truncf %743 : vector<8x128xf32> to vector<8x128xbf16>
    %cst_335 = arith.constant dense<0.000000e+00> : vector<8x512xf32>
    %749 = tpu.matmul %748, %394, %cst_335 {dimension_numbers = #tpu.dot_dimension_numbers<[1], [0], [0], [1], [0, 0, 1, 1], [], []>} : vector<8x128xbf16>, vector<128x512xbf16>, vector<8x512xf32> -> vector<8x512xf32>
    %750 = arith.addf %747, %749 : vector<8x512xf32>
    %751 = vector.broadcast %396 : vector<1x512xf32> to vector<8x512xf32>
    %752 = arith.addf %750, %751 : vector<8x512xf32>
    %753 = vector.extract_strided_slice %752 {offsets = [0, 0], sizes = [8, 128], strides = [1, 1]} : vector<8x512xf32> to vector<8x128xf32>
    %754 = arith.negf %753 : vector<8x128xf32>
    %755 = math.exp %754 : vector<8x128xf32>
    %cst_336 = arith.constant 1.000000e+00 : f32
    %756 = vector.broadcast %cst_336 : f32 to vector<8x128xf32>
    %757 = arith.addf %756, %755 : vector<8x128xf32>
    %758 = arith.divf %756, %757 : vector<8x128xf32>
    %759 = vector.extract_strided_slice %752 {offsets = [0, 128], sizes = [8, 128], strides = [1, 1]} : vector<8x512xf32> to vector<8x128xf32>
    %760 = arith.negf %759 : vector<8x128xf32>
    %761 = math.exp %760 : vector<8x128xf32>
    %cst_337 = arith.constant 1.000000e+00 : f32
    %762 = vector.broadcast %cst_337 : f32 to vector<8x128xf32>
    %763 = arith.addf %762, %761 : vector<8x128xf32>
    %764 = arith.divf %762, %763 : vector<8x128xf32>
    %765 = vector.extract_strided_slice %752 {offsets = [0, 256], sizes = [8, 128], strides = [1, 1]} : vector<8x512xf32> to vector<8x128xf32>
    %766 = math.tanh %765 : vector<8x128xf32>
    %767 = vector.extract_strided_slice %752 {offsets = [0, 384], sizes = [8, 128], strides = [1, 1]} : vector<8x512xf32> to vector<8x128xf32>
    %768 = arith.negf %767 : vector<8x128xf32>
    %769 = math.exp %768 : vector<8x128xf32>
    %cst_338 = arith.constant 1.000000e+00 : f32
    %770 = vector.broadcast %cst_338 : f32 to vector<8x128xf32>
    %771 = arith.addf %770, %769 : vector<8x128xf32>
    %772 = arith.divf %770, %771 : vector<8x128xf32>
    %773 = arith.mulf %764, %745 : vector<8x128xf32>
    %774 = arith.mulf %758, %766 : vector<8x128xf32>
    %775 = arith.addf %773, %774 : vector<8x128xf32>
    %776 = math.tanh %775 : vector<8x128xf32>
    %777 = arith.mulf %772, %776 : vector<8x128xf32>
    %c1_339 = arith.constant 1 : index
    %c0_340 = arith.constant 0 : index
    %c0_341 = arith.constant 0 : index
    %778 = vector.load %arg16[%c1_339, %c0_340, %c0_341] : memref<2x8x128xf32, #tpu.memory_space<vmem>>, vector<1x8x128xf32>
    %779 = vector.shape_cast %778 : vector<1x8x128xf32> to vector<8x128xf32>
    %780 = vector.shape_cast %777 : vector<8x128xf32> to vector<1x8x128xf32>
    tpu.vector_store %arg16[%c1_339, %c0_340, %c0_341], %780 {strides = array<i32>} : memref<2x8x128xf32, #tpu.memory_space<vmem>>, vector<1x8x128xf32>,
    %c1_342 = arith.constant 1 : index
    %c0_343 = arith.constant 0 : index
    %c0_344 = arith.constant 0 : index
    %781 = vector.load %arg17[%c1_342, %c0_343, %c0_344] : memref<2x8x128xf32, #tpu.memory_space<vmem>>, vector<1x8x128xf32>
    %782 = vector.shape_cast %781 : vector<1x8x128xf32> to vector<8x128xf32>
    %783 = vector.shape_cast %775 : vector<8x128xf32> to vector<1x8x128xf32>
    tpu.vector_store %arg17[%c1_342, %c0_343, %c0_344], %783 {strides = array<i32>} : memref<2x8x128xf32, #tpu.memory_space<vmem>>, vector<1x8x128xf32>,
    %784 = arith.truncf %777 : vector<8x128xf32> to vector<8x128xbf16>
    %785 = arith.index_cast %c7_i32_326 : i32 to index
    %c0_345 = arith.constant 0 : index
    %c0_346 = arith.constant 0 : index
    %786 = vector.load %arg8[%785, %c0_345, %c0_346] : memref<8x8x128xbf16, #tpu.memory_space<vmem>>, vector<1x8x128xbf16>
    %787 = vector.shape_cast %786 : vector<1x8x128xbf16> to vector<8x128xbf16>
    %788 = vector.shape_cast %784 : vector<8x128xbf16> to vector<1x8x128xbf16>
    tpu.vector_store %arg8[%785, %c0_345, %c0_346], %788 {strides = array<i32>} : memref<8x8x128xbf16, #tpu.memory_space<vmem>>, vector<1x8x128xbf16>,
    %c8_i32_347 = arith.constant 8 : i32
    %c0_i32_348 = arith.constant 0 : i32
    %789 = arith.cmpi eq, %arg0, %c0_i32_348 : i32
    %790 = arith.extui %789 : i1 to i32
    %c0_i32_349 = arith.constant 0 : i32
    %791 = arith.cmpi ne, %790, %c0_i32_349 : i32
    scf.if %791 {
      %c0_350 = arith.constant 0 : index
      %c0_351 = arith.constant 0 : index
      %c0_352 = arith.constant 0 : index
      %792 = vector.load %arg16[%c0_350, %c0_351, %c0_352] : memref<2x8x128xf32, #tpu.memory_space<vmem>>, vector<2x8x128xf32>
      %c0_353 = arith.constant 0 : index
      %c0_354 = arith.constant 0 : index
      %c0_355 = arith.constant 0 : index
      %793 = vector.load %arg9[%c0_353, %c0_354, %c0_355] : memref<2x8x128xf32, #tpu.memory_space<vmem>>, vector<2x8x128xf32>
      tpu.vector_store %arg9[%c0_353, %c0_354, %c0_355], %792 {strides = array<i32>} : memref<2x8x128xf32, #tpu.memory_space<vmem>>, vector<2x8x128xf32>,
      %c0_356 = arith.constant 0 : index
      %c0_357 = arith.constant 0 : index
      %c0_358 = arith.constant 0 : index
      %794 = vector.load %arg17[%c0_356, %c0_357, %c0_358] : memref<2x8x128xf32, #tpu.memory_space<vmem>>, vector<2x8x128xf32>
      %c0_359 = arith.constant 0 : index
      %c0_360 = arith.constant 0 : index
      %c0_361 = arith.constant 0 : index
      %795 = vector.load %arg10[%c0_359, %c0_360, %c0_361] : memref<2x8x128xf32, #tpu.memory_space<vmem>>, vector<2x8x128xf32>
      tpu.vector_store %arg10[%c0_359, %c0_360, %c0_361], %794 {strides = array<i32>} : memref<2x8x128xf32, #tpu.memory_space<vmem>>, vector<2x8x128xf32>,
    } else {
    }
    return
  }
  func.func @transform_0(%arg0: i32) -> (i32, i32, i32) {
    %c0_i32 = arith.constant 0 : i32
    %c0_i32_0 = arith.constant 0 : i32
    %c0_i32_1 = arith.constant 0 : i32
    return %arg0, %c0_i32, %c0_i32_0 : i32, i32, i32
  }
  func.func @transform_4(%arg0: i32) -> (i32, i32, i32) {
    %c0_i32 = arith.constant 0 : i32
    %c0_i32_0 = arith.constant 0 : i32
    %c0_i32_1 = arith.constant 0 : i32
    %c0_i32_2 = arith.constant 0 : i32
    return %c0_i32, %c0_i32_0, %c0_i32_1 : i32, i32, i32
  }
  func.func @transform_5(%arg0: i32) -> (i32, i32, i32) {
    %c0_i32 = arith.constant 0 : i32
    %c0_i32_0 = arith.constant 0 : i32
    %c0_i32_1 = arith.constant 0 : i32
    %c0_i32_2 = arith.constant 0 : i32
    return %c0_i32, %c0_i32_0, %c0_i32_1 : i32, i32, i32
  }
  func.func @transform_6(%arg0: i32) -> (i32, i32, i32) {
    %c0_i32 = arith.constant 0 : i32
    %c0_i32_0 = arith.constant 0 : i32
    %c0_i32_1 = arith.constant 0 : i32
    %c0_i32_2 = arith.constant 0 : i32
    return %c0_i32, %c0_i32_0, %c0_i32_1 : i32, i32, i32
  }
  func.func @transform_7(%arg0: i32) -> (i32, i32, i32) {
    %c0_i32 = arith.constant 0 : i32
    %c0_i32_0 = arith.constant 0 : i32
    %c0_i32_1 = arith.constant 0 : i32
    return %arg0, %c0_i32, %c0_i32_0 : i32, i32, i32
  }
  func.func @transform_8(%arg0: i32) -> (i32, i32, i32) {
    %c0_i32 = arith.constant 0 : i32
    %c0_i32_0 = arith.constant 0 : i32
    %c0_i32_1 = arith.constant 0 : i32
    %c0_i32_2 = arith.constant 0 : i32
    return %c0_i32, %c0_i32_0, %c0_i32_1 : i32, i32, i32
  }
  func.func @transform_9(%arg0: i32) -> (i32, i32, i32) {
    %c0_i32 = arith.constant 0 : i32
    %c0_i32_0 = arith.constant 0 : i32
    %c0_i32_1 = arith.constant 0 : i32
    %c0_i32_2 = arith.constant 0 : i32
    return %c0_i32, %c0_i32_0, %c0_i32_1 : i32, i32, i32
  }
}

</mosaic_0001>

<llo_original>
// kernel: rnn_model_forward.3
$region0: #{rnn_model_forward.3}
  #allocation0 [shape = 'u32[]', space=smem, size = 0x4, offset = 0x4, fixed_abs, tag = 'smem constant byte address 0x4 - core index']
  #allocation1 [shape = 'u32[144,128]{1,0:T(1,128)}', space=vmem, size = 0x12000, scoped, tag = 'internal scratch']
  #allocation2 [shape = 'f32[64,128]{1,0:T(8,128)}', space=vmem, size = 0x8000, scoped, tag = 'scratch operand']
  %s0 = inlined_call_operand.vmem [shape: bf16[64,128], index: 0, kind: input, shape index: {}]
  %s1 = inlined_call_operand.vmem [shape: bf16[128,128], index: 1, kind: input, shape index: {}]
  %s2 = inlined_call_operand.vmem [shape: f32[1,128], index: 2, kind: input, shape index: {}]
  %s3 = inlined_call_operand.vmem [shape: f32[64,128], index: 3, kind: output, shape index: {}]
  %s4 = sld [smem:[#allocation0]]
  $region30: #{rnn_model_forward.3} parent=0
    _
  %s6 = ssub.s32 1, %s4
  %s7 = scalar_select 0, %s6, %s4
  // Predicated region
  $region2: #{rnn_model_forward.3} parent=0 // pred_check
    _
  $region3: #{rnn_model_forward.3} parent=0 // pred_check_branch
    %9 = sbr.rel (0) target = $region5
  $region4: #{rnn_model_forward.3} parent=0 // pred_region
    _
  $region5: #{rnn_model_forward.3} parent=0 // pred_fallthru
    _
  // Predicated region
  $region6: #{rnn_model_forward.3} parent=0 // pred_check
    _
  $region7: #{rnn_model_forward.3} parent=0 // pred_check_branch
    %11 = sbr.rel (0) target = $region9
  $region8: #{rnn_model_forward.3} parent=0 // pred_region
    _
  $region9: #{rnn_model_forward.3} parent=0 // pred_fallthru
    _
  // Predicated region
  $region10: #{rnn_model_forward.3} parent=0 // pred_check
    _
  $region11: #{rnn_model_forward.3} parent=0 // pred_check_branch
    %13 = sbr.rel (0) target = $region13
  $region12: #{rnn_model_forward.3} parent=0 // pred_region
    _
  $region13: #{rnn_model_forward.3} parent=0 // pred_fallthru
    _
  %p15 = scmp.eq.s32.totalorder 0, 0
  // Predicated region
  $region14: #{rnn_model_forward.3} parent=0 // pred_check
    %p16 = pneg %p15
  $region15: #{rnn_model_forward.3} parent=0 // pred_check_branch
    %18 = sbr.rel (%p16) target = $region17
  $region16: #{rnn_model_forward.3} parent=0 // pred_region
    %19 = vst [vmem:[#allocation2] sm:$0xff] 0.0
    %20 = vst [vmem:[#allocation2 + $0x8] sm:$0xff] 0.0
    %21 = vst [vmem:[#allocation2 + $0x10] sm:$0xff] 0.0
    %22 = vst [vmem:[#allocation2 + $0x18] sm:$0xff] 0.0
    %23 = vst [vmem:[#allocation2 + $0x20] sm:$0xff] 0.0
    %24 = vst [vmem:[#allocation2 + $0x28] sm:$0xff] 0.0
    %25 = vst [vmem:[#allocation2 + $0x30] sm:$0xff] 0.0
    %26 = vst [vmem:[#allocation2 + $0x38] sm:$0xff] 0.0
  $region17: #{rnn_model_forward.3} parent=0 // pred_fallthru
    _
  %v27 = vld [vmem:[#allocation2] sm:$0xff]
  %v28 = vld [vmem:[#allocation2 + $0x8] sm:$0xff]
  %v29 = vld [vmem:[#allocation2 + $0x10] sm:$0xff]
  %v30 = vld [vmem:[#allocation2 + $0x18] sm:$0xff]
  %v31 = vld [vmem:[#allocation2 + $0x20] sm:$0xff]
  %v32 = vld [vmem:[#allocation2 + $0x28] sm:$0xff]
  %v33 = vld [vmem:[#allocation2 + $0x30] sm:$0xff]
  %v34 = vld [vmem:[#allocation2 + $0x38] sm:$0xff]
  %v35 = vld [vmem:[%s0] sm:$0xf]
  %v36 = vld [vmem:[%s0 + $0x4] sm:$0xf]
  %v37 = vld [vmem:[%s0 + $0x8] sm:$0xf]
  %v38 = vld [vmem:[%s0 + $0xc] sm:$0xf]
  %v39 = vld [vmem:[%s0 + $0x10] sm:$0xf]
  %v40 = vld [vmem:[%s0 + $0x14] sm:$0xf]
  %v41 = vld [vmem:[%s0 + $0x18] sm:$0xf]
  %v42 = vld [vmem:[%s0 + $0x1c] sm:$0xf]
  %v43 = vld [vmem:[%s1] sm:$0xf]
  %v44 = vld [vmem:[%s1 + $0x4] sm:$0xf]
  %v45 = vld [vmem:[%s1 + $0x8] sm:$0xf]
  %v46 = vld [vmem:[%s1 + $0xc] sm:$0xf]
  %v47 = vld [vmem:[%s1 + $0x10] sm:$0xf]
  %v48 = vld [vmem:[%s1 + $0x14] sm:$0xf]
  %v49 = vld [vmem:[%s1 + $0x18] sm:$0xf]
  %v50 = vld [vmem:[%s1 + $0x1c] sm:$0xf]
  %v51 = vld [vmem:[%s1 + $0x20] sm:$0xf]
  %v52 = vld [vmem:[%s1 + $0x24] sm:$0xf]
  %v53 = vld [vmem:[%s1 + $0x28] sm:$0xf]
  %v54 = vld [vmem:[%s1 + $0x2c] sm:$0xf]
  %v55 = vld [vmem:[%s1 + $0x30] sm:$0xf]
  %v56 = vld [vmem:[%s1 + $0x34] sm:$0xf]
  %v57 = vld [vmem:[%s1 + $0x38] sm:$0xf]
  %v58 = vld [vmem:[%s1 + $0x3c] sm:$0xf]
  %v67 = vunpack.c.l.b16 %v35
  %v68 = vunpack.c.l.b16 %v36
  %v69 = vunpack.c.l.b16 %v37
  %v70 = vunpack.c.l.b16 %v38
  %v71 = vunpack.c.l.b16 %v39
  %v72 = vunpack.c.l.b16 %v40
  %v73 = vunpack.c.l.b16 %v41
  %v74 = vunpack.c.l.b16 %v42
  %v75 = vpack.c.b16 %v68, %v67
  %v76 = vpack.c.b16 %v70, %v69
  %v77 = vpack.c.b16 %v72, %v71
  %v78 = vpack.c.b16 %v74, %v73
  %v99 = vunpack.c.l.b16 %v43
  %v100 = vunpack.c.l.b16 %v44
  %v101 = vunpack.c.l.b16 %v45
  %v102 = vunpack.c.l.b16 %v46
  %v103 = vunpack.c.l.b16 %v47
  %v104 = vunpack.c.l.b16 %v48
  %v105 = vunpack.c.l.b16 %v49
  %v106 = vunpack.c.l.b16 %v50
  %v107 = vunpack.c.l.b16 %v51
  %v108 = vunpack.c.l.b16 %v52
  %v109 = vunpack.c.l.b16 %v53
  %v110 = vunpack.c.l.b16 %v54
  %v111 = vunpack.c.l.b16 %v55
  %v112 = vunpack.c.l.b16 %v56
  %v113 = vunpack.c.l.b16 %v57
  %v114 = vunpack.c.l.b16 %v58
  %v115 = vpack.c.b16 %v100, %v99
  %v116 = vpack.c.b16 %v102, %v101
  %v117 = vpack.c.b16 %v104, %v103
  %v118 = vpack.c.b16 %v106, %v105
  %v119 = vpack.c.b16 %v108, %v107
  %v120 = vpack.c.b16 %v110, %v109
  %v121 = vpack.c.b16 %v112, %v111
  %v122 = vpack.c.b16 %v114, %v113
  %131 = vmatprep.subr.bf16.mxu0 0
  %132 = vmatpush1.bf16.msra.mxu0 %v122
  %133 = vmatprep.subr.bf16.mxu0 0
  %134 = vmatpush1.bf16.msra.mxu0 %v121
  %135 = vmatprep.subr.bf16.mxu0 0
  %136 = vmatpush1.bf16.msra.mxu0 %v120
  %137 = vmatprep.subr.bf16.mxu0 0
  %138 = vmatpush1.bf16.msra.mxu0 %v119
  %139 = vmatprep.subr.bf16.mxu0 0
  %140 = vmatpush1.bf16.msra.mxu0 %v118
  %141 = vmatprep.subr.bf16.mxu0 0
  %142 = vmatpush1.bf16.msra.mxu0 %v117
  %143 = vmatprep.subr.bf16.mxu0 0
  %144 = vmatpush1.bf16.msra.mxu0 %v116
  %145 = vmatprep.subr.bf16.mxu0 0
  %146 = vmatpush1.bf16.msra.mxu0 %v115
  %147 = vmatprep.subr.bf16.mxu0 0
  %148 = vmatpush2.bf16.msra.mxu0 0
  %149 = vmatprep.subr.bf16.mxu0 0
  %150 = vmatpush2.bf16.msra.mxu0 0
  %151 = vmatprep.subr.bf16.mxu0 0
  %152 = vmatpush2.bf16.msra.mxu0 0
  %153 = vmatprep.subr.bf16.mxu0 0
  %154 = vmatpush2.bf16.msra.mxu0 0
  %155 = vmatprep.subr.bf16.mxu0 0
  %156 = vmatpush2.bf16.msra.mxu0 0
  %157 = vmatprep.subr.bf16.mxu0 0
  %158 = vmatpush2.bf16.msra.mxu0 0
  %159 = vmatprep.subr.bf16.mxu0 0
  %160 = vmatpush2.bf16.msra.mxu0 0
  %161 = vmatprep.subr.bf16.mxu0 0
  %162 = vmatpush2.bf16.msra.mxu0 0
  %163 = vmatprep.mubr.bf16.mxu0 0
  %164 = vmatmul.mubr.bf16.gmra.mxu0 %v75
  %v165 = vpop.f32.mrf.mxu0
  %v166 = vadd.f32 0.0, %v165
  %v167 = vpop.f32.mrf.mxu0
  %v168 = vpop.f32.mrf.mxu0
  %v169 = vadd.f32 0.0, %v168
  %v170 = vpop.f32.mrf.mxu0
  %171 = vmatprep.mubr.bf16.mxu0 0
  %172 = vmatmul.mubr.bf16.gmra.mxu0 %v76
  %v173 = vpop.f32.mrf.mxu0
  %v174 = vadd.f32 0.0, %v173
  %v175 = vpop.f32.mrf.mxu0
  %v176 = vpop.f32.mrf.mxu0
  %v177 = vadd.f32 0.0, %v176
  %v178 = vpop.f32.mrf.mxu0
  %179 = vmatprep.mubr.bf16.mxu0 0
  %180 = vmatmul.mubr.bf16.gmra.mxu0 %v77
  %v181 = vpop.f32.mrf.mxu0
  %v182 = vadd.f32 0.0, %v181
  %v183 = vpop.f32.mrf.mxu0
  %v184 = vpop.f32.mrf.mxu0
  %v185 = vadd.f32 0.0, %v184
  %v186 = vpop.f32.mrf.mxu0
  %187 = vmatprep.mubr.bf16.mxu0 0
  %188 = vmatmul.mubr.bf16.gmra.mxu0 %v78
  %v189 = vpop.f32.mrf.mxu0
  %v190 = vadd.f32 0.0, %v189
  %v191 = vpop.f32.mrf.mxu0
  %v192 = vpop.f32.mrf.mxu0
  %v193 = vadd.f32 0.0, %v192
  %v194 = vpop.f32.mrf.mxu0
  %195 = vdwg.mxu0
  %v196 = vadd.f32 %v27, %v166
  %v197 = vadd.f32 %v28, %v169
  %v198 = vadd.f32 %v29, %v174
  %v199 = vadd.f32 %v30, %v177
  %v200 = vadd.f32 %v31, %v182
  %v201 = vadd.f32 %v32, %v185
  %v202 = vadd.f32 %v33, %v190
  %v203 = vadd.f32 %v34, %v193
  %204 = vst [vmem:[#allocation2] sm:$0xff] %v196
  %205 = vst [vmem:[#allocation2 + $0x8] sm:$0xff] %v197
  %206 = vst [vmem:[#allocation2 + $0x10] sm:$0xff] %v198
  %207 = vst [vmem:[#allocation2 + $0x18] sm:$0xff] %v199
  %208 = vst [vmem:[#allocation2 + $0x20] sm:$0xff] %v200
  %209 = vst [vmem:[#allocation2 + $0x28] sm:$0xff] %v201
  %210 = vst [vmem:[#allocation2 + $0x30] sm:$0xff] %v202
  %211 = vst [vmem:[#allocation2 + $0x38] sm:$0xff] %v203
  // Predicated region
  $region18: #{rnn_model_forward.3} parent=0 // pred_check
    %p212 = pneg %p15
  $region19: #{rnn_model_forward.3} parent=0 // pred_check_branch
    %214 = sbr.rel (%p212) target = $region21
  $region20: #{rnn_model_forward.3} parent=0 // pred_region
    %v215 = vld [vmem:[#allocation2] sm:$0xff]
    %v216 = vld [vmem:[#allocation2 + $0x8] sm:$0xff]
    %v217 = vld [vmem:[#allocation2 + $0x10] sm:$0xff]
    %v218 = vld [vmem:[#allocation2 + $0x18] sm:$0xff]
    %v219 = vld [vmem:[#allocation2 + $0x20] sm:$0xff]
    %v220 = vld [vmem:[#allocation2 + $0x28] sm:$0xff]
    %v221 = vld [vmem:[#allocation2 + $0x30] sm:$0xff]
    %v222 = vld [vmem:[#allocation2 + $0x38] sm:$0xff]
    %v223 = vld [vmem:[%s2] sm:$0x1]
    %v225 = vlaneseq
    %v226 = vshrl.u32 %v225, 7
    %v227 = vsub.s32 0, %v226
    %v228 = vrot.slane %v223, %v227
    %v230 = vadd.f32 %v215, %v228
    %v231 = vadd.f32 %v216, %v228
    %v232 = vadd.f32 %v217, %v228
    %v233 = vadd.f32 %v218, %v228
    %v234 = vadd.f32 %v219, %v228
    %v235 = vadd.f32 %v220, %v228
    %v236 = vadd.f32 %v221, %v228
    %v237 = vadd.f32 %v222, %v228
    %238 = vst [vmem:[%s3] sm:$0xff] %v230
    %239 = vst [vmem:[%s3 + $0x8] sm:$0xff] %v231
    %240 = vst [vmem:[%s3 + $0x10] sm:$0xff] %v232
    %241 = vst [vmem:[%s3 + $0x18] sm:$0xff] %v233
    %242 = vst [vmem:[%s3 + $0x20] sm:$0xff] %v234
    %243 = vst [vmem:[%s3 + $0x28] sm:$0xff] %v235
    %244 = vst [vmem:[%s3 + $0x30] sm:$0xff] %v236
    %245 = vst [vmem:[%s3 + $0x38] sm:$0xff] %v237
  $region21: #{rnn_model_forward.3} parent=0 // pred_fallthru
    _
  // Predicated region
  $region22: #{rnn_model_forward.3} parent=0 // pred_check
    _
  $region23: #{rnn_model_forward.3} parent=0 // pred_check_branch
    %247 = sbr.rel (0) target = $region25
  $region24: #{rnn_model_forward.3} parent=0 // pred_region
    _
  $region25: #{rnn_model_forward.3} parent=0 // pred_fallthru
    _
  // Predicated region
  $region26: #{rnn_model_forward.3} parent=0 // pred_check
    _
  $region27: #{rnn_model_forward.3} parent=0 // pred_check_branch
    %249 = sbr.rel (0) target = $region29
  $region28: #{rnn_model_forward.3} parent=0 // pred_region
    _
  $region29: #{rnn_model_forward.3} parent=0 // pred_fallthru
    _

// kernel: rnn_model_forward.2
$region0: #{rnn_model_forward.2}
  #allocation0 [shape = 'u32[]', space=smem, size = 0x4, offset = 0x4, fixed_abs, tag = 'smem constant byte address 0x4 - core index']
  #allocation1 [shape = 'u32[144,128]{1,0:T(1,128)}', space=vmem, size = 0x12000, scoped, tag = 'internal scratch']
  #allocation2 [shape = 'bf16[128,512]{1,0:T(8,128)(2,1)}', space=vmem, size = 0x20000, scoped, tag = 'scratch operand']
  #allocation3 [shape = 'bf16[1,128,512]{2,1,0:T(8,128)(2,1)}', space=vmem, size = 0x20000, scoped, tag = 'scratch operand']
  #allocation4 [shape = 'bf16[2,128,512]{2,1,0:T(8,128)(2,1)}', space=vmem, size = 0x40000, scoped, tag = 'scratch operand']
  #allocation5 [shape = 'f32[64,512]{1,0:T(8,128)}', space=vmem, size = 0x20000, scoped, tag = 'scratch operand']
  #allocation6 [shape = 'bf16[64,128]{1,0:T(8,128)(2,1)}', space=vmem, size = 0x4000, scoped, tag = 'scratch operand']
  #allocation7 [shape = 'f32[2,8,128]{2,1,0:T(8,128)}', space=vmem, size = 0x2000, scoped, tag = 'scratch operand']
  #allocation8 [shape = 'f32[2,8,128]{2,1,0:T(8,128)}', space=vmem, size = 0x2000, scoped, tag = 'scratch operand']
  #allocation9 [shape = 's32[3]{0}', space=sflag, size = 0xc, scoped, tag = 'scratch operand']
  #allocation10 [shape = 's32[]', space=sflag, size = 0x4, offset = 0, fixed_abs, tag = 'sflag constant byte address 0x0 - dummy sync flag']
  #allocation11 [shape = 's32[]', space=sflag, size = 0x4, offset = 0, fixed_abs, tag = 'sflag constant byte address 0x0 - dummy sync flag']
  #allocation12 [shape = 's32[]', space=sflag, size = 0x4, offset = 0, fixed_abs, tag = 'sflag constant byte address 0x0 - dummy sync flag']
  #allocation13 [shape = 'u32[]', space=smem, size = 0x4, offset = 0x44, fixed_abs, tag = 'smem constant byte address 0x44 - assertion arg 0']
  #allocation14 [shape = 'u32[]', space=smem, size = 0x4, offset = 0x48, fixed_abs, tag = 'smem constant byte address 0x48 - assertion arg 1']
  #allocation15 [shape = 's32[]', space=sflag, size = 0x4, offset = 0, fixed_abs, tag = 'sflag constant byte address 0x0 - dummy sync flag']
  #allocation16 [shape = 's32[]', space=sflag, size = 0x4, offset = 0, fixed_abs, tag = 'sflag constant byte address 0x0 - dummy sync flag']
  %s0 = inlined_call_operand.vmem [shape: bf16[8,8,128], index: 0, kind: input, shape index: {}]
  %s1 = inlined_call_operand.vmem [shape: bf16[128,512], index: 1, kind: input, shape index: {}]
  %s2 = inlined_call_operand.hbm [shape: bf16[1,128,512], index: 2, kind: input, shape index: {}]
  %s3 = inlined_call_operand.hbm [shape: bf16[2,128,512], index: 3, kind: input, shape index: {}]
  %s4 = inlined_call_operand.vmem [shape: f32[2,1,512], index: 4, kind: input, shape index: {}]
  %s5 = inlined_call_operand.vmem [shape: f32[2,8,128], index: 5, kind: input, shape index: {}]
  %s6 = inlined_call_operand.vmem [shape: f32[2,8,128], index: 6, kind: input, shape index: {}]
  %s7 = inlined_call_operand.vmem [shape: bf16[8,8,128], index: 7, kind: output, shape index: {0}]
  %s8 = inlined_call_operand.vmem [shape: f32[2,8,128], index: 8, kind: output, shape index: {1}]
  %s9 = inlined_call_operand.vmem [shape: f32[2,8,128], index: 9, kind: output, shape index: {2}]
  %10 = xla_tuple %s7, %s8, %s9
  %s11 = sld [smem:[#allocation0]]
  $region92: #{rnn_model_forward.2} parent=0
    _
  %s13 = ssub.s32 1, %s11
  %s14 = scalar_select 0, %s13, %s11
  // Predicated region
  $region2: #{rnn_model_forward.2} parent=0 // pred_check
    _
  $region3: #{rnn_model_forward.2} parent=0 // pred_check_branch
    %16 = sbr.rel (0) target = $region5
  $region4: #{rnn_model_forward.2} parent=0 // pred_region
    _
  $region5: #{rnn_model_forward.2} parent=0 // pred_fallthru
    _
  // Predicated region
  $region6: #{rnn_model_forward.2} parent=0 // pred_check
    _
  $region7: #{rnn_model_forward.2} parent=0 // pred_check_branch
    %18 = sbr.rel (0) target = $region9
  $region8: #{rnn_model_forward.2} parent=0 // pred_region
    _
  $region9: #{rnn_model_forward.2} parent=0 // pred_fallthru
    _
  // Predicated region
  $region10: #{rnn_model_forward.2} parent=0 // pred_check
    _
  $region11: #{rnn_model_forward.2} parent=0 // pred_check_branch
    %20 = sbr.rel (0) target = $region13
  $region12: #{rnn_model_forward.2} parent=0 // pred_region
    _
  $region13: #{rnn_model_forward.2} parent=0 // pred_fallthru
    _
  // Predicated region
  $region14: #{rnn_model_forward.2} parent=0 // pred_check
    _
  $region15: #{rnn_model_forward.2} parent=0 // pred_check_branch
    %22 = sbr.rel (0) target = $region17
  $region16: #{rnn_model_forward.2} parent=0 // pred_region
    _
  $region17: #{rnn_model_forward.2} parent=0 // pred_fallthru
    _
  %p24 = scmp.eq.s32.totalorder 0, 0
  // Predicated region
  $region18: #{rnn_model_forward.2} parent=0 // pred_check
    %p25 = pneg %p24
  $region19: #{rnn_model_forward.2} parent=0 // pred_check_branch
    %27 = sbr.rel (%p25) target = $region21
  $region20: #{rnn_model_forward.2} parent=0 // pred_region
    %p29 = scmp.lt.u32.totalorder 256, 8
    %p30 = pneg %p29
    // Predicated region
    $region22: #{rnn_model_forward.2} parent=20 // pred_check
      _
    $region23: #{rnn_model_forward.2} parent=20 // pred_check_branch
      %32 = sbr.rel (%p29) target = $region25
    $region24: #{rnn_model_forward.2} parent=20 // pred_region
      %s48 = sand.u32 256, 7
      %p49 = scmp.eq.s32.totalorder %s48, 0
      // Predicated region
      $region37: #{rnn_model_forward.2} parent=24 // pred_check
        %p50 = pneg %p49
      $region38: #{rnn_model_forward.2} parent=24 // pred_check_branch
        %52 = sbr.rel (%p50) target = $region40
      $region39: #{rnn_model_forward.2} parent=24 // pred_region
        loop: start=0, step=1, limit=1
        $region41: #{rnn_model_forward.2} parent=39 // loop_pre_header
          _
        $region42: #{rnn_model_forward.2} parent=39 // loop_header
          %s54 = sphi 0, %s58
          %p55 = scmp.ge.s32.totalorder %s54, 1
          %s59 = sphi %s1, %s1
          %s60 = sphi [#allocation2], [#allocation2]
        $region43: #{rnn_model_forward.2} parent=39 // loop_header_branch
          %57 = sbr.rel (%p55) target = $region47
        $region44: #{rnn_model_forward.2} parent=39 // loop_body
          %v61 = vld [vmem:[%s59] sm:$0xff]
          %62 = vst [vmem:[%s60] sm:$0xff] %v61
          %v63 = vld [vmem:[%s59 + $0x8] sm:$0xff]
          %64 = vst [vmem:[%s60 + $0x8] sm:$0xff] %v63
          %v65 = vld [vmem:[%s59 + $0x10] sm:$0xff]
          %66 = vst [vmem:[%s60 + $0x10] sm:$0xff] %v65
          %v67 = vld [vmem:[%s59 + $0x18] sm:$0xff]
          %68 = vst [vmem:[%s60 + $0x18] sm:$0xff] %v67
          %v69 = vld [vmem:[%s59 + $0x20] sm:$0xff]
          %70 = vst [vmem:[%s60 + $0x20] sm:$0xff] %v69
          %v71 = vld [vmem:[%s59 + $0x28] sm:$0xff]
          %72 = vst [vmem:[%s60 + $0x28] sm:$0xff] %v71
          %v73 = vld [vmem:[%s59 + $0x30] sm:$0xff]
          %74 = vst [vmem:[%s60 + $0x30] sm:$0xff] %v73
          %v75 = vld [vmem:[%s59 + $0x38] sm:$0xff]
          %76 = vst [vmem:[%s60 + $0x38] sm:$0xff] %v75
          %v77 = vld [vmem:[%s59 + $0x40] sm:$0xff]
          %78 = vst [vmem:[%s60 + $0x40] sm:$0xff] %v77
          %v79 = vld [vmem:[%s59 + $0x48] sm:$0xff]
          %80 = vst [vmem:[%s60 + $0x48] sm:$0xff] %v79
          %v81 = vld [vmem:[%s59 + $0x50] sm:$0xff]
          %82 = vst [vmem:[%s60 + $0x50] sm:$0xff] %v81
          %v83 = vld [vmem:[%s59 + $0x58] sm:$0xff]
          %84 = vst [vmem:[%s60 + $0x58] sm:$0xff] %v83
          %v85 = vld [vmem:[%s59 + $0x60] sm:$0xff]
          %86 = vst [vmem:[%s60 + $0x60] sm:$0xff] %v85
          %v87 = vld [vmem:[%s59 + $0x68] sm:$0xff]
          %88 = vst [vmem:[%s60 + $0x68] sm:$0xff] %v87
          %v89 = vld [vmem:[%s59 + $0x70] sm:$0xff]
          %90 = vst [vmem:[%s60 + $0x70] sm:$0xff] %v89
          %v91 = vld [vmem:[%s59 + $0x78] sm:$0xff]
          %92 = vst [vmem:[%s60 + $0x78] sm:$0xff] %v91
          %v93 = vld [vmem:[%s59 + $0x80] sm:$0xff]
          %94 = vst [vmem:[%s60 + $0x80] sm:$0xff] %v93
          %v95 = vld [vmem:[%s59 + $0x88] sm:$0xff]
          %96 = vst [vmem:[%s60 + $0x88] sm:$0xff] %v95
          %v97 = vld [vmem:[%s59 + $0x90] sm:$0xff]
          %98 = vst [vmem:[%s60 + $0x90] sm:$0xff] %v97
          %v99 = vld [vmem:[%s59 + $0x98] sm:$0xff]
          %100 = vst [vmem:[%s60 + $0x98] sm:$0xff] %v99
          %v101 = vld [vmem:[%s59 + $0xa0] sm:$0xff]
          %102 = vst [vmem:[%s60 + $0xa0] sm:$0xff] %v101
          %v103 = vld [vmem:[%s59 + $0xa8] sm:$0xff]
          %104 = vst [vmem:[%s60 + $0xa8] sm:$0xff] %v103
          %v105 = vld [vmem:[%s59 + $0xb0] sm:$0xff]
          %106 = vst [vmem:[%s60 + $0xb0] sm:$0xff] %v105
          %v107 = vld [vmem:[%s59 + $0xb8] sm:$0xff]
          %108 = vst [vmem:[%s60 + $0xb8] sm:$0xff] %v107
          %v109 = vld [vmem:[%s59 + $0xc0] sm:$0xff]
          %110 = vst [vmem:[%s60 + $0xc0] sm:$0xff] %v109
          %v111 = vld [vmem:[%s59 + $0xc8] sm:$0xff]
          %112 = vst [vmem:[%s60 + $0xc8] sm:$0xff] %v111
          %v113 = vld [vmem:[%s59 + $0xd0] sm:$0xff]
          %114 = vst [vmem:[%s60 + $0xd0] sm:$0xff] %v113
          %v115 = vld [vmem:[%s59 + $0xd8] sm:$0xff]
          %116 = vst [vmem:[%s60 + $0xd8] sm:$0xff] %v115
          %v117 = vld [vmem:[%s59 + $0xe0] sm:$0xff]
          %118 = vst [vmem:[%s60 + $0xe0] sm:$0xff] %v117
          %v119 = vld [vmem:[%s59 + $0xe8] sm:$0xff]
          %120 = vst [vmem:[%s60 + $0xe8] sm:$0xff] %v119
          %v121 = vld [vmem:[%s59 + $0xf0] sm:$0xff]
          %122 = vst [vmem:[%s60 + $0xf0] sm:$0xff] %v121
          %v123 = vld [vmem:[%s59 + $0xf8] sm:$0xff]
          %124 = vst [vmem:[%s60 + $0xf8] sm:$0xff] %v123
        $region45: #{rnn_model_forward.2} parent=39 // loop_footer
          %s58 = sadd.s32 1, %s54
        $region46: #{rnn_model_forward.2} parent=39 // loop_footer_branch
          %53 = sbr.rel target = $region42
        $region47: #{rnn_model_forward.2} parent=39 // loop_exit
          _
      $region40: #{rnn_model_forward.2} parent=24 // pred_fallthru
        _
      %p125 = pneg %p49
      // Predicated region
      $region48: #{rnn_model_forward.2} parent=24 // pred_check
        _
      $region49: #{rnn_model_forward.2} parent=24 // pred_check_branch
        %127 = sbr.rel (%p49) target = $region51
      $region50: #{rnn_model_forward.2} parent=24 // pred_region
        %s128 = sand.u32 256, 7
      $region51: #{rnn_model_forward.2} parent=24 // pred_fallthru
        _
    $region25: #{rnn_model_forward.2} parent=20 // pred_fallthru
      _
    // Predicated region
    $region26: #{rnn_model_forward.2} parent=20 // pred_check
      %p33 = pneg %p29
    $region27: #{rnn_model_forward.2} parent=20 // pred_check_branch
      %35 = sbr.rel (%p33) target = $region29
    $region28: #{rnn_model_forward.2} parent=20 // pred_region
      %s36 = sshll.u32 1, 256
      %s37 = ssub.s32 %s36, 1
      loop: start=0, step=1, limit=1
      $region30: #{rnn_model_forward.2} parent=28 // loop_pre_header
        _
      $region31: #{rnn_model_forward.2} parent=28 // loop_header
        %s39 = sphi 0, %s43
        %p40 = scmp.ge.s32.totalorder %s39, 1
        %s44 = sphi %s1, %s1
        %s45 = sphi [#allocation2], [#allocation2]
      $region32: #{rnn_model_forward.2} parent=28 // loop_header_branch
        %42 = sbr.rel (%p40) target = $region36
      $region33: #{rnn_model_forward.2} parent=28 // loop_body
        %v46 = vld [vmem:[%s44] sm:%s37]
        %47 = vst [vmem:[%s45] sm:%s37] %v46
      $region34: #{rnn_model_forward.2} parent=28 // loop_footer
        %s43 = sadd.s32 1, %s39
      $region35: #{rnn_model_forward.2} parent=28 // loop_footer_branch
        %38 = sbr.rel target = $region31
      $region36: #{rnn_model_forward.2} parent=28 // loop_exit
        _
    $region29: #{rnn_model_forward.2} parent=20 // pred_fallthru
      _
    // Predicated region
    $region52: #{rnn_model_forward.2} parent=20 // pred_check
      _
    $region53: #{rnn_model_forward.2} parent=20 // pred_check_branch
      %131 = sbr.rel (0) target = $region55
    $region54: #{rnn_model_forward.2} parent=20 // pred_region
      %132 = vsyncadd [#allocation9], 4096
    $region55: #{rnn_model_forward.2} parent=20 // pred_fallthru
      _
    %s133 = scalar_lea.sflag [#allocation9], 2
    // Predicated region
    $region56: #{rnn_model_forward.2} parent=20 // pred_check
      _
    $region57: #{rnn_model_forward.2} parent=20 // pred_check_branch
      %135 = sbr.rel target = $region59
    $region58: #{rnn_model_forward.2} parent=20 // pred_region
      %136 = sst [smem:[#allocation13]] [#allocation12]
      %137 = sst [smem:[#allocation14]] [#allocation11]
    $region59: #{rnn_model_forward.2} parent=20 // pred_fallthru
      _
    %139 = shalt.err (0)
    %s141 = sshll.u32 [#allocation4], 4
    %s142 = int_to_ptr.vmem [resolvable:$true] %s141
    %144 = dma.hbm_to_vmem [thread:$0]  %s3, 8192, %s142, %s133
    %s145 = scalar_lea.sflag [#allocation9], 1
    // Predicated region
    $region60: #{rnn_model_forward.2} parent=20 // pred_check
      _
    $region61: #{rnn_model_forward.2} parent=20 // pred_check_branch
      %147 = sbr.rel target = $region63
    $region62: #{rnn_model_forward.2} parent=20 // pred_region
      %148 = sst [smem:[#allocation13]] [#allocation16]
      %149 = sst [smem:[#allocation14]] [#allocation15]
    $region63: #{rnn_model_forward.2} parent=20 // pred_fallthru
      _
    %151 = shalt.err (0)
    %s153 = sshll.u32 [#allocation3], 4
    %s154 = int_to_ptr.vmem [resolvable:$true] %s153
    %156 = dma.hbm_to_vmem [thread:$0]  %s2, 4096, %s154, %s145
    %v157 = vld [vmem:[%s5] sm:$0xff]
    %v158 = vld [vmem:[%s5 + $0x8] sm:$0xff]
    %159 = vst [vmem:[#allocation7] sm:$0xff] %v157
    %160 = vst [vmem:[#allocation7 + $0x8] sm:$0xff] %v158
    %v161 = vld [vmem:[%s6] sm:$0xff]
    %v162 = vld [vmem:[%s6 + $0x8] sm:$0xff]
    %163 = vst [vmem:[#allocation8] sm:$0xff] %v161
    %164 = vst [vmem:[#allocation8 + $0x8] sm:$0xff] %v162
    %s165 = smul.u32 4, 16
    %s166 = smul.u32 %s165, 4
    %s167 = sshll.u32 %s166, 4
    %168 = dma.done [#allocation9], %s167
    %s169 = smul.u32 4, 2
    %s170 = smul.u32 %s169, 16
    %s171 = smul.u32 %s170, 4
    %s172 = sshll.u32 %s171, 4
    %173 = dma.done %s133, %s172
    %s174 = smul.u32 4, 1
    %s175 = smul.u32 %s174, 16
    %s176 = smul.u32 %s175, 4
    %s177 = sshll.u32 %s176, 4
    %178 = dma.done %s145, %s177
  $region21: #{rnn_model_forward.2} parent=0 // pred_fallthru
    _
  %v179 = vld [vmem:[%s0] sm:$0xf]
  %v180 = vld [vmem:[%s0 + $0x4] sm:$0xf]
  %v181 = vld [vmem:[%s0 + $0x8] sm:$0xf]
  %v182 = vld [vmem:[%s0 + $0xc] sm:$0xf]
  %v183 = vld [vmem:[%s0 + $0x10] sm:$0xf]
  %v184 = vld [vmem:[%s0 + $0x14] sm:$0xf]
  %v185 = vld [vmem:[%s0 + $0x18] sm:$0xf]
  %v186 = vld [vmem:[%s0 + $0x1c] sm:$0xf]
  %v187 = vld [vmem:[#allocation2] sm:$0xff]
  %v188 = vld [vmem:[#allocation2 + $0x8] sm:$0xff]
  %v189 = vld [vmem:[#allocation2 + $0x10] sm:$0xff]
  %v190 = vld [vmem:[#allocation2 + $0x18] sm:$0xff]
  %v191 = vld [vmem:[#allocation2 + $0x20] sm:$0xff]
  %v192 = vld [vmem:[#allocation2 + $0x28] sm:$0xff]
  %v193 = vld [vmem:[#allocation2 + $0x30] sm:$0xff]
  %v194 = vld [vmem:[#allocation2 + $0x38] sm:$0xff]
  %v195 = vld [vmem:[#allocation2 + $0x40] sm:$0xff]
  %v196 = vld [vmem:[#allocation2 + $0x48] sm:$0xff]
  %v197 = vld [vmem:[#allocation2 + $0x50] sm:$0xff]
  %v198 = vld [vmem:[#allocation2 + $0x58] sm:$0xff]
  %v199 = vld [vmem:[#allocation2 + $0x60] sm:$0xff]
  %v200 = vld [vmem:[#allocation2 + $0x68] sm:$0xff]
  %v201 = vld [vmem:[#allocation2 + $0x70] sm:$0xff]
  %v202 = vld [vmem:[#allocation2 + $0x78] sm:$0xff]
  %v203 = vld [vmem:[#allocation2 + $0x80] sm:$0xff]
  %v204 = vld [vmem:[#allocation2 + $0x88] sm:$0xff]
  %v205 = vld [vmem:[#allocation2 + $0x90] sm:$0xff]
  %v206 = vld [vmem:[#allocation2 + $0x98] sm:$0xff]
  %v207 = vld [vmem:[#allocation2 + $0xa0] sm:$0xff]
  %v208 = vld [vmem:[#allocation2 + $0xa8] sm:$0xff]
  %v209 = vld [vmem:[#allocation2 + $0xb0] sm:$0xff]
  %v210 = vld [vmem:[#allocation2 + $0xb8] sm:$0xff]
  %v211 = vld [vmem:[#allocation2 + $0xc0] sm:$0xff]
  %v212 = vld [vmem:[#allocation2 + $0xc8] sm:$0xff]
  %v213 = vld [vmem:[#allocation2 + $0xd0] sm:$0xff]
  %v214 = vld [vmem:[#allocation2 + $0xd8] sm:$0xff]
  %v215 = vld [vmem:[#allocation2 + $0xe0] sm:$0xff]
  %v216 = vld [vmem:[#allocation2 + $0xe8] sm:$0xff]
  %v217 = vld [vmem:[#allocation2 + $0xf0] sm:$0xff]
  %v218 = vld [vmem:[#allocation2 + $0xf8] sm:$0xff]
  %v227 = vunpack.c.l.b16 %v179
  %v228 = vunpack.c.l.b16 %v180
  %v229 = vunpack.c.l.b16 %v181
  %v230 = vunpack.c.l.b16 %v182
  %v231 = vunpack.c.l.b16 %v183
  %v232 = vunpack.c.l.b16 %v184
  %v233 = vunpack.c.l.b16 %v185
  %v234 = vunpack.c.l.b16 %v186
  %v235 = vpack.c.b16 %v228, %v227
  %v236 = vpack.c.b16 %v230, %v229
  %v237 = vpack.c.b16 %v232, %v231
  %v238 = vpack.c.b16 %v234, %v233
  %v275 = vunpack.c.l.b16 %v187
  %v276 = vunpack.c.h.b16 %v187
  %v277 = vunpack.c.l.b16 %v188
  %v278 = vunpack.c.h.b16 %v188
  %v279 = vunpack.c.l.b16 %v189
  %v280 = vunpack.c.h.b16 %v189
  %v281 = vunpack.c.l.b16 %v190
  %v282 = vunpack.c.h.b16 %v190
  %v283 = vunpack.c.l.b16 %v191
  %v284 = vunpack.c.h.b16 %v191
  %v285 = vunpack.c.l.b16 %v192
  %v286 = vunpack.c.h.b16 %v192
  %v287 = vunpack.c.l.b16 %v193
  %v288 = vunpack.c.h.b16 %v193
  %v289 = vunpack.c.l.b16 %v194
  %v290 = vunpack.c.h.b16 %v194
  %v291 = vunpack.c.l.b16 %v195
  %v292 = vunpack.c.h.b16 %v195
  %v293 = vunpack.c.l.b16 %v196
  %v294 = vunpack.c.h.b16 %v196
  %v295 = vunpack.c.l.b16 %v197
  %v296 = vunpack.c.h.b16 %v197
  %v297 = vunpack.c.l.b16 %v198
  %v298 = vunpack.c.h.b16 %v198
  %v299 = vunpack.c.l.b16 %v199
  %v300 = vunpack.c.h.b16 %v199
  %v301 = vunpack.c.l.b16 %v200
  %v302 = vunpack.c.h.b16 %v200
  %v303 = vunpack.c.l.b16 %v201
  %v304 = vunpack.c.h.b16 %v201
  %v305 = vunpack.c.l.b16 %v202
  %v306 = vunpack.c.h.b16 %v202
  %v307 = vunpack.c.l.b16 %v203
  %v308 = vunpack.c.h.b16 %v203
  %v309 = vunpack.c.l.b16 %v204
  %v310 = vunpack.c.h.b16 %v204
  %v311 = vunpack.c.l.b16 %v205
  %v312 = vunpack.c.h.b16 %v205
  %v313 = vunpack.c.l.b16 %v206
  %v314 = vunpack.c.h.b16 %v206
  %v315 = vunpack.c.l.b16 %v207
  %v316 = vunpack.c.h.b16 %v207
  %v317 = vunpack.c.l.b16 %v208
  %v318 = vunpack.c.h.b16 %v208
  %v319 = vunpack.c.l.b16 %v209
  %v320 = vunpack.c.h.b16 %v209
  %v321 = vunpack.c.l.b16 %v210
  %v322 = vunpack.c.h.b16 %v210
  %v323 = vunpack.c.l.b16 %v211
  %v324 = vunpack.c.h.b16 %v211
  %v325 = vunpack.c.l.b16 %v212
  %v326 = vunpack.c.h.b16 %v212
  %v327 = vunpack.c.l.b16 %v213
  %v328 = vunpack.c.h.b16 %v213
  %v329 = vunpack.c.l.b16 %v214
  %v330 = vunpack.c.h.b16 %v214
  %v331 = vunpack.c.l.b16 %v215
  %v332 = vunpack.c.h.b16 %v215
  %v333 = vunpack.c.l.b16 %v216
  %v334 = vunpack.c.h.b16 %v216
  %v335 = vunpack.c.l.b16 %v217
  %v336 = vunpack.c.h.b16 %v217
  %v337 = vunpack.c.l.b16 %v218
  %v338 = vunpack.c.h.b16 %v218
  %v339 = vpack.c.b16 %v279, %v275
  %v340 = vpack.c.b16 %v280, %v276
  %v341 = vpack.c.b16 %v281, %v277
  %v342 = vpack.c.b16 %v282, %v278
  %v343 = vpack.c.b16 %v287, %v283
  %v344 = vpack.c.b16 %v288, %v284
  %v345 = vpack.c.b16 %v289, %v285
  %v346 = vpack.c.b16 %v290, %v286
  %v347 = vpack.c.b16 %v295, %v291
  %v348 = vpack.c.b16 %v296, %v292
  %v349 = vpack.c.b16 %v297, %v293
  %v350 = vpack.c.b16 %v298, %v294
  %v351 = vpack.c.b16 %v303, %v299
  %v352 = vpack.c.b16 %v304, %v300
  %v353 = vpack.c.b16 %v305, %v301
  %v354 = vpack.c.b16 %v306, %v302
  %v355 = vpack.c.b16 %v311, %v307
  %v356 = vpack.c.b16 %v312, %v308
  %v357 = vpack.c.b16 %v313, %v309
  %v358 = vpack.c.b16 %v314, %v310
  %v359 = vpack.c.b16 %v319, %v315
  %v360 = vpack.c.b16 %v320, %v316
  %v361 = vpack.c.b16 %v321, %v317
  %v362 = vpack.c.b16 %v322, %v318
  %v363 = vpack.c.b16 %v327, %v323
  %v364 = vpack.c.b16 %v328, %v324
  %v365 = vpack.c.b16 %v329, %v325
  %v366 = vpack.c.b16 %v330, %v326
  %v367 = vpack.c.b16 %v335, %v331
  %v368 = vpack.c.b16 %v336, %v332
  %v369 = vpack.c.b16 %v337, %v333
  %v370 = vpack.c.b16 %v338, %v334
  %403 = vmatprep.subr.bf16.mxu0 %v368
  %404 = vmatpush1.bf16.msra.mxu0 %v367
  %405 = vmatprep.subr.bf16.mxu0 %v364
  %406 = vmatpush1.bf16.msra.mxu0 %v363
  %407 = vmatprep.subr.bf16.mxu0 %v360
  %408 = vmatpush1.bf16.msra.mxu0 %v359
  %409 = vmatprep.subr.bf16.mxu0 %v356
  %410 = vmatpush1.bf16.msra.mxu0 %v355
  %411 = vmatprep.subr.bf16.mxu0 %v352
  %412 = vmatpush1.bf16.msra.mxu0 %v351
  %413 = vmatprep.subr.bf16.mxu0 %v348
  %414 = vmatpush1.bf16.msra.mxu0 %v347
  %415 = vmatprep.subr.bf16.mxu0 %v344
  %416 = vmatpush1.bf16.msra.mxu0 %v343
  %417 = vmatprep.subr.bf16.mxu0 %v340
  %418 = vmatpush1.bf16.msra.mxu0 %v339
  %419 = vmatprep.subr.bf16.mxu0 0
  %420 = vmatpush2.bf16.msra.mxu0 0
  %421 = vmatprep.subr.bf16.mxu0 0
  %422 = vmatpush2.bf16.msra.mxu0 0
  %423 = vmatprep.subr.bf16.mxu0 0
  %424 = vmatpush2.bf16.msra.mxu0 0
  %425 = vmatprep.subr.bf16.mxu0 0
  %426 = vmatpush2.bf16.msra.mxu0 0
  %427 = vmatprep.subr.bf16.mxu0 0
  %428 = vmatpush2.bf16.msra.mxu0 0
  %429 = vmatprep.subr.bf16.mxu0 0
  %430 = vmatpush2.bf16.msra.mxu0 0
  %431 = vmatprep.subr.bf16.mxu0 0
  %432 = vmatpush2.bf16.msra.mxu0 0
  %433 = vmatprep.subr.bf16.mxu0 0
  %434 = vmatpush2.bf16.msra.mxu0 0
  %435 = vmatprep.mubr.bf16.mxu0 0
  %436 = vmatmul.mubr.bf16.gmra.mxu0 %v235
  %v437 = vpop.f32.mrf.mxu0
  %v438 = vadd.f32 0.0, %v437
  %v439 = vpop.f32.mrf.mxu0
  %v440 = vadd.f32 0.0, %v439
  %v441 = vpop.f32.mrf.mxu0
  %v442 = vadd.f32 0.0, %v441
  %v443 = vpop.f32.mrf.mxu0
  %v444 = vadd.f32 0.0, %v443
  %445 = vmatprep.mubr.bf16.mxu0 0
  %446 = vmatmul.mubr.bf16.gmra.mxu0 %v236
  %v447 = vpop.f32.mrf.mxu0
  %v448 = vadd.f32 0.0, %v447
  %v449 = vpop.f32.mrf.mxu0
  %v450 = vadd.f32 0.0, %v449
  %v451 = vpop.f32.mrf.mxu0
  %v452 = vadd.f32 0.0, %v451
  %v453 = vpop.f32.mrf.mxu0
  %v454 = vadd.f32 0.0, %v453
  %455 = vmatprep.mubr.bf16.mxu0 0
  %456 = vmatmul.mubr.bf16.gmra.mxu0 %v237
  %v457 = vpop.f32.mrf.mxu0
  %v458 = vadd.f32 0.0, %v457
  %v459 = vpop.f32.mrf.mxu0
  %v460 = vadd.f32 0.0, %v459
  %v461 = vpop.f32.mrf.mxu0
  %v462 = vadd.f32 0.0, %v461
  %v463 = vpop.f32.mrf.mxu0
  %v464 = vadd.f32 0.0, %v463
  %465 = vmatprep.mubr.bf16.mxu0 0
  %466 = vmatmul.mubr.bf16.gmra.mxu0 %v238
  %v467 = vpop.f32.mrf.mxu0
  %v468 = vadd.f32 0.0, %v467
  %v469 = vpop.f32.mrf.mxu0
  %v470 = vadd.f32 0.0, %v469
  %v471 = vpop.f32.mrf.mxu0
  %v472 = vadd.f32 0.0, %v471
  %v473 = vpop.f32.mrf.mxu0
  %v474 = vadd.f32 0.0, %v473
  %475 = vdwg.mxu0
  %476 = vmatprep.subr.bf16.mxu0 %v370
  %477 = vmatpush1.bf16.msra.mxu0 %v369
  %478 = vmatprep.subr.bf16.mxu0 %v366
  %479 = vmatpush1.bf16.msra.mxu0 %v365
  %480 = vmatprep.subr.bf16.mxu0 %v362
  %481 = vmatpush1.bf16.msra.mxu0 %v361
  %482 = vmatprep.subr.bf16.mxu0 %v358
  %483 = vmatpush1.bf16.msra.mxu0 %v357
  %484 = vmatprep.subr.bf16.mxu0 %v354
  %485 = vmatpush1.bf16.msra.mxu0 %v353
  %486 = vmatprep.subr.bf16.mxu0 %v350
  %487 = vmatpush1.bf16.msra.mxu0 %v349
  %488 = vmatprep.subr.bf16.mxu0 %v346
  %489 = vmatpush1.bf16.msra.mxu0 %v345
  %490 = vmatprep.subr.bf16.mxu0 %v342
  %491 = vmatpush1.bf16.msra.mxu0 %v341
  %492 = vmatprep.subr.bf16.mxu0 0
  %493 = vmatpush2.bf16.msra.mxu0 0
  %494 = vmatprep.subr.bf16.mxu0 0
  %495 = vmatpush2.bf16.msra.mxu0 0
  %496 = vmatprep.subr.bf16.mxu0 0
  %497 = vmatpush2.bf16.msra.mxu0 0
  %498 = vmatprep.subr.bf16.mxu0 0
  %499 = vmatpush2.bf16.msra.mxu0 0
  %500 = vmatprep.subr.bf16.mxu0 0
  %501 = vmatpush2.bf16.msra.mxu0 0
  %502 = vmatprep.subr.bf16.mxu0 0
  %503 = vmatpush2.bf16.msra.mxu0 0
  %504 = vmatprep.subr.bf16.mxu0 0
  %505 = vmatpush2.bf16.msra.mxu0 0
  %506 = vmatprep.subr.bf16.mxu0 0
  %507 = vmatpush2.bf16.msra.mxu0 0
  %508 = vmatprep.mubr.bf16.mxu0 0
  %509 = vmatmul.mubr.bf16.gmra.mxu0 %v235
  %v510 = vpop.f32.mrf.mxu0
  %v511 = vadd.f32 0.0, %v510
  %v512 = vpop.f32.mrf.mxu0
  %v513 = vadd.f32 0.0, %v512
  %v514 = vpop.f32.mrf.mxu0
  %v515 = vadd.f32 0.0, %v514
  %v516 = vpop.f32.mrf.mxu0
  %v517 = vadd.f32 0.0, %v516
  %518 = vmatprep.mubr.bf16.mxu0 0
  %519 = vmatmul.mubr.bf16.gmra.mxu0 %v236
  %v520 = vpop.f32.mrf.mxu0
  %v521 = vadd.f32 0.0, %v520
  %v522 = vpop.f32.mrf.mxu0
  %v523 = vadd.f32 0.0, %v522
  %v524 = vpop.f32.mrf.mxu0
  %v525 = vadd.f32 0.0, %v524
  %v526 = vpop.f32.mrf.mxu0
  %v527 = vadd.f32 0.0, %v526
  %528 = vmatprep.mubr.bf16.mxu0 0
  %529 = vmatmul.mubr.bf16.gmra.mxu0 %v237
  %v530 = vpop.f32.mrf.mxu0
  %v531 = vadd.f32 0.0, %v530
  %v532 = vpop.f32.mrf.mxu0
  %v533 = vadd.f32 0.0, %v532
  %v534 = vpop.f32.mrf.mxu0
  %v535 = vadd.f32 0.0, %v534
  %v536 = vpop.f32.mrf.mxu0
  %v537 = vadd.f32 0.0, %v536
  %538 = vmatprep.mubr.bf16.mxu0 0
  %539 = vmatmul.mubr.bf16.gmra.mxu0 %v238
  %v540 = vpop.f32.mrf.mxu0
  %v541 = vadd.f32 0.0, %v540
  %v542 = vpop.f32.mrf.mxu0
  %v543 = vadd.f32 0.0, %v542
  %v544 = vpop.f32.mrf.mxu0
  %v545 = vadd.f32 0.0, %v544
  %v546 = vpop.f32.mrf.mxu0
  %v547 = vadd.f32 0.0, %v546
  %548 = vdwg.mxu0
  %549 = vst [vmem:[#allocation5] sm:$0xff] %v438
  %550 = vst [vmem:[#allocation5 + $0x8] sm:$0xff] %v440
  %551 = vst [vmem:[#allocation5 + $0x10] sm:$0xff] %v511
  %552 = vst [vmem:[#allocation5 + $0x18] sm:$0xff] %v513
  %553 = vst [vmem:[#allocation5 + $0x20] sm:$0xff] %v442
  %554 = vst [vmem:[#allocation5 + $0x28] sm:$0xff] %v444
  %555 = vst [vmem:[#allocation5 + $0x30] sm:$0xff] %v515
  %556 = vst [vmem:[#allocation5 + $0x38] sm:$0xff] %v517
  %557 = vst [vmem:[#allocation5 + $0x40] sm:$0xff] %v448
  %558 = vst [vmem:[#allocation5 + $0x48] sm:$0xff] %v450
  %559 = vst [vmem:[#allocation5 + $0x50] sm:$0xff] %v521
  %560 = vst [vmem:[#allocation5 + $0x58] sm:$0xff] %v523
  %561 = vst [vmem:[#allocation5 + $0x60] sm:$0xff] %v452
  %562 = vst [vmem:[#allocation5 + $0x68] sm:$0xff] %v454
  %563 = vst [vmem:[#allocation5 + $0x70] sm:$0xff] %v525
  %564 = vst [vmem:[#allocation5 + $0x78] sm:$0xff] %v527
  %565 = vst [vmem:[#allocation5 + $0x80] sm:$0xff] %v458
  %566 = vst [vmem:[#allocation5 + $0x88] sm:$0xff] %v460
  %567 = vst [vmem:[#allocation5 + $0x90] sm:$0xff] %v531
  %568 = vst [vmem:[#allocation5 + $0x98] sm:$0xff] %v533
  %569 = vst [vmem:[#allocation5 + $0xa0] sm:$0xff] %v462
  %570 = vst [vmem:[#allocation5 + $0xa8] sm:$0xff] %v464
  %571 = vst [vmem:[#allocation5 + $0xb0] sm:$0xff] %v535
  %572 = vst [vmem:[#allocation5 + $0xb8] sm:$0xff] %v537
  %573 = vst [vmem:[#allocation5 + $0xc0] sm:$0xff] %v468
  %574 = vst [vmem:[#allocation5 + $0xc8] sm:$0xff] %v470
  %575 = vst [vmem:[#allocation5 + $0xd0] sm:$0xff] %v541
  %576 = vst [vmem:[#allocation5 + $0xd8] sm:$0xff] %v543
  %577 = vst [vmem:[#allocation5 + $0xe0] sm:$0xff] %v472
  %578 = vst [vmem:[#allocation5 + $0xe8] sm:$0xff] %v474
  %579 = vst [vmem:[#allocation5 + $0xf0] sm:$0xff] %v545
  %580 = vst [vmem:[#allocation5 + $0xf8] sm:$0xff] %v547
  %v581 = vld [vmem:[#allocation4] sm:$0xff]
  %v582 = vld [vmem:[#allocation4 + $0x8] sm:$0xff]
  %v583 = vld [vmem:[#allocation4 + $0x10] sm:$0xff]
  %v584 = vld [vmem:[#allocation4 + $0x18] sm:$0xff]
  %v585 = vld [vmem:[#allocation4 + $0x20] sm:$0xff]
  %v586 = vld [vmem:[#allocation4 + $0x28] sm:$0xff]
  %v587 = vld [vmem:[#allocation4 + $0x30] sm:$0xff]
  %v588 = vld [vmem:[#allocation4 + $0x38] sm:$0xff]
  %v589 = vld [vmem:[#allocation4 + $0x40] sm:$0xff]
  %v590 = vld [vmem:[#allocation4 + $0x48] sm:$0xff]
  %v591 = vld [vmem:[#allocation4 + $0x50] sm:$0xff]
  %v592 = vld [vmem:[#allocation4 + $0x58] sm:$0xff]
  %v593 = vld [vmem:[#allocation4 + $0x60] sm:$0xff]
  %v594 = vld [vmem:[#allocation4 + $0x68] sm:$0xff]
  %v595 = vld [vmem:[#allocation4 + $0x70] sm:$0xff]
  %v596 = vld [vmem:[#allocation4 + $0x78] sm:$0xff]
  %v597 = vld [vmem:[#allocation4 + $0x80] sm:$0xff]
  %v598 = vld [vmem:[#allocation4 + $0x88] sm:$0xff]
  %v599 = vld [vmem:[#allocation4 + $0x90] sm:$0xff]
  %v600 = vld [vmem:[#allocation4 + $0x98] sm:$0xff]
  %v601 = vld [vmem:[#allocation4 + $0xa0] sm:$0xff]
  %v602 = vld [vmem:[#allocation4 + $0xa8] sm:$0xff]
  %v603 = vld [vmem:[#allocation4 + $0xb0] sm:$0xff]
  %v604 = vld [vmem:[#allocation4 + $0xb8] sm:$0xff]
  %v605 = vld [vmem:[#allocation4 + $0xc0] sm:$0xff]
  %v606 = vld [vmem:[#allocation4 + $0xc8] sm:$0xff]
  %v607 = vld [vmem:[#allocation4 + $0xd0] sm:$0xff]
  %v608 = vld [vmem:[#allocation4 + $0xd8] sm:$0xff]
  %v609 = vld [vmem:[#allocation4 + $0xe0] sm:$0xff]
  %v610 = vld [vmem:[#allocation4 + $0xe8] sm:$0xff]
  %v611 = vld [vmem:[#allocation4 + $0xf0] sm:$0xff]
  %v612 = vld [vmem:[#allocation4 + $0xf8] sm:$0xff]
  %v613 = vld [vmem:[%s4] sm:$0xf]
  %v614 = vld [vmem:[#allocation7] sm:$0xff]
  %v615 = vld [vmem:[#allocation8] sm:$0xff]
  %s616 = smul.u32 0, 4
  %s617 = smul.addr %s616, 8
  %s618 = scalar_lea.vmem [#allocation5], %s617
  %v619 = vld [vmem:[%s618] sm:$0xff]
  %v620 = vld [vmem:[%s618 + $0x8] sm:$0xff]
  %v621 = vld [vmem:[%s618 + $0x10] sm:$0xff]
  %v622 = vld [vmem:[%s618 + $0x18] sm:$0xff]
  %v623 = vpack.c.bf16 %v614, %v614
  %v656 = vunpack.c.l.b16 %v581
  %v657 = vunpack.c.h.b16 %v581
  %v658 = vunpack.c.l.b16 %v582
  %v659 = vunpack.c.h.b16 %v582
  %v660 = vunpack.c.l.b16 %v583
  %v661 = vunpack.c.h.b16 %v583
  %v662 = vunpack.c.l.b16 %v584
  %v663 = vunpack.c.h.b16 %v584
  %v664 = vunpack.c.l.b16 %v585
  %v665 = vunpack.c.h.b16 %v585
  %v666 = vunpack.c.l.b16 %v586
  %v667 = vunpack.c.h.b16 %v586
  %v668 = vunpack.c.l.b16 %v587
  %v669 = vunpack.c.h.b16 %v587
  %v670 = vunpack.c.l.b16 %v588
  %v671 = vunpack.c.h.b16 %v588
  %v672 = vunpack.c.l.b16 %v589
  %v673 = vunpack.c.h.b16 %v589
  %v674 = vunpack.c.l.b16 %v590
  %v675 = vunpack.c.h.b16 %v590
  %v676 = vunpack.c.l.b16 %v591
  %v677 = vunpack.c.h.b16 %v591
  %v678 = vunpack.c.l.b16 %v592
  %v679 = vunpack.c.h.b16 %v592
  %v680 = vunpack.c.l.b16 %v593
  %v681 = vunpack.c.h.b16 %v593
  %v682 = vunpack.c.l.b16 %v594
  %v683 = vunpack.c.h.b16 %v594
  %v684 = vunpack.c.l.b16 %v595
  %v685 = vunpack.c.h.b16 %v595
  %v686 = vunpack.c.l.b16 %v596
  %v687 = vunpack.c.h.b16 %v596
  %v688 = vunpack.c.l.b16 %v597
  %v689 = vunpack.c.h.b16 %v597
  %v690 = vunpack.c.l.b16 %v598
  %v691 = vunpack.c.h.b16 %v598
  %v692 = vunpack.c.l.b16 %v599
  %v693 = vunpack.c.h.b16 %v599
  %v694 = vunpack.c.l.b16 %v600
  %v695 = vunpack.c.h.b16 %v600
  %v696 = vunpack.c.l.b16 %v601
  %v697 = vunpack.c.h.b16 %v601
  %v698 = vunpack.c.l.b16 %v602
  %v699 = vunpack.c.h.b16 %v602
  %v700 = vunpack.c.l.b16 %v603
  %v701 = vunpack.c.h.b16 %v603
  %v702 = vunpack.c.l.b16 %v604
  %v703 = vunpack.c.h.b16 %v604
  %v704 = vunpack.c.l.b16 %v605
  %v705 = vunpack.c.h.b16 %v605
  %v706 = vunpack.c.l.b16 %v606
  %v707 = vunpack.c.h.b16 %v606
  %v708 = vunpack.c.l.b16 %v607
  %v709 = vunpack.c.h.b16 %v607
  %v710 = vunpack.c.l.b16 %v608
  %v711 = vunpack.c.h.b16 %v608
  %v712 = vunpack.c.l.b16 %v609
  %v713 = vunpack.c.h.b16 %v609
  %v714 = vunpack.c.l.b16 %v610
  %v715 = vunpack.c.h.b16 %v610
  %v716 = vunpack.c.l.b16 %v611
  %v717 = vunpack.c.h.b16 %v611
  %v718 = vunpack.c.l.b16 %v612
  %v719 = vunpack.c.h.b16 %v612
  %v720 = vpack.c.b16 %v660, %v656
  %v721 = vpack.c.b16 %v661, %v657
  %v722 = vpack.c.b16 %v662, %v658
  %v723 = vpack.c.b16 %v663, %v659
  %v724 = vpack.c.b16 %v668, %v664
  %v725 = vpack.c.b16 %v669, %v665
  %v726 = vpack.c.b16 %v670, %v666
  %v727 = vpack.c.b16 %v671, %v667
  %v728 = vpack.c.b16 %v676, %v672
  %v729 = vpack.c.b16 %v677, %v673
  %v730 = vpack.c.b16 %v678, %v674
  %v731 = vpack.c.b16 %v679, %v675
  %v732 = vpack.c.b16 %v684, %v680
  %v733 = vpack.c.b16 %v685, %v681
  %v734 = vpack.c.b16 %v686, %v682
  %v735 = vpack.c.b16 %v687, %v683
  %v736 = vpack.c.b16 %v692, %v688
  %v737 = vpack.c.b16 %v693, %v689
  %v738 = vpack.c.b16 %v694, %v690
  %v739 = vpack.c.b16 %v695, %v691
  %v740 = vpack.c.b16 %v700, %v696
  %v741 = vpack.c.b16 %v701, %v697
  %v742 = vpack.c.b16 %v702, %v698
  %v743 = vpack.c.b16 %v703, %v699
  %v744 = vpack.c.b16 %v708, %v704
  %v745 = vpack.c.b16 %v709, %v705
  %v746 = vpack.c.b16 %v710, %v706
  %v747 = vpack.c.b16 %v711, %v707
  %v748 = vpack.c.b16 %v716, %v712
  %v749 = vpack.c.b16 %v717, %v713
  %v750 = vpack.c.b16 %v718, %v714
  %v751 = vpack.c.b16 %v719, %v715
  %784 = vmatprep.subr.bf16.mxu0 %v749
  %785 = vmatpush1.bf16.msra.mxu0 %v748
  %786 = vmatprep.subr.bf16.mxu0 %v745
  %787 = vmatpush1.bf16.msra.mxu0 %v744
  %788 = vmatprep.subr.bf16.mxu0 %v741
  %789 = vmatpush1.bf16.msra.mxu0 %v740
  %790 = vmatprep.subr.bf16.mxu0 %v737
  %791 = vmatpush1.bf16.msra.mxu0 %v736
  %792 = vmatprep.subr.bf16.mxu0 %v733
  %793 = vmatpush1.bf16.msra.mxu0 %v732
  %794 = vmatprep.subr.bf16.mxu0 %v729
  %795 = vmatpush1.bf16.msra.mxu0 %v728
  %796 = vmatprep.subr.bf16.mxu0 %v725
  %797 = vmatpush1.bf16.msra.mxu0 %v724
  %798 = vmatprep.subr.bf16.mxu0 %v721
  %799 = vmatpush1.bf16.msra.mxu0 %v720
  %800 = vmatprep.subr.bf16.mxu0 0
  %801 = vmatpush2.bf16.msra.mxu0 0
  %802 = vmatprep.subr.bf16.mxu0 0
  %803 = vmatpush2.bf16.msra.mxu0 0
  %804 = vmatprep.subr.bf16.mxu0 0
  %805 = vmatpush2.bf16.msra.mxu0 0
  %806 = vmatprep.subr.bf16.mxu0 0
  %807 = vmatpush2.bf16.msra.mxu0 0
  %808 = vmatprep.subr.bf16.mxu0 0
  %809 = vmatpush2.bf16.msra.mxu0 0
  %810 = vmatprep.subr.bf16.mxu0 0
  %811 = vmatpush2.bf16.msra.mxu0 0
  %812 = vmatprep.subr.bf16.mxu0 0
  %813 = vmatpush2.bf16.msra.mxu0 0
  %814 = vmatprep.subr.bf16.mxu0 0
  %815 = vmatpush2.bf16.msra.mxu0 0
  %816 = vmatprep.mubr.bf16.mxu0 0
  %817 = vmatmul.mubr.bf16.gmra.mxu0 %v623
  %v818 = vpop.f32.mrf.mxu0
  %v819 = vadd.f32 0.0, %v818
  %v820 = vpop.f32.mrf.mxu0
  %v821 = vadd.f32 0.0, %v820
  %v822 = vpop.f32.mrf.mxu0
  %v823 = vpop.f32.mrf.mxu0
  %824 = vdwg.mxu0
  %825 = vmatprep.subr.bf16.mxu0 %v751
  %826 = vmatpush1.bf16.msra.mxu0 %v750
  %827 = vmatprep.subr.bf16.mxu0 %v747
  %828 = vmatpush1.bf16.msra.mxu0 %v746
  %829 = vmatprep.subr.bf16.mxu0 %v743
  %830 = vmatpush1.bf16.msra.mxu0 %v742
  %831 = vmatprep.subr.bf16.mxu0 %v739
  %832 = vmatpush1.bf16.msra.mxu0 %v738
  %833 = vmatprep.subr.bf16.mxu0 %v735
  %834 = vmatpush1.bf16.msra.mxu0 %v734
  %835 = vmatprep.subr.bf16.mxu0 %v731
  %836 = vmatpush1.bf16.msra.mxu0 %v730
  %837 = vmatprep.subr.bf16.mxu0 %v727
  %838 = vmatpush1.bf16.msra.mxu0 %v726
  %839 = vmatprep.subr.bf16.mxu0 %v723
  %840 = vmatpush1.bf16.msra.mxu0 %v722
  %841 = vmatprep.subr.bf16.mxu0 0
  %842 = vmatpush2.bf16.msra.mxu0 0
  %843 = vmatprep.subr.bf16.mxu0 0
  %844 = vmatpush2.bf16.msra.mxu0 0
  %845 = vmatprep.subr.bf16.mxu0 0
  %846 = vmatpush2.bf16.msra.mxu0 0
  %847 = vmatprep.subr.bf16.mxu0 0
  %848 = vmatpush2.bf16.msra.mxu0 0
  %849 = vmatprep.subr.bf16.mxu0 0
  %850 = vmatpush2.bf16.msra.mxu0 0
  %851 = vmatprep.subr.bf16.mxu0 0
  %852 = vmatpush2.bf16.msra.mxu0 0
  %853 = vmatprep.subr.bf16.mxu0 0
  %854 = vmatpush2.bf16.msra.mxu0 0
  %855 = vmatprep.subr.bf16.mxu0 0
  %856 = vmatpush2.bf16.msra.mxu0 0
  %857 = vmatprep.mubr.bf16.mxu0 0
  %858 = vmatmul.mubr.bf16.gmra.mxu0 %v623
  %v859 = vpop.f32.mrf.mxu0
  %v860 = vadd.f32 0.0, %v859
  %v861 = vpop.f32.mrf.mxu0
  %v862 = vadd.f32 0.0, %v861
  %v863 = vpop.f32.mrf.mxu0
  %v864 = vpop.f32.mrf.mxu0
  %865 = vdwg.mxu0
  %v866 = vadd.f32 %v619, %v819
  %v867 = vadd.f32 %v620, %v821
  %v868 = vadd.f32 %v621, %v860
  %v869 = vadd.f32 %v622, %v862
  %v871 = vlaneseq
  %v872 = vshrl.u32 %v871, 7
  %v873 = vsub.s32 0, %v872
  %v874 = vrot.slane %v613, %v873
  %v875 = vlaneseq
  %v876 = vshrl.u32 %v875, 7
  %v877 = vsub.s32 1, %v876
  %v878 = vrot.slane %v613, %v877
  %v879 = vlaneseq
  %v880 = vshrl.u32 %v879, 7
  %v881 = vsub.s32 2, %v880
  %v882 = vrot.slane %v613, %v881
  %v883 = vlaneseq
  %v884 = vshrl.u32 %v883, 7
  %v885 = vsub.s32 3, %v884
  %v886 = vrot.slane %v613, %v885
  %v891 = vadd.f32 %v866, %v874
  %v892 = vadd.f32 %v867, %v878
  %v893 = vadd.f32 %v868, %v882
  %v894 = vadd.f32 %v869, %v886
  %v895 = vxor.u32 %v891, 2147483648
  %v896 = vmul.f32 %v895, 1.442695
  %v897 = vpow.pop %v896
  %v898 = vadd.f32 %v897, 1.0
  %v899 = vrcp.pop %v898
  %v900 = vmul.f32 1.0, %v899
  %v901 = vxor.u32 %v892, 2147483648
  %v902 = vmul.f32 %v901, 1.442695
  %v903 = vpow.pop %v902
  %v904 = vadd.f32 %v903, 1.0
  %v905 = vrcp.pop %v904
  %v906 = vmul.f32 1.0, %v905
  %v907 = vtanh.pop %v893
  %v908 = vxor.u32 %v894, 2147483648
  %v909 = vmul.f32 %v908, 1.442695
  %v910 = vpow.pop %v909
  %v911 = vadd.f32 %v910, 1.0
  %v912 = vrcp.pop %v911
  %v913 = vmul.f32 1.0, %v912
  %v914 = vmul.f32 %v906, %v615
  %v915 = vmul.f32 %v900, %v907
  %v916 = vadd.f32 %v914, %v915
  %v917 = vtanh.pop %v916
  %v918 = vmul.f32 %v913, %v917
  %919 = vst [vmem:[#allocation7] sm:$0xff] %v918
  %920 = vst [vmem:[#allocation8] sm:$0xff] %v916
  %v921 = vpack.c.bf16 %v918, %v918
  %922 = vst [vmem:[#allocation6] sm:$0xf] %v921
  %v923 = vld [vmem:[#allocation7] sm:$0xff]
  %v924 = vld [vmem:[#allocation8] sm:$0xff]
  %s925 = smul.u32 1, 4
  %s926 = smul.addr %s925, 8
  %s927 = scalar_lea.vmem [#allocation5], %s926
  %v928 = vld [vmem:[%s927] sm:$0xff]
  %v929 = vld [vmem:[%s927 + $0x8] sm:$0xff]
  %v930 = vld [vmem:[%s927 + $0x10] sm:$0xff]
  %v931 = vld [vmem:[%s927 + $0x18] sm:$0xff]
  %v932 = vpack.c.bf16 %v923, %v923
  %933 = vmatprep.subr.bf16.mxu0 %v749
  %934 = vmatpush1.bf16.msra.mxu0 %v748
  %935 = vmatprep.subr.bf16.mxu0 %v745
  %936 = vmatpush1.bf16.msra.mxu0 %v744
  %937 = vmatprep.subr.bf16.mxu0 %v741
  %938 = vmatpush1.bf16.msra.mxu0 %v740
  %939 = vmatprep.subr.bf16.mxu0 %v737
  %940 = vmatpush1.bf16.msra.mxu0 %v736
  %941 = vmatprep.subr.bf16.mxu0 %v733
  %942 = vmatpush1.bf16.msra.mxu0 %v732
  %943 = vmatprep.subr.bf16.mxu0 %v729
  %944 = vmatpush1.bf16.msra.mxu0 %v728
  %945 = vmatprep.subr.bf16.mxu0 %v725
  %946 = vmatpush1.bf16.msra.mxu0 %v724
  %947 = vmatprep.subr.bf16.mxu0 %v721
  %948 = vmatpush1.bf16.msra.mxu0 %v720
  %949 = vmatprep.subr.bf16.mxu0 0
  %950 = vmatpush2.bf16.msra.mxu0 0
  %951 = vmatprep.subr.bf16.mxu0 0
  %952 = vmatpush2.bf16.msra.mxu0 0
  %953 = vmatprep.subr.bf16.mxu0 0
  %954 = vmatpush2.bf16.msra.mxu0 0
  %955 = vmatprep.subr.bf16.mxu0 0
  %956 = vmatpush2.bf16.msra.mxu0 0
  %957 = vmatprep.subr.bf16.mxu0 0
  %958 = vmatpush2.bf16.msra.mxu0 0
  %959 = vmatprep.subr.bf16.mxu0 0
  %960 = vmatpush2.bf16.msra.mxu0 0
  %961 = vmatprep.subr.bf16.mxu0 0
  %962 = vmatpush2.bf16.msra.mxu0 0
  %963 = vmatprep.subr.bf16.mxu0 0
  %964 = vmatpush2.bf16.msra.mxu0 0
  %965 = vmatprep.mubr.bf16.mxu0 0
  %966 = vmatmul.mubr.bf16.gmra.mxu0 %v932
  %v967 = vpop.f32.mrf.mxu0
  %v968 = vadd.f32 0.0, %v967
  %v969 = vpop.f32.mrf.mxu0
  %v970 = vadd.f32 0.0, %v969
  %v971 = vpop.f32.mrf.mxu0
  %v972 = vpop.f32.mrf.mxu0
  %973 = vdwg.mxu0
  %974 = vmatprep.subr.bf16.mxu0 %v751
  %975 = vmatpush1.bf16.msra.mxu0 %v750
  %976 = vmatprep.subr.bf16.mxu0 %v747
  %977 = vmatpush1.bf16.msra.mxu0 %v746
  %978 = vmatprep.subr.bf16.mxu0 %v743
  %979 = vmatpush1.bf16.msra.mxu0 %v742
  %980 = vmatprep.subr.bf16.mxu0 %v739
  %981 = vmatpush1.bf16.msra.mxu0 %v738
  %982 = vmatprep.subr.bf16.mxu0 %v735
  %983 = vmatpush1.bf16.msra.mxu0 %v734
  %984 = vmatprep.subr.bf16.mxu0 %v731
  %985 = vmatpush1.bf16.msra.mxu0 %v730
  %986 = vmatprep.subr.bf16.mxu0 %v727
  %987 = vmatpush1.bf16.msra.mxu0 %v726
  %988 = vmatprep.subr.bf16.mxu0 %v723
  %989 = vmatpush1.bf16.msra.mxu0 %v722
  %990 = vmatprep.subr.bf16.mxu0 0
  %991 = vmatpush2.bf16.msra.mxu0 0
  %992 = vmatprep.subr.bf16.mxu0 0
  %993 = vmatpush2.bf16.msra.mxu0 0
  %994 = vmatprep.subr.bf16.mxu0 0
  %995 = vmatpush2.bf16.msra.mxu0 0
  %996 = vmatprep.subr.bf16.mxu0 0
  %997 = vmatpush2.bf16.msra.mxu0 0
  %998 = vmatprep.subr.bf16.mxu0 0
  %999 = vmatpush2.bf16.msra.mxu0 0
  %1000 = vmatprep.subr.bf16.mxu0 0
  %1001 = vmatpush2.bf16.msra.mxu0 0
  %1002 = vmatprep.subr.bf16.mxu0 0
  %1003 = vmatpush2.bf16.msra.mxu0 0
  %1004 = vmatprep.subr.bf16.mxu0 0
  %1005 = vmatpush2.bf16.msra.mxu0 0
  %1006 = vmatprep.mubr.bf16.mxu0 0
  %1007 = vmatmul.mubr.bf16.gmra.mxu0 %v932
  %v1008 = vpop.f32.mrf.mxu0
  %v1009 = vadd.f32 0.0, %v1008
  %v1010 = vpop.f32.mrf.mxu0
  %v1011 = vadd.f32 0.0, %v1010
  %v1012 = vpop.f32.mrf.mxu0
  %v1013 = vpop.f32.mrf.mxu0
  %1014 = vdwg.mxu0
  %v1015 = vadd.f32 %v928, %v968
  %v1016 = vadd.f32 %v929, %v970
  %v1017 = vadd.f32 %v930, %v1009
  %v1018 = vadd.f32 %v931, %v1011
  %v1019 = vadd.f32 %v1015, %v874
  %v1020 = vadd.f32 %v1016, %v878
  %v1021 = vadd.f32 %v1017, %v882
  %v1022 = vadd.f32 %v1018, %v886
  %v1023 = vxor.u32 %v1019, 2147483648
  %v1024 = vmul.f32 %v1023, 1.442695
  %v1025 = vpow.pop %v1024
  %v1026 = vadd.f32 %v1025, 1.0
  %v1027 = vrcp.pop %v1026
  %v1028 = vmul.f32 1.0, %v1027
  %v1029 = vxor.u32 %v1020, 2147483648
  %v1030 = vmul.f32 %v1029, 1.442695
  %v1031 = vpow.pop %v1030
  %v1032 = vadd.f32 %v1031, 1.0
  %v1033 = vrcp.pop %v1032
  %v1034 = vmul.f32 1.0, %v1033
  %v1035 = vtanh.pop %v1021
  %v1036 = vxor.u32 %v1022, 2147483648
  %v1037 = vmul.f32 %v1036, 1.442695
  %v1038 = vpow.pop %v1037
  %v1039 = vadd.f32 %v1038, 1.0
  %v1040 = vrcp.pop %v1039
  %v1041 = vmul.f32 1.0, %v1040
  %v1042 = vmul.f32 %v1034, %v924
  %v1043 = vmul.f32 %v1028, %v1035
  %v1044 = vadd.f32 %v1042, %v1043
  %v1045 = vtanh.pop %v1044
  %v1046 = vmul.f32 %v1041, %v1045
  %1047 = vst [vmem:[#allocation7] sm:$0xff] %v1046
  %1048 = vst [vmem:[#allocation8] sm:$0xff] %v1044
  %v1049 = vpack.c.bf16 %v1046, %v1046
  %s1050 = scalar_lea.vmem [#allocation6], 4
  %1051 = vst [vmem:[%s1050] sm:$0xf] %v1049
  %v1052 = vld [vmem:[#allocation7] sm:$0xff]
  %v1053 = vld [vmem:[#allocation8] sm:$0xff]
  %s1054 = smul.u32 2, 4
  %s1055 = smul.addr %s1054, 8
  %s1056 = scalar_lea.vmem [#allocation5], %s1055
  %v1057 = vld [vmem:[%s1056] sm:$0xff]
  %v1058 = vld [vmem:[%s1056 + $0x8] sm:$0xff]
  %v1059 = vld [vmem:[%s1056 + $0x10] sm:$0xff]
  %v1060 = vld [vmem:[%s1056 + $0x18] sm:$0xff]
  %v1061 = vpack.c.bf16 %v1052, %v1052
  %1062 = vmatprep.subr.bf16.mxu0 %v749
  %1063 = vmatpush1.bf16.msra.mxu0 %v748
  %1064 = vmatprep.subr.bf16.mxu0 %v745
  %1065 = vmatpush1.bf16.msra.mxu0 %v744
  %1066 = vmatprep.subr.bf16.mxu0 %v741
  %1067 = vmatpush1.bf16.msra.mxu0 %v740
  %1068 = vmatprep.subr.bf16.mxu0 %v737
  %1069 = vmatpush1.bf16.msra.mxu0 %v736
  %1070 = vmatprep.subr.bf16.mxu0 %v733
  %1071 = vmatpush1.bf16.msra.mxu0 %v732
  %1072 = vmatprep.subr.bf16.mxu0 %v729
  %1073 = vmatpush1.bf16.msra.mxu0 %v728
  %1074 = vmatprep.subr.bf16.mxu0 %v725
  %1075 = vmatpush1.bf16.msra.mxu0 %v724
  %1076 = vmatprep.subr.bf16.mxu0 %v721
  %1077 = vmatpush1.bf16.msra.mxu0 %v720
  %1078 = vmatprep.subr.bf16.mxu0 0
  %1079 = vmatpush2.bf16.msra.mxu0 0
  %1080 = vmatprep.subr.bf16.mxu0 0
  %1081 = vmatpush2.bf16.msra.mxu0 0
  %1082 = vmatprep.subr.bf16.mxu0 0
  %1083 = vmatpush2.bf16.msra.mxu0 0
  %1084 = vmatprep.subr.bf16.mxu0 0
  %1085 = vmatpush2.bf16.msra.mxu0 0
  %1086 = vmatprep.subr.bf16.mxu0 0
  %1087 = vmatpush2.bf16.msra.mxu0 0
  %1088 = vmatprep.subr.bf16.mxu0 0
  %1089 = vmatpush2.bf16.msra.mxu0 0
  %1090 = vmatprep.subr.bf16.mxu0 0
  %1091 = vmatpush2.bf16.msra.mxu0 0
  %1092 = vmatprep.subr.bf16.mxu0 0
  %1093 = vmatpush2.bf16.msra.mxu0 0
  %1094 = vmatprep.mubr.bf16.mxu0 0
  %1095 = vmatmul.mubr.bf16.gmra.mxu0 %v1061
  %v1096 = vpop.f32.mrf.mxu0
  %v1097 = vadd.f32 0.0, %v1096
  %v1098 = vpop.f32.mrf.mxu0
  %v1099 = vadd.f32 0.0, %v1098
  %v1100 = vpop.f32.mrf.mxu0
  %v1101 = vpop.f32.mrf.mxu0
  %1102 = vdwg.mxu0
  %1103 = vmatprep.subr.bf16.mxu0 %v751
  %1104 = vmatpush1.bf16.msra.mxu0 %v750
  %1105 = vmatprep.subr.bf16.mxu0 %v747
  %1106 = vmatpush1.bf16.msra.mxu0 %v746
  %1107 = vmatprep.subr.bf16.mxu0 %v743
  %1108 = vmatpush1.bf16.msra.mxu0 %v742
  %1109 = vmatprep.subr.bf16.mxu0 %v739
  %1110 = vmatpush1.bf16.msra.mxu0 %v738
  %1111 = vmatprep.subr.bf16.mxu0 %v735
  %1112 = vmatpush1.bf16.msra.mxu0 %v734
  %1113 = vmatprep.subr.bf16.mxu0 %v731
  %1114 = vmatpush1.bf16.msra.mxu0 %v730
  %1115 = vmatprep.subr.bf16.mxu0 %v727
  %1116 = vmatpush1.bf16.msra.mxu0 %v726
  %1117 = vmatprep.subr.bf16.mxu0 %v723
  %1118 = vmatpush1.bf16.msra.mxu0 %v722
  %1119 = vmatprep.subr.bf16.mxu0 0
  %1120 = vmatpush2.bf16.msra.mxu0 0
  %1121 = vmatprep.subr.bf16.mxu0 0
  %1122 = vmatpush2.bf16.msra.mxu0 0
  %1123 = vmatprep.subr.bf16.mxu0 0
  %1124 = vmatpush2.bf16.msra.mxu0 0
  %1125 = vmatprep.subr.bf16.mxu0 0
  %1126 = vmatpush2.bf16.msra.mxu0 0
  %1127 = vmatprep.subr.bf16.mxu0 0
  %1128 = vmatpush2.bf16.msra.mxu0 0
  %1129 = vmatprep.subr.bf16.mxu0 0
  %1130 = vmatpush2.bf16.msra.mxu0 0
  %1131 = vmatprep.subr.bf16.mxu0 0
  %1132 = vmatpush2.bf16.msra.mxu0 0
  %1133 = vmatprep.subr.bf16.mxu0 0
  %1134 = vmatpush2.bf16.msra.mxu0 0
  %1135 = vmatprep.mubr.bf16.mxu0 0
  %1136 = vmatmul.mubr.bf16.gmra.mxu0 %v1061
  %v1137 = vpop.f32.mrf.mxu0
  %v1138 = vadd.f32 0.0, %v1137
  %v1139 = vpop.f32.mrf.mxu0
  %v1140 = vadd.f32 0.0, %v1139
  %v1141 = vpop.f32.mrf.mxu0
  %v1142 = vpop.f32.mrf.mxu0
  %1143 = vdwg.mxu0
  %v1144 = vadd.f32 %v1057, %v1097
  %v1145 = vadd.f32 %v1058, %v1099
  %v1146 = vadd.f32 %v1059, %v1138
  %v1147 = vadd.f32 %v1060, %v1140
  %v1148 = vadd.f32 %v1144, %v874
  %v1149 = vadd.f32 %v1145, %v878
  %v1150 = vadd.f32 %v1146, %v882
  %v1151 = vadd.f32 %v1147, %v886
  %v1152 = vxor.u32 %v1148, 2147483648
  %v1153 = vmul.f32 %v1152, 1.442695
  %v1154 = vpow.pop %v1153
  %v1155 = vadd.f32 %v1154, 1.0
  %v1156 = vrcp.pop %v1155
  %v1157 = vmul.f32 1.0, %v1156
  %v1158 = vxor.u32 %v1149, 2147483648
  %v1159 = vmul.f32 %v1158, 1.442695
  %v1160 = vpow.pop %v1159
  %v1161 = vadd.f32 %v1160, 1.0
  %v1162 = vrcp.pop %v1161
  %v1163 = vmul.f32 1.0, %v1162
  %v1164 = vtanh.pop %v1150
  %v1165 = vxor.u32 %v1151, 2147483648
  %v1166 = vmul.f32 %v1165, 1.442695
  %v1167 = vpow.pop %v1166
  %v1168 = vadd.f32 %v1167, 1.0
  %v1169 = vrcp.pop %v1168
  %v1170 = vmul.f32 1.0, %v1169
  %v1171 = vmul.f32 %v1163, %v1053
  %v1172 = vmul.f32 %v1157, %v1164
  %v1173 = vadd.f32 %v1171, %v1172
  %v1174 = vtanh.pop %v1173
  %v1175 = vmul.f32 %v1170, %v1174
  %1176 = vst [vmem:[#allocation7] sm:$0xff] %v1175
  %1177 = vst [vmem:[#allocation8] sm:$0xff] %v1173
  %v1178 = vpack.c.bf16 %v1175, %v1175
  %s1179 = scalar_lea.vmem [#allocation6], 8
  %1180 = vst [vmem:[%s1179] sm:$0xf] %v1178
  %v1181 = vld [vmem:[#allocation7] sm:$0xff]
  %v1182 = vld [vmem:[#allocation8] sm:$0xff]
  %s1183 = smul.u32 3, 4
  %s1184 = smul.addr %s1183, 8
  %s1185 = scalar_lea.vmem [#allocation5], %s1184
  %v1186 = vld [vmem:[%s1185] sm:$0xff]
  %v1187 = vld [vmem:[%s1185 + $0x8] sm:$0xff]
  %v1188 = vld [vmem:[%s1185 + $0x10] sm:$0xff]
  %v1189 = vld [vmem:[%s1185 + $0x18] sm:$0xff]
  %v1190 = vpack.c.bf16 %v1181, %v1181
  %1191 = vmatprep.subr.bf16.mxu0 %v749
  %1192 = vmatpush1.bf16.msra.mxu0 %v748
  %1193 = vmatprep.subr.bf16.mxu0 %v745
  %1194 = vmatpush1.bf16.msra.mxu0 %v744
  %1195 = vmatprep.subr.bf16.mxu0 %v741
  %1196 = vmatpush1.bf16.msra.mxu0 %v740
  %1197 = vmatprep.subr.bf16.mxu0 %v737
  %1198 = vmatpush1.bf16.msra.mxu0 %v736
  %1199 = vmatprep.subr.bf16.mxu0 %v733
  %1200 = vmatpush1.bf16.msra.mxu0 %v732
  %1201 = vmatprep.subr.bf16.mxu0 %v729
  %1202 = vmatpush1.bf16.msra.mxu0 %v728
  %1203 = vmatprep.subr.bf16.mxu0 %v725
  %1204 = vmatpush1.bf16.msra.mxu0 %v724
  %1205 = vmatprep.subr.bf16.mxu0 %v721
  %1206 = vmatpush1.bf16.msra.mxu0 %v720
  %1207 = vmatprep.subr.bf16.mxu0 0
  %1208 = vmatpush2.bf16.msra.mxu0 0
  %1209 = vmatprep.subr.bf16.mxu0 0
  %1210 = vmatpush2.bf16.msra.mxu0 0
  %1211 = vmatprep.subr.bf16.mxu0 0
  %1212 = vmatpush2.bf16.msra.mxu0 0
  %1213 = vmatprep.subr.bf16.mxu0 0
  %1214 = vmatpush2.bf16.msra.mxu0 0
  %1215 = vmatprep.subr.bf16.mxu0 0
  %1216 = vmatpush2.bf16.msra.mxu0 0
  %1217 = vmatprep.subr.bf16.mxu0 0
  %1218 = vmatpush2.bf16.msra.mxu0 0
  %1219 = vmatprep.subr.bf16.mxu0 0
  %1220 = vmatpush2.bf16.msra.mxu0 0
  %1221 = vmatprep.subr.bf16.mxu0 0
  %1222 = vmatpush2.bf16.msra.mxu0 0
  %1223 = vmatprep.mubr.bf16.mxu0 0
  %1224 = vmatmul.mubr.bf16.gmra.mxu0 %v1190
  %v1225 = vpop.f32.mrf.mxu0
  %v1226 = vadd.f32 0.0, %v1225
  %v1227 = vpop.f32.mrf.mxu0
  %v1228 = vadd.f32 0.0, %v1227
  %v1229 = vpop.f32.mrf.mxu0
  %v1230 = vpop.f32.mrf.mxu0
  %1231 = vdwg.mxu0
  %1232 = vmatprep.subr.bf16.mxu0 %v751
  %1233 = vmatpush1.bf16.msra.mxu0 %v750
  %1234 = vmatprep.subr.bf16.mxu0 %v747
  %1235 = vmatpush1.bf16.msra.mxu0 %v746
  %1236 = vmatprep.subr.bf16.mxu0 %v743
  %1237 = vmatpush1.bf16.msra.mxu0 %v742
  %1238 = vmatprep.subr.bf16.mxu0 %v739
  %1239 = vmatpush1.bf16.msra.mxu0 %v738
  %1240 = vmatprep.subr.bf16.mxu0 %v735
  %1241 = vmatpush1.bf16.msra.mxu0 %v734
  %1242 = vmatprep.subr.bf16.mxu0 %v731
  %1243 = vmatpush1.bf16.msra.mxu0 %v730
  %1244 = vmatprep.subr.bf16.mxu0 %v727
  %1245 = vmatpush1.bf16.msra.mxu0 %v726
  %1246 = vmatprep.subr.bf16.mxu0 %v723
  %1247 = vmatpush1.bf16.msra.mxu0 %v722
  %1248 = vmatprep.subr.bf16.mxu0 0
  %1249 = vmatpush2.bf16.msra.mxu0 0
  %1250 = vmatprep.subr.bf16.mxu0 0
  %1251 = vmatpush2.bf16.msra.mxu0 0
  %1252 = vmatprep.subr.bf16.mxu0 0
  %1253 = vmatpush2.bf16.msra.mxu0 0
  %1254 = vmatprep.subr.bf16.mxu0 0
  %1255 = vmatpush2.bf16.msra.mxu0 0
  %1256 = vmatprep.subr.bf16.mxu0 0
  %1257 = vmatpush2.bf16.msra.mxu0 0
  %1258 = vmatprep.subr.bf16.mxu0 0
  %1259 = vmatpush2.bf16.msra.mxu0 0
  %1260 = vmatprep.subr.bf16.mxu0 0
  %1261 = vmatpush2.bf16.msra.mxu0 0
  %1262 = vmatprep.subr.bf16.mxu0 0
  %1263 = vmatpush2.bf16.msra.mxu0 0
  %1264 = vmatprep.mubr.bf16.mxu0 0
  %1265 = vmatmul.mubr.bf16.gmra.mxu0 %v1190
  %v1266 = vpop.f32.mrf.mxu0
  %v1267 = vadd.f32 0.0, %v1266
  %v1268 = vpop.f32.mrf.mxu0
  %v1269 = vadd.f32 0.0, %v1268
  %v1270 = vpop.f32.mrf.mxu0
  %v1271 = vpop.f32.mrf.mxu0
  %1272 = vdwg.mxu0
  %v1273 = vadd.f32 %v1186, %v1226
  %v1274 = vadd.f32 %v1187, %v1228
  %v1275 = vadd.f32 %v1188, %v1267
  %v1276 = vadd.f32 %v1189, %v1269
  %v1277 = vadd.f32 %v1273, %v874
  %v1278 = vadd.f32 %v1274, %v878
  %v1279 = vadd.f32 %v1275, %v882
  %v1280 = vadd.f32 %v1276, %v886
  %v1281 = vxor.u32 %v1277, 2147483648
  %v1282 = vmul.f32 %v1281, 1.442695
  %v1283 = vpow.pop %v1282
  %v1284 = vadd.f32 %v1283, 1.0
  %v1285 = vrcp.pop %v1284
  %v1286 = vmul.f32 1.0, %v1285
  %v1287 = vxor.u32 %v1278, 2147483648
  %v1288 = vmul.f32 %v1287, 1.442695
  %v1289 = vpow.pop %v1288
  %v1290 = vadd.f32 %v1289, 1.0
  %v1291 = vrcp.pop %v1290
  %v1292 = vmul.f32 1.0, %v1291
  %v1293 = vtanh.pop %v1279
  %v1294 = vxor.u32 %v1280, 2147483648
  %v1295 = vmul.f32 %v1294, 1.442695
  %v1296 = vpow.pop %v1295
  %v1297 = vadd.f32 %v1296, 1.0
  %v1298 = vrcp.pop %v1297
  %v1299 = vmul.f32 1.0, %v1298
  %v1300 = vmul.f32 %v1292, %v1182
  %v1301 = vmul.f32 %v1286, %v1293
  %v1302 = vadd.f32 %v1300, %v1301
  %v1303 = vtanh.pop %v1302
  %v1304 = vmul.f32 %v1299, %v1303
  %1305 = vst [vmem:[#allocation7] sm:$0xff] %v1304
  %1306 = vst [vmem:[#allocation8] sm:$0xff] %v1302
  %v1307 = vpack.c.bf16 %v1304, %v1304
  %s1308 = scalar_lea.vmem [#allocation6], 12
  %1309 = vst [vmem:[%s1308] sm:$0xf] %v1307
  %v1310 = vld [vmem:[#allocation7] sm:$0xff]
  %v1311 = vld [vmem:[#allocation8] sm:$0xff]
  %s1312 = smul.u32 4, 4
  %s1313 = smul.addr %s1312, 8
  %s1314 = scalar_lea.vmem [#allocation5], %s1313
  %v1315 = vld [vmem:[%s1314] sm:$0xff]
  %v1316 = vld [vmem:[%s1314 + $0x8] sm:$0xff]
  %v1317 = vld [vmem:[%s1314 + $0x10] sm:$0xff]
  %v1318 = vld [vmem:[%s1314 + $0x18] sm:$0xff]
  %v1319 = vpack.c.bf16 %v1310, %v1310
  %1320 = vmatprep.subr.bf16.mxu0 %v749
  %1321 = vmatpush1.bf16.msra.mxu0 %v748
  %1322 = vmatprep.subr.bf16.mxu0 %v745
  %1323 = vmatpush1.bf16.msra.mxu0 %v744
  %1324 = vmatprep.subr.bf16.mxu0 %v741
  %1325 = vmatpush1.bf16.msra.mxu0 %v740
  %1326 = vmatprep.subr.bf16.mxu0 %v737
  %1327 = vmatpush1.bf16.msra.mxu0 %v736
  %1328 = vmatprep.subr.bf16.mxu0 %v733
  %1329 = vmatpush1.bf16.msra.mxu0 %v732
  %1330 = vmatprep.subr.bf16.mxu0 %v729
  %1331 = vmatpush1.bf16.msra.mxu0 %v728
  %1332 = vmatprep.subr.bf16.mxu0 %v725
  %1333 = vmatpush1.bf16.msra.mxu0 %v724
  %1334 = vmatprep.subr.bf16.mxu0 %v721
  %1335 = vmatpush1.bf16.msra.mxu0 %v720
  %1336 = vmatprep.subr.bf16.mxu0 0
  %1337 = vmatpush2.bf16.msra.mxu0 0
  %1338 = vmatprep.subr.bf16.mxu0 0
  %1339 = vmatpush2.bf16.msra.mxu0 0
  %1340 = vmatprep.subr.bf16.mxu0 0
  %1341 = vmatpush2.bf16.msra.mxu0 0
  %1342 = vmatprep.subr.bf16.mxu0 0
  %1343 = vmatpush2.bf16.msra.mxu0 0
  %1344 = vmatprep.subr.bf16.mxu0 0
  %1345 = vmatpush2.bf16.msra.mxu0 0
  %1346 = vmatprep.subr.bf16.mxu0 0
  %1347 = vmatpush2.bf16.msra.mxu0 0
  %1348 = vmatprep.subr.bf16.mxu0 0
  %1349 = vmatpush2.bf16.msra.mxu0 0
  %1350 = vmatprep.subr.bf16.mxu0 0
  %1351 = vmatpush2.bf16.msra.mxu0 0
  %1352 = vmatprep.mubr.bf16.mxu0 0
  %1353 = vmatmul.mubr.bf16.gmra.mxu0 %v1319
  %v1354 = vpop.f32.mrf.mxu0
  %v1355 = vadd.f32 0.0, %v1354
  %v1356 = vpop.f32.mrf.mxu0
  %v1357 = vadd.f32 0.0, %v1356
  %v1358 = vpop.f32.mrf.mxu0
  %v1359 = vpop.f32.mrf.mxu0
  %1360 = vdwg.mxu0
  %1361 = vmatprep.subr.bf16.mxu0 %v751
  %1362 = vmatpush1.bf16.msra.mxu0 %v750
  %1363 = vmatprep.subr.bf16.mxu0 %v747
  %1364 = vmatpush1.bf16.msra.mxu0 %v746
  %1365 = vmatprep.subr.bf16.mxu0 %v743
  %1366 = vmatpush1.bf16.msra.mxu0 %v742
  %1367 = vmatprep.subr.bf16.mxu0 %v739
  %1368 = vmatpush1.bf16.msra.mxu0 %v738
  %1369 = vmatprep.subr.bf16.mxu0 %v735
  %1370 = vmatpush1.bf16.msra.mxu0 %v734
  %1371 = vmatprep.subr.bf16.mxu0 %v731
  %1372 = vmatpush1.bf16.msra.mxu0 %v730
  %1373 = vmatprep.subr.bf16.mxu0 %v727
  %1374 = vmatpush1.bf16.msra.mxu0 %v726
  %1375 = vmatprep.subr.bf16.mxu0 %v723
  %1376 = vmatpush1.bf16.msra.mxu0 %v722
  %1377 = vmatprep.subr.bf16.mxu0 0
  %1378 = vmatpush2.bf16.msra.mxu0 0
  %1379 = vmatprep.subr.bf16.mxu0 0
  %1380 = vmatpush2.bf16.msra.mxu0 0
  %1381 = vmatprep.subr.bf16.mxu0 0
  %1382 = vmatpush2.bf16.msra.mxu0 0
  %1383 = vmatprep.subr.bf16.mxu0 0
  %1384 = vmatpush2.bf16.msra.mxu0 0
  %1385 = vmatprep.subr.bf16.mxu0 0
  %1386 = vmatpush2.bf16.msra.mxu0 0
  %1387 = vmatprep.subr.bf16.mxu0 0
  %1388 = vmatpush2.bf16.msra.mxu0 0
  %1389 = vmatprep.subr.bf16.mxu0 0
  %1390 = vmatpush2.bf16.msra.mxu0 0
  %1391 = vmatprep.subr.bf16.mxu0 0
  %1392 = vmatpush2.bf16.msra.mxu0 0
  %1393 = vmatprep.mubr.bf16.mxu0 0
  %1394 = vmatmul.mubr.bf16.gmra.mxu0 %v1319
  %v1395 = vpop.f32.mrf.mxu0
  %v1396 = vadd.f32 0.0, %v1395
  %v1397 = vpop.f32.mrf.mxu0
  %v1398 = vadd.f32 0.0, %v1397
  %v1399 = vpop.f32.mrf.mxu0
  %v1400 = vpop.f32.mrf.mxu0
  %1401 = vdwg.mxu0
  %v1402 = vadd.f32 %v1315, %v1355
  %v1403 = vadd.f32 %v1316, %v1357
  %v1404 = vadd.f32 %v1317, %v1396
  %v1405 = vadd.f32 %v1318, %v1398
  %v1406 = vadd.f32 %v1402, %v874
  %v1407 = vadd.f32 %v1403, %v878
  %v1408 = vadd.f32 %v1404, %v882
  %v1409 = vadd.f32 %v1405, %v886
  %v1410 = vxor.u32 %v1406, 2147483648
  %v1411 = vmul.f32 %v1410, 1.442695
  %v1412 = vpow.pop %v1411
  %v1413 = vadd.f32 %v1412, 1.0
  %v1414 = vrcp.pop %v1413
  %v1415 = vmul.f32 1.0, %v1414
  %v1416 = vxor.u32 %v1407, 2147483648
  %v1417 = vmul.f32 %v1416, 1.442695
  %v1418 = vpow.pop %v1417
  %v1419 = vadd.f32 %v1418, 1.0
  %v1420 = vrcp.pop %v1419
  %v1421 = vmul.f32 1.0, %v1420
  %v1422 = vtanh.pop %v1408
  %v1423 = vxor.u32 %v1409, 2147483648
  %v1424 = vmul.f32 %v1423, 1.442695
  %v1425 = vpow.pop %v1424
  %v1426 = vadd.f32 %v1425, 1.0
  %v1427 = vrcp.pop %v1426
  %v1428 = vmul.f32 1.0, %v1427
  %v1429 = vmul.f32 %v1421, %v1311
  %v1430 = vmul.f32 %v1415, %v1422
  %v1431 = vadd.f32 %v1429, %v1430
  %v1432 = vtanh.pop %v1431
  %v1433 = vmul.f32 %v1428, %v1432
  %1434 = vst [vmem:[#allocation7] sm:$0xff] %v1433
  %1435 = vst [vmem:[#allocation8] sm:$0xff] %v1431
  %v1436 = vpack.c.bf16 %v1433, %v1433
  %s1437 = scalar_lea.vmem [#allocation6], 16
  %1438 = vst [vmem:[%s1437] sm:$0xf] %v1436
  %v1439 = vld [vmem:[#allocation7] sm:$0xff]
  %v1440 = vld [vmem:[#allocation8] sm:$0xff]
  %s1441 = smul.u32 5, 4
  %s1442 = smul.addr %s1441, 8
  %s1443 = scalar_lea.vmem [#allocation5], %s1442
  %v1444 = vld [vmem:[%s1443] sm:$0xff]
  %v1445 = vld [vmem:[%s1443 + $0x8] sm:$0xff]
  %v1446 = vld [vmem:[%s1443 + $0x10] sm:$0xff]
  %v1447 = vld [vmem:[%s1443 + $0x18] sm:$0xff]
  %v1448 = vpack.c.bf16 %v1439, %v1439
  %1449 = vmatprep.subr.bf16.mxu0 %v749
  %1450 = vmatpush1.bf16.msra.mxu0 %v748
  %1451 = vmatprep.subr.bf16.mxu0 %v745
  %1452 = vmatpush1.bf16.msra.mxu0 %v744
  %1453 = vmatprep.subr.bf16.mxu0 %v741
  %1454 = vmatpush1.bf16.msra.mxu0 %v740
  %1455 = vmatprep.subr.bf16.mxu0 %v737
  %1456 = vmatpush1.bf16.msra.mxu0 %v736
  %1457 = vmatprep.subr.bf16.mxu0 %v733
  %1458 = vmatpush1.bf16.msra.mxu0 %v732
  %1459 = vmatprep.subr.bf16.mxu0 %v729
  %1460 = vmatpush1.bf16.msra.mxu0 %v728
  %1461 = vmatprep.subr.bf16.mxu0 %v725
  %1462 = vmatpush1.bf16.msra.mxu0 %v724
  %1463 = vmatprep.subr.bf16.mxu0 %v721
  %1464 = vmatpush1.bf16.msra.mxu0 %v720
  %1465 = vmatprep.subr.bf16.mxu0 0
  %1466 = vmatpush2.bf16.msra.mxu0 0
  %1467 = vmatprep.subr.bf16.mxu0 0
  %1468 = vmatpush2.bf16.msra.mxu0 0
  %1469 = vmatprep.subr.bf16.mxu0 0
  %1470 = vmatpush2.bf16.msra.mxu0 0
  %1471 = vmatprep.subr.bf16.mxu0 0
  %1472 = vmatpush2.bf16.msra.mxu0 0
  %1473 = vmatprep.subr.bf16.mxu0 0
  %1474 = vmatpush2.bf16.msra.mxu0 0
  %1475 = vmatprep.subr.bf16.mxu0 0
  %1476 = vmatpush2.bf16.msra.mxu0 0
  %1477 = vmatprep.subr.bf16.mxu0 0
  %1478 = vmatpush2.bf16.msra.mxu0 0
  %1479 = vmatprep.subr.bf16.mxu0 0
  %1480 = vmatpush2.bf16.msra.mxu0 0
  %1481 = vmatprep.mubr.bf16.mxu0 0
  %1482 = vmatmul.mubr.bf16.gmra.mxu0 %v1448
  %v1483 = vpop.f32.mrf.mxu0
  %v1484 = vadd.f32 0.0, %v1483
  %v1485 = vpop.f32.mrf.mxu0
  %v1486 = vadd.f32 0.0, %v1485
  %v1487 = vpop.f32.mrf.mxu0
  %v1488 = vpop.f32.mrf.mxu0
  %1489 = vdwg.mxu0
  %1490 = vmatprep.subr.bf16.mxu0 %v751
  %1491 = vmatpush1.bf16.msra.mxu0 %v750
  %1492 = vmatprep.subr.bf16.mxu0 %v747
  %1493 = vmatpush1.bf16.msra.mxu0 %v746
  %1494 = vmatprep.subr.bf16.mxu0 %v743
  %1495 = vmatpush1.bf16.msra.mxu0 %v742
  %1496 = vmatprep.subr.bf16.mxu0 %v739
  %1497 = vmatpush1.bf16.msra.mxu0 %v738
  %1498 = vmatprep.subr.bf16.mxu0 %v735
  %1499 = vmatpush1.bf16.msra.mxu0 %v734
  %1500 = vmatprep.subr.bf16.mxu0 %v731
  %1501 = vmatpush1.bf16.msra.mxu0 %v730
  %1502 = vmatprep.subr.bf16.mxu0 %v727
  %1503 = vmatpush1.bf16.msra.mxu0 %v726
  %1504 = vmatprep.subr.bf16.mxu0 %v723
  %1505 = vmatpush1.bf16.msra.mxu0 %v722
  %1506 = vmatprep.subr.bf16.mxu0 0
  %1507 = vmatpush2.bf16.msra.mxu0 0
  %1508 = vmatprep.subr.bf16.mxu0 0
  %1509 = vmatpush2.bf16.msra.mxu0 0
  %1510 = vmatprep.subr.bf16.mxu0 0
  %1511 = vmatpush2.bf16.msra.mxu0 0
  %1512 = vmatprep.subr.bf16.mxu0 0
  %1513 = vmatpush2.bf16.msra.mxu0 0
  %1514 = vmatprep.subr.bf16.mxu0 0
  %1515 = vmatpush2.bf16.msra.mxu0 0
  %1516 = vmatprep.subr.bf16.mxu0 0
  %1517 = vmatpush2.bf16.msra.mxu0 0
  %1518 = vmatprep.subr.bf16.mxu0 0
  %1519 = vmatpush2.bf16.msra.mxu0 0
  %1520 = vmatprep.subr.bf16.mxu0 0
  %1521 = vmatpush2.bf16.msra.mxu0 0
  %1522 = vmatprep.mubr.bf16.mxu0 0
  %1523 = vmatmul.mubr.bf16.gmra.mxu0 %v1448
  %v1524 = vpop.f32.mrf.mxu0
  %v1525 = vadd.f32 0.0, %v1524
  %v1526 = vpop.f32.mrf.mxu0
  %v1527 = vadd.f32 0.0, %v1526
  %v1528 = vpop.f32.mrf.mxu0
  %v1529 = vpop.f32.mrf.mxu0
  %1530 = vdwg.mxu0
  %v1531 = vadd.f32 %v1444, %v1484
  %v1532 = vadd.f32 %v1445, %v1486
  %v1533 = vadd.f32 %v1446, %v1525
  %v1534 = vadd.f32 %v1447, %v1527
  %v1535 = vadd.f32 %v1531, %v874
  %v1536 = vadd.f32 %v1532, %v878
  %v1537 = vadd.f32 %v1533, %v882
  %v1538 = vadd.f32 %v1534, %v886
  %v1539 = vxor.u32 %v1535, 2147483648
  %v1540 = vmul.f32 %v1539, 1.442695
  %v1541 = vpow.pop %v1540
  %v1542 = vadd.f32 %v1541, 1.0
  %v1543 = vrcp.pop %v1542
  %v1544 = vmul.f32 1.0, %v1543
  %v1545 = vxor.u32 %v1536, 2147483648
  %v1546 = vmul.f32 %v1545, 1.442695
  %v1547 = vpow.pop %v1546
  %v1548 = vadd.f32 %v1547, 1.0
  %v1549 = vrcp.pop %v1548
  %v1550 = vmul.f32 1.0, %v1549
  %v1551 = vtanh.pop %v1537
  %v1552 = vxor.u32 %v1538, 2147483648
  %v1553 = vmul.f32 %v1552, 1.442695
  %v1554 = vpow.pop %v1553
  %v1555 = vadd.f32 %v1554, 1.0
  %v1556 = vrcp.pop %v1555
  %v1557 = vmul.f32 1.0, %v1556
  %v1558 = vmul.f32 %v1550, %v1440
  %v1559 = vmul.f32 %v1544, %v1551
  %v1560 = vadd.f32 %v1558, %v1559
  %v1561 = vtanh.pop %v1560
  %v1562 = vmul.f32 %v1557, %v1561
  %1563 = vst [vmem:[#allocation7] sm:$0xff] %v1562
  %1564 = vst [vmem:[#allocation8] sm:$0xff] %v1560
  %v1565 = vpack.c.bf16 %v1562, %v1562
  %s1566 = scalar_lea.vmem [#allocation6], 20
  %1567 = vst [vmem:[%s1566] sm:$0xf] %v1565
  %v1568 = vld [vmem:[#allocation7] sm:$0xff]
  %v1569 = vld [vmem:[#allocation8] sm:$0xff]
  %s1570 = smul.u32 6, 4
  %s1571 = smul.addr %s1570, 8
  %s1572 = scalar_lea.vmem [#allocation5], %s1571
  %v1573 = vld [vmem:[%s1572] sm:$0xff]
  %v1574 = vld [vmem:[%s1572 + $0x8] sm:$0xff]
  %v1575 = vld [vmem:[%s1572 + $0x10] sm:$0xff]
  %v1576 = vld [vmem:[%s1572 + $0x18] sm:$0xff]
  %v1577 = vpack.c.bf16 %v1568, %v1568
  %1578 = vmatprep.subr.bf16.mxu0 %v749
  %1579 = vmatpush1.bf16.msra.mxu0 %v748
  %1580 = vmatprep.subr.bf16.mxu0 %v745
  %1581 = vmatpush1.bf16.msra.mxu0 %v744
  %1582 = vmatprep.subr.bf16.mxu0 %v741
  %1583 = vmatpush1.bf16.msra.mxu0 %v740
  %1584 = vmatprep.subr.bf16.mxu0 %v737
  %1585 = vmatpush1.bf16.msra.mxu0 %v736
  %1586 = vmatprep.subr.bf16.mxu0 %v733
  %1587 = vmatpush1.bf16.msra.mxu0 %v732
  %1588 = vmatprep.subr.bf16.mxu0 %v729
  %1589 = vmatpush1.bf16.msra.mxu0 %v728
  %1590 = vmatprep.subr.bf16.mxu0 %v725
  %1591 = vmatpush1.bf16.msra.mxu0 %v724
  %1592 = vmatprep.subr.bf16.mxu0 %v721
  %1593 = vmatpush1.bf16.msra.mxu0 %v720
  %1594 = vmatprep.subr.bf16.mxu0 0
  %1595 = vmatpush2.bf16.msra.mxu0 0
  %1596 = vmatprep.subr.bf16.mxu0 0
  %1597 = vmatpush2.bf16.msra.mxu0 0
  %1598 = vmatprep.subr.bf16.mxu0 0
  %1599 = vmatpush2.bf16.msra.mxu0 0
  %1600 = vmatprep.subr.bf16.mxu0 0
  %1601 = vmatpush2.bf16.msra.mxu0 0
  %1602 = vmatprep.subr.bf16.mxu0 0
  %1603 = vmatpush2.bf16.msra.mxu0 0
  %1604 = vmatprep.subr.bf16.mxu0 0
  %1605 = vmatpush2.bf16.msra.mxu0 0
  %1606 = vmatprep.subr.bf16.mxu0 0
  %1607 = vmatpush2.bf16.msra.mxu0 0
  %1608 = vmatprep.subr.bf16.mxu0 0
  %1609 = vmatpush2.bf16.msra.mxu0 0
  %1610 = vmatprep.mubr.bf16.mxu0 0
  %1611 = vmatmul.mubr.bf16.gmra.mxu0 %v1577
  %v1612 = vpop.f32.mrf.mxu0
  %v1613 = vadd.f32 0.0, %v1612
  %v1614 = vpop.f32.mrf.mxu0
  %v1615 = vadd.f32 0.0, %v1614
  %v1616 = vpop.f32.mrf.mxu0
  %v1617 = vpop.f32.mrf.mxu0
  %1618 = vdwg.mxu0
  %1619 = vmatprep.subr.bf16.mxu0 %v751
  %1620 = vmatpush1.bf16.msra.mxu0 %v750
  %1621 = vmatprep.subr.bf16.mxu0 %v747
  %1622 = vmatpush1.bf16.msra.mxu0 %v746
  %1623 = vmatprep.subr.bf16.mxu0 %v743
  %1624 = vmatpush1.bf16.msra.mxu0 %v742
  %1625 = vmatprep.subr.bf16.mxu0 %v739
  %1626 = vmatpush1.bf16.msra.mxu0 %v738
  %1627 = vmatprep.subr.bf16.mxu0 %v735
  %1628 = vmatpush1.bf16.msra.mxu0 %v734
  %1629 = vmatprep.subr.bf16.mxu0 %v731
  %1630 = vmatpush1.bf16.msra.mxu0 %v730
  %1631 = vmatprep.subr.bf16.mxu0 %v727
  %1632 = vmatpush1.bf16.msra.mxu0 %v726
  %1633 = vmatprep.subr.bf16.mxu0 %v723
  %1634 = vmatpush1.bf16.msra.mxu0 %v722
  %1635 = vmatprep.subr.bf16.mxu0 0
  %1636 = vmatpush2.bf16.msra.mxu0 0
  %1637 = vmatprep.subr.bf16.mxu0 0
  %1638 = vmatpush2.bf16.msra.mxu0 0
  %1639 = vmatprep.subr.bf16.mxu0 0
  %1640 = vmatpush2.bf16.msra.mxu0 0
  %1641 = vmatprep.subr.bf16.mxu0 0
  %1642 = vmatpush2.bf16.msra.mxu0 0
  %1643 = vmatprep.subr.bf16.mxu0 0
  %1644 = vmatpush2.bf16.msra.mxu0 0
  %1645 = vmatprep.subr.bf16.mxu0 0
  %1646 = vmatpush2.bf16.msra.mxu0 0
  %1647 = vmatprep.subr.bf16.mxu0 0
  %1648 = vmatpush2.bf16.msra.mxu0 0
  %1649 = vmatprep.subr.bf16.mxu0 0
  %1650 = vmatpush2.bf16.msra.mxu0 0
  %1651 = vmatprep.mubr.bf16.mxu0 0
  %1652 = vmatmul.mubr.bf16.gmra.mxu0 %v1577
  %v1653 = vpop.f32.mrf.mxu0
  %v1654 = vadd.f32 0.0, %v1653
  %v1655 = vpop.f32.mrf.mxu0
  %v1656 = vadd.f32 0.0, %v1655
  %v1657 = vpop.f32.mrf.mxu0
  %v1658 = vpop.f32.mrf.mxu0
  %1659 = vdwg.mxu0
  %v1660 = vadd.f32 %v1573, %v1613
  %v1661 = vadd.f32 %v1574, %v1615
  %v1662 = vadd.f32 %v1575, %v1654
  %v1663 = vadd.f32 %v1576, %v1656
  %v1664 = vadd.f32 %v1660, %v874
  %v1665 = vadd.f32 %v1661, %v878
  %v1666 = vadd.f32 %v1662, %v882
  %v1667 = vadd.f32 %v1663, %v886
  %v1668 = vxor.u32 %v1664, 2147483648
  %v1669 = vmul.f32 %v1668, 1.442695
  %v1670 = vpow.pop %v1669
  %v1671 = vadd.f32 %v1670, 1.0
  %v1672 = vrcp.pop %v1671
  %v1673 = vmul.f32 1.0, %v1672
  %v1674 = vxor.u32 %v1665, 2147483648
  %v1675 = vmul.f32 %v1674, 1.442695
  %v1676 = vpow.pop %v1675
  %v1677 = vadd.f32 %v1676, 1.0
  %v1678 = vrcp.pop %v1677
  %v1679 = vmul.f32 1.0, %v1678
  %v1680 = vtanh.pop %v1666
  %v1681 = vxor.u32 %v1667, 2147483648
  %v1682 = vmul.f32 %v1681, 1.442695
  %v1683 = vpow.pop %v1682
  %v1684 = vadd.f32 %v1683, 1.0
  %v1685 = vrcp.pop %v1684
  %v1686 = vmul.f32 1.0, %v1685
  %v1687 = vmul.f32 %v1679, %v1569
  %v1688 = vmul.f32 %v1673, %v1680
  %v1689 = vadd.f32 %v1687, %v1688
  %v1690 = vtanh.pop %v1689
  %v1691 = vmul.f32 %v1686, %v1690
  %1692 = vst [vmem:[#allocation7] sm:$0xff] %v1691
  %1693 = vst [vmem:[#allocation8] sm:$0xff] %v1689
  %v1694 = vpack.c.bf16 %v1691, %v1691
  %s1695 = scalar_lea.vmem [#allocation6], 24
  %1696 = vst [vmem:[%s1695] sm:$0xf] %v1694
  %v1697 = vld [vmem:[#allocation7] sm:$0xff]
  %v1698 = vld [vmem:[#allocation8] sm:$0xff]
  %s1699 = smul.u32 7, 4
  %s1700 = smul.addr %s1699, 8
  %s1701 = scalar_lea.vmem [#allocation5], %s1700
  %v1702 = vld [vmem:[%s1701] sm:$0xff]
  %v1703 = vld [vmem:[%s1701 + $0x8] sm:$0xff]
  %v1704 = vld [vmem:[%s1701 + $0x10] sm:$0xff]
  %v1705 = vld [vmem:[%s1701 + $0x18] sm:$0xff]
  %v1706 = vpack.c.bf16 %v1697, %v1697
  %1707 = vmatprep.subr.bf16.mxu0 %v749
  %1708 = vmatpush1.bf16.msra.mxu0 %v748
  %1709 = vmatprep.subr.bf16.mxu0 %v745
  %1710 = vmatpush1.bf16.msra.mxu0 %v744
  %1711 = vmatprep.subr.bf16.mxu0 %v741
  %1712 = vmatpush1.bf16.msra.mxu0 %v740
  %1713 = vmatprep.subr.bf16.mxu0 %v737
  %1714 = vmatpush1.bf16.msra.mxu0 %v736
  %1715 = vmatprep.subr.bf16.mxu0 %v733
  %1716 = vmatpush1.bf16.msra.mxu0 %v732
  %1717 = vmatprep.subr.bf16.mxu0 %v729
  %1718 = vmatpush1.bf16.msra.mxu0 %v728
  %1719 = vmatprep.subr.bf16.mxu0 %v725
  %1720 = vmatpush1.bf16.msra.mxu0 %v724
  %1721 = vmatprep.subr.bf16.mxu0 %v721
  %1722 = vmatpush1.bf16.msra.mxu0 %v720
  %1723 = vmatprep.subr.bf16.mxu0 0
  %1724 = vmatpush2.bf16.msra.mxu0 0
  %1725 = vmatprep.subr.bf16.mxu0 0
  %1726 = vmatpush2.bf16.msra.mxu0 0
  %1727 = vmatprep.subr.bf16.mxu0 0
  %1728 = vmatpush2.bf16.msra.mxu0 0
  %1729 = vmatprep.subr.bf16.mxu0 0
  %1730 = vmatpush2.bf16.msra.mxu0 0
  %1731 = vmatprep.subr.bf16.mxu0 0
  %1732 = vmatpush2.bf16.msra.mxu0 0
  %1733 = vmatprep.subr.bf16.mxu0 0
  %1734 = vmatpush2.bf16.msra.mxu0 0
  %1735 = vmatprep.subr.bf16.mxu0 0
  %1736 = vmatpush2.bf16.msra.mxu0 0
  %1737 = vmatprep.subr.bf16.mxu0 0
  %1738 = vmatpush2.bf16.msra.mxu0 0
  %1739 = vmatprep.mubr.bf16.mxu0 0
  %1740 = vmatmul.mubr.bf16.gmra.mxu0 %v1706
  %v1741 = vpop.f32.mrf.mxu0
  %v1742 = vadd.f32 0.0, %v1741
  %v1743 = vpop.f32.mrf.mxu0
  %v1744 = vadd.f32 0.0, %v1743
  %v1745 = vpop.f32.mrf.mxu0
  %v1746 = vpop.f32.mrf.mxu0
  %1747 = vdwg.mxu0
  %1748 = vmatprep.subr.bf16.mxu0 %v751
  %1749 = vmatpush1.bf16.msra.mxu0 %v750
  %1750 = vmatprep.subr.bf16.mxu0 %v747
  %1751 = vmatpush1.bf16.msra.mxu0 %v746
  %1752 = vmatprep.subr.bf16.mxu0 %v743
  %1753 = vmatpush1.bf16.msra.mxu0 %v742
  %1754 = vmatprep.subr.bf16.mxu0 %v739
  %1755 = vmatpush1.bf16.msra.mxu0 %v738
  %1756 = vmatprep.subr.bf16.mxu0 %v735
  %1757 = vmatpush1.bf16.msra.mxu0 %v734
  %1758 = vmatprep.subr.bf16.mxu0 %v731
  %1759 = vmatpush1.bf16.msra.mxu0 %v730
  %1760 = vmatprep.subr.bf16.mxu0 %v727
  %1761 = vmatpush1.bf16.msra.mxu0 %v726
  %1762 = vmatprep.subr.bf16.mxu0 %v723
  %1763 = vmatpush1.bf16.msra.mxu0 %v722
  %1764 = vmatprep.subr.bf16.mxu0 0
  %1765 = vmatpush2.bf16.msra.mxu0 0
  %1766 = vmatprep.subr.bf16.mxu0 0
  %1767 = vmatpush2.bf16.msra.mxu0 0
  %1768 = vmatprep.subr.bf16.mxu0 0
  %1769 = vmatpush2.bf16.msra.mxu0 0
  %1770 = vmatprep.subr.bf16.mxu0 0
  %1771 = vmatpush2.bf16.msra.mxu0 0
  %1772 = vmatprep.subr.bf16.mxu0 0
  %1773 = vmatpush2.bf16.msra.mxu0 0
  %1774 = vmatprep.subr.bf16.mxu0 0
  %1775 = vmatpush2.bf16.msra.mxu0 0
  %1776 = vmatprep.subr.bf16.mxu0 0
  %1777 = vmatpush2.bf16.msra.mxu0 0
  %1778 = vmatprep.subr.bf16.mxu0 0
  %1779 = vmatpush2.bf16.msra.mxu0 0
  %1780 = vmatprep.mubr.bf16.mxu0 0
  %1781 = vmatmul.mubr.bf16.gmra.mxu0 %v1706
  %v1782 = vpop.f32.mrf.mxu0
  %v1783 = vadd.f32 0.0, %v1782
  %v1784 = vpop.f32.mrf.mxu0
  %v1785 = vadd.f32 0.0, %v1784
  %v1786 = vpop.f32.mrf.mxu0
  %v1787 = vpop.f32.mrf.mxu0
  %1788 = vdwg.mxu0
  %v1789 = vadd.f32 %v1702, %v1742
  %v1790 = vadd.f32 %v1703, %v1744
  %v1791 = vadd.f32 %v1704, %v1783
  %v1792 = vadd.f32 %v1705, %v1785
  %v1793 = vadd.f32 %v1789, %v874
  %v1794 = vadd.f32 %v1790, %v878
  %v1795 = vadd.f32 %v1791, %v882
  %v1796 = vadd.f32 %v1792, %v886
  %v1797 = vxor.u32 %v1793, 2147483648
  %v1798 = vmul.f32 %v1797, 1.442695
  %v1799 = vpow.pop %v1798
  %v1800 = vadd.f32 %v1799, 1.0
  %v1801 = vrcp.pop %v1800
  %v1802 = vmul.f32 1.0, %v1801
  %v1803 = vxor.u32 %v1794, 2147483648
  %v1804 = vmul.f32 %v1803, 1.442695
  %v1805 = vpow.pop %v1804
  %v1806 = vadd.f32 %v1805, 1.0
  %v1807 = vrcp.pop %v1806
  %v1808 = vmul.f32 1.0, %v1807
  %v1809 = vtanh.pop %v1795
  %v1810 = vxor.u32 %v1796, 2147483648
  %v1811 = vmul.f32 %v1810, 1.442695
  %v1812 = vpow.pop %v1811
  %v1813 = vadd.f32 %v1812, 1.0
  %v1814 = vrcp.pop %v1813
  %v1815 = vmul.f32 1.0, %v1814
  %v1816 = vmul.f32 %v1808, %v1698
  %v1817 = vmul.f32 %v1802, %v1809
  %v1818 = vadd.f32 %v1816, %v1817
  %v1819 = vtanh.pop %v1818
  %v1820 = vmul.f32 %v1815, %v1819
  %1821 = vst [vmem:[#allocation7] sm:$0xff] %v1820
  %1822 = vst [vmem:[#allocation8] sm:$0xff] %v1818
  %v1823 = vpack.c.bf16 %v1820, %v1820
  %s1824 = scalar_lea.vmem [#allocation6], 28
  %1825 = vst [vmem:[%s1824] sm:$0xf] %v1823
  %v1826 = vld [vmem:[#allocation6] sm:$0xf]
  %v1827 = vld [vmem:[#allocation6 + $0x4] sm:$0xf]
  %v1828 = vld [vmem:[#allocation6 + $0x8] sm:$0xf]
  %v1829 = vld [vmem:[#allocation6 + $0xc] sm:$0xf]
  %v1830 = vld [vmem:[#allocation6 + $0x10] sm:$0xf]
  %v1831 = vld [vmem:[#allocation6 + $0x14] sm:$0xf]
  %v1832 = vld [vmem:[#allocation6 + $0x18] sm:$0xf]
  %v1833 = vld [vmem:[#allocation6 + $0x1c] sm:$0xf]
  %v1834 = vld [vmem:[#allocation3] sm:$0xff]
  %v1835 = vld [vmem:[#allocation3 + $0x8] sm:$0xff]
  %v1836 = vld [vmem:[#allocation3 + $0x10] sm:$0xff]
  %v1837 = vld [vmem:[#allocation3 + $0x18] sm:$0xff]
  %v1838 = vld [vmem:[#allocation3 + $0x20] sm:$0xff]
  %v1839 = vld [vmem:[#allocation3 + $0x28] sm:$0xff]
  %v1840 = vld [vmem:[#allocation3 + $0x30] sm:$0xff]
  %v1841 = vld [vmem:[#allocation3 + $0x38] sm:$0xff]
  %v1842 = vld [vmem:[#allocation3 + $0x40] sm:$0xff]
  %v1843 = vld [vmem:[#allocation3 + $0x48] sm:$0xff]
  %v1844 = vld [vmem:[#allocation3 + $0x50] sm:$0xff]
  %v1845 = vld [vmem:[#allocation3 + $0x58] sm:$0xff]
  %v1846 = vld [vmem:[#allocation3 + $0x60] sm:$0xff]
  %v1847 = vld [vmem:[#allocation3 + $0x68] sm:$0xff]
  %v1848 = vld [vmem:[#allocation3 + $0x70] sm:$0xff]
  %v1849 = vld [vmem:[#allocation3 + $0x78] sm:$0xff]
  %v1850 = vld [vmem:[#allocation3 + $0x80] sm:$0xff]
  %v1851 = vld [vmem:[#allocation3 + $0x88] sm:$0xff]
  %v1852 = vld [vmem:[#allocation3 + $0x90] sm:$0xff]
  %v1853 = vld [vmem:[#allocation3 + $0x98] sm:$0xff]
  %v1854 = vld [vmem:[#allocation3 + $0xa0] sm:$0xff]
  %v1855 = vld [vmem:[#allocation3 + $0xa8] sm:$0xff]
  %v1856 = vld [vmem:[#allocation3 + $0xb0] sm:$0xff]
  %v1857 = vld [vmem:[#allocation3 + $0xb8] sm:$0xff]
  %v1858 = vld [vmem:[#allocation3 + $0xc0] sm:$0xff]
  %v1859 = vld [vmem:[#allocation3 + $0xc8] sm:$0xff]
  %v1860 = vld [vmem:[#allocation3 + $0xd0] sm:$0xff]
  %v1861 = vld [vmem:[#allocation3 + $0xd8] sm:$0xff]
  %v1862 = vld [vmem:[#allocation3 + $0xe0] sm:$0xff]
  %v1863 = vld [vmem:[#allocation3 + $0xe8] sm:$0xff]
  %v1864 = vld [vmem:[#allocation3 + $0xf0] sm:$0xff]
  %v1865 = vld [vmem:[#allocation3 + $0xf8] sm:$0xff]
  %v1874 = vunpack.c.l.b16 %v1826
  %v1875 = vunpack.c.l.b16 %v1827
  %v1876 = vunpack.c.l.b16 %v1828
  %v1877 = vunpack.c.l.b16 %v1829
  %v1878 = vunpack.c.l.b16 %v1830
  %v1879 = vunpack.c.l.b16 %v1831
  %v1880 = vunpack.c.l.b16 %v1832
  %v1881 = vunpack.c.l.b16 %v1833
  %v1882 = vpack.c.b16 %v1875, %v1874
  %v1883 = vpack.c.b16 %v1877, %v1876
  %v1884 = vpack.c.b16 %v1879, %v1878
  %v1885 = vpack.c.b16 %v1881, %v1880
  %v1922 = vunpack.c.l.b16 %v1834
  %v1923 = vunpack.c.h.b16 %v1834
  %v1924 = vunpack.c.l.b16 %v1835
  %v1925 = vunpack.c.h.b16 %v1835
  %v1926 = vunpack.c.l.b16 %v1836
  %v1927 = vunpack.c.h.b16 %v1836
  %v1928 = vunpack.c.l.b16 %v1837
  %v1929 = vunpack.c.h.b16 %v1837
  %v1930 = vunpack.c.l.b16 %v1838
  %v1931 = vunpack.c.h.b16 %v1838
  %v1932 = vunpack.c.l.b16 %v1839
  %v1933 = vunpack.c.h.b16 %v1839
  %v1934 = vunpack.c.l.b16 %v1840
  %v1935 = vunpack.c.h.b16 %v1840
  %v1936 = vunpack.c.l.b16 %v1841
  %v1937 = vunpack.c.h.b16 %v1841
  %v1938 = vunpack.c.l.b16 %v1842
  %v1939 = vunpack.c.h.b16 %v1842
  %v1940 = vunpack.c.l.b16 %v1843
  %v1941 = vunpack.c.h.b16 %v1843
  %v1942 = vunpack.c.l.b16 %v1844
  %v1943 = vunpack.c.h.b16 %v1844
  %v1944 = vunpack.c.l.b16 %v1845
  %v1945 = vunpack.c.h.b16 %v1845
  %v1946 = vunpack.c.l.b16 %v1846
  %v1947 = vunpack.c.h.b16 %v1846
  %v1948 = vunpack.c.l.b16 %v1847
  %v1949 = vunpack.c.h.b16 %v1847
  %v1950 = vunpack.c.l.b16 %v1848
  %v1951 = vunpack.c.h.b16 %v1848
  %v1952 = vunpack.c.l.b16 %v1849
  %v1953 = vunpack.c.h.b16 %v1849
  %v1954 = vunpack.c.l.b16 %v1850
  %v1955 = vunpack.c.h.b16 %v1850
  %v1956 = vunpack.c.l.b16 %v1851
  %v1957 = vunpack.c.h.b16 %v1851
  %v1958 = vunpack.c.l.b16 %v1852
  %v1959 = vunpack.c.h.b16 %v1852
  %v1960 = vunpack.c.l.b16 %v1853
  %v1961 = vunpack.c.h.b16 %v1853
  %v1962 = vunpack.c.l.b16 %v1854
  %v1963 = vunpack.c.h.b16 %v1854
  %v1964 = vunpack.c.l.b16 %v1855
  %v1965 = vunpack.c.h.b16 %v1855
  %v1966 = vunpack.c.l.b16 %v1856
  %v1967 = vunpack.c.h.b16 %v1856
  %v1968 = vunpack.c.l.b16 %v1857
  %v1969 = vunpack.c.h.b16 %v1857
  %v1970 = vunpack.c.l.b16 %v1858
  %v1971 = vunpack.c.h.b16 %v1858
  %v1972 = vunpack.c.l.b16 %v1859
  %v1973 = vunpack.c.h.b16 %v1859
  %v1974 = vunpack.c.l.b16 %v1860
  %v1975 = vunpack.c.h.b16 %v1860
  %v1976 = vunpack.c.l.b16 %v1861
  %v1977 = vunpack.c.h.b16 %v1861
  %v1978 = vunpack.c.l.b16 %v1862
  %v1979 = vunpack.c.h.b16 %v1862
  %v1980 = vunpack.c.l.b16 %v1863
  %v1981 = vunpack.c.h.b16 %v1863
  %v1982 = vunpack.c.l.b16 %v1864
  %v1983 = vunpack.c.h.b16 %v1864
  %v1984 = vunpack.c.l.b16 %v1865
  %v1985 = vunpack.c.h.b16 %v1865
  %v1986 = vpack.c.b16 %v1926, %v1922
  %v1987 = vpack.c.b16 %v1927, %v1923
  %v1988 = vpack.c.b16 %v1928, %v1924
  %v1989 = vpack.c.b16 %v1929, %v1925
  %v1990 = vpack.c.b16 %v1934, %v1930
  %v1991 = vpack.c.b16 %v1935, %v1931
  %v1992 = vpack.c.b16 %v1936, %v1932
  %v1993 = vpack.c.b16 %v1937, %v1933
  %v1994 = vpack.c.b16 %v1942, %v1938
  %v1995 = vpack.c.b16 %v1943, %v1939
  %v1996 = vpack.c.b16 %v1944, %v1940
  %v1997 = vpack.c.b16 %v1945, %v1941
  %v1998 = vpack.c.b16 %v1950, %v1946
  %v1999 = vpack.c.b16 %v1951, %v1947
  %v2000 = vpack.c.b16 %v1952, %v1948
  %v2001 = vpack.c.b16 %v1953, %v1949
  %v2002 = vpack.c.b16 %v1958, %v1954
  %v2003 = vpack.c.b16 %v1959, %v1955
  %v2004 = vpack.c.b16 %v1960, %v1956
  %v2005 = vpack.c.b16 %v1961, %v1957
  %v2006 = vpack.c.b16 %v1966, %v1962
  %v2007 = vpack.c.b16 %v1967, %v1963
  %v2008 = vpack.c.b16 %v1968, %v1964
  %v2009 = vpack.c.b16 %v1969, %v1965
  %v2010 = vpack.c.b16 %v1974, %v1970
  %v2011 = vpack.c.b16 %v1975, %v1971
  %v2012 = vpack.c.b16 %v1976, %v1972
  %v2013 = vpack.c.b16 %v1977, %v1973
  %v2014 = vpack.c.b16 %v1982, %v1978
  %v2015 = vpack.c.b16 %v1983, %v1979
  %v2016 = vpack.c.b16 %v1984, %v1980
  %v2017 = vpack.c.b16 %v1985, %v1981
  %2050 = vmatprep.subr.bf16.mxu0 %v2015
  %2051 = vmatpush1.bf16.msra.mxu0 %v2014
  %2052 = vmatprep.subr.bf16.mxu0 %v2011
  %2053 = vmatpush1.bf16.msra.mxu0 %v2010
  %2054 = vmatprep.subr.bf16.mxu0 %v2007
  %2055 = vmatpush1.bf16.msra.mxu0 %v2006
  %2056 = vmatprep.subr.bf16.mxu0 %v2003
  %2057 = vmatpush1.bf16.msra.mxu0 %v2002
  %2058 = vmatprep.subr.bf16.mxu0 %v1999
  %2059 = vmatpush1.bf16.msra.mxu0 %v1998
  %2060 = vmatprep.subr.bf16.mxu0 %v1995
  %2061 = vmatpush1.bf16.msra.mxu0 %v1994
  %2062 = vmatprep.subr.bf16.mxu0 %v1991
  %2063 = vmatpush1.bf16.msra.mxu0 %v1990
  %2064 = vmatprep.subr.bf16.mxu0 %v1987
  %2065 = vmatpush1.bf16.msra.mxu0 %v1986
  %2066 = vmatprep.subr.bf16.mxu0 0
  %2067 = vmatpush2.bf16.msra.mxu0 0
  %2068 = vmatprep.subr.bf16.mxu0 0
  %2069 = vmatpush2.bf16.msra.mxu0 0
  %2070 = vmatprep.subr.bf16.mxu0 0
  %2071 = vmatpush2.bf16.msra.mxu0 0
  %2072 = vmatprep.subr.bf16.mxu0 0
  %2073 = vmatpush2.bf16.msra.mxu0 0
  %2074 = vmatprep.subr.bf16.mxu0 0
  %2075 = vmatpush2.bf16.msra.mxu0 0
  %2076 = vmatprep.subr.bf16.mxu0 0
  %2077 = vmatpush2.bf16.msra.mxu0 0
  %2078 = vmatprep.subr.bf16.mxu0 0
  %2079 = vmatpush2.bf16.msra.mxu0 0
  %2080 = vmatprep.subr.bf16.mxu0 0
  %2081 = vmatpush2.bf16.msra.mxu0 0
  %2082 = vmatprep.mubr.bf16.mxu0 0
  %2083 = vmatmul.mubr.bf16.gmra.mxu0 %v1882
  %v2084 = vpop.f32.mrf.mxu0
  %v2085 = vadd.f32 0.0, %v2084
  %v2086 = vpop.f32.mrf.mxu0
  %v2087 = vadd.f32 0.0, %v2086
  %v2088 = vpop.f32.mrf.mxu0
  %v2089 = vadd.f32 0.0, %v2088
  %v2090 = vpop.f32.mrf.mxu0
  %v2091 = vadd.f32 0.0, %v2090
  %2092 = vmatprep.mubr.bf16.mxu0 0
  %2093 = vmatmul.mubr.bf16.gmra.mxu0 %v1883
  %v2094 = vpop.f32.mrf.mxu0
  %v2095 = vadd.f32 0.0, %v2094
  %v2096 = vpop.f32.mrf.mxu0
  %v2097 = vadd.f32 0.0, %v2096
  %v2098 = vpop.f32.mrf.mxu0
  %v2099 = vadd.f32 0.0, %v2098
  %v2100 = vpop.f32.mrf.mxu0
  %v2101 = vadd.f32 0.0, %v2100
  %2102 = vmatprep.mubr.bf16.mxu0 0
  %2103 = vmatmul.mubr.bf16.gmra.mxu0 %v1884
  %v2104 = vpop.f32.mrf.mxu0
  %v2105 = vadd.f32 0.0, %v2104
  %v2106 = vpop.f32.mrf.mxu0
  %v2107 = vadd.f32 0.0, %v2106
  %v2108 = vpop.f32.mrf.mxu0
  %v2109 = vadd.f32 0.0, %v2108
  %v2110 = vpop.f32.mrf.mxu0
  %v2111 = vadd.f32 0.0, %v2110
  %2112 = vmatprep.mubr.bf16.mxu0 0
  %2113 = vmatmul.mubr.bf16.gmra.mxu0 %v1885
  %v2114 = vpop.f32.mrf.mxu0
  %v2115 = vadd.f32 0.0, %v2114
  %v2116 = vpop.f32.mrf.mxu0
  %v2117 = vadd.f32 0.0, %v2116
  %v2118 = vpop.f32.mrf.mxu0
  %v2119 = vadd.f32 0.0, %v2118
  %v2120 = vpop.f32.mrf.mxu0
  %v2121 = vadd.f32 0.0, %v2120
  %2122 = vdwg.mxu0
  %2123 = vmatprep.subr.bf16.mxu0 %v2017
  %2124 = vmatpush1.bf16.msra.mxu0 %v2016
  %2125 = vmatprep.subr.bf16.mxu0 %v2013
  %2126 = vmatpush1.bf16.msra.mxu0 %v2012
  %2127 = vmatprep.subr.bf16.mxu0 %v2009
  %2128 = vmatpush1.bf16.msra.mxu0 %v2008
  %2129 = vmatprep.subr.bf16.mxu0 %v2005
  %2130 = vmatpush1.bf16.msra.mxu0 %v2004
  %2131 = vmatprep.subr.bf16.mxu0 %v2001
  %2132 = vmatpush1.bf16.msra.mxu0 %v2000
  %2133 = vmatprep.subr.bf16.mxu0 %v1997
  %2134 = vmatpush1.bf16.msra.mxu0 %v1996
  %2135 = vmatprep.subr.bf16.mxu0 %v1993
  %2136 = vmatpush1.bf16.msra.mxu0 %v1992
  %2137 = vmatprep.subr.bf16.mxu0 %v1989
  %2138 = vmatpush1.bf16.msra.mxu0 %v1988
  %2139 = vmatprep.subr.bf16.mxu0 0
  %2140 = vmatpush2.bf16.msra.mxu0 0
  %2141 = vmatprep.subr.bf16.mxu0 0
  %2142 = vmatpush2.bf16.msra.mxu0 0
  %2143 = vmatprep.subr.bf16.mxu0 0
  %2144 = vmatpush2.bf16.msra.mxu0 0
  %2145 = vmatprep.subr.bf16.mxu0 0
  %2146 = vmatpush2.bf16.msra.mxu0 0
  %2147 = vmatprep.subr.bf16.mxu0 0
  %2148 = vmatpush2.bf16.msra.mxu0 0
  %2149 = vmatprep.subr.bf16.mxu0 0
  %2150 = vmatpush2.bf16.msra.mxu0 0
  %2151 = vmatprep.subr.bf16.mxu0 0
  %2152 = vmatpush2.bf16.msra.mxu0 0
  %2153 = vmatprep.subr.bf16.mxu0 0
  %2154 = vmatpush2.bf16.msra.mxu0 0
  %2155 = vmatprep.mubr.bf16.mxu0 0
  %2156 = vmatmul.mubr.bf16.gmra.mxu0 %v1882
  %v2157 = vpop.f32.mrf.mxu0
  %v2158 = vadd.f32 0.0, %v2157
  %v2159 = vpop.f32.mrf.mxu0
  %v2160 = vadd.f32 0.0, %v2159
  %v2161 = vpop.f32.mrf.mxu0
  %v2162 = vadd.f32 0.0, %v2161
  %v2163 = vpop.f32.mrf.mxu0
  %v2164 = vadd.f32 0.0, %v2163
  %2165 = vmatprep.mubr.bf16.mxu0 0
  %2166 = vmatmul.mubr.bf16.gmra.mxu0 %v1883
  %v2167 = vpop.f32.mrf.mxu0
  %v2168 = vadd.f32 0.0, %v2167
  %v2169 = vpop.f32.mrf.mxu0
  %v2170 = vadd.f32 0.0, %v2169
  %v2171 = vpop.f32.mrf.mxu0
  %v2172 = vadd.f32 0.0, %v2171
  %v2173 = vpop.f32.mrf.mxu0
  %v2174 = vadd.f32 0.0, %v2173
  %2175 = vmatprep.mubr.bf16.mxu0 0
  %2176 = vmatmul.mubr.bf16.gmra.mxu0 %v1884
  %v2177 = vpop.f32.mrf.mxu0
  %v2178 = vadd.f32 0.0, %v2177
  %v2179 = vpop.f32.mrf.mxu0
  %v2180 = vadd.f32 0.0, %v2179
  %v2181 = vpop.f32.mrf.mxu0
  %v2182 = vadd.f32 0.0, %v2181
  %v2183 = vpop.f32.mrf.mxu0
  %v2184 = vadd.f32 0.0, %v2183
  %2185 = vmatprep.mubr.bf16.mxu0 0
  %2186 = vmatmul.mubr.bf16.gmra.mxu0 %v1885
  %v2187 = vpop.f32.mrf.mxu0
  %v2188 = vadd.f32 0.0, %v2187
  %v2189 = vpop.f32.mrf.mxu0
  %v2190 = vadd.f32 0.0, %v2189
  %v2191 = vpop.f32.mrf.mxu0
  %v2192 = vadd.f32 0.0, %v2191
  %v2193 = vpop.f32.mrf.mxu0
  %v2194 = vadd.f32 0.0, %v2193
  %2195 = vdwg.mxu0
  %2196 = vst [vmem:[#allocation5] sm:$0xff] %v2085
  %2197 = vst [vmem:[#allocation5 + $0x8] sm:$0xff] %v2087
  %2198 = vst [vmem:[#allocation5 + $0x10] sm:$0xff] %v2158
  %2199 = vst [vmem:[#allocation5 + $0x18] sm:$0xff] %v2160
  %2200 = vst [vmem:[#allocation5 + $0x20] sm:$0xff] %v2089
  %2201 = vst [vmem:[#allocation5 + $0x28] sm:$0xff] %v2091
  %2202 = vst [vmem:[#allocation5 + $0x30] sm:$0xff] %v2162
  %2203 = vst [vmem:[#allocation5 + $0x38] sm:$0xff] %v2164
  %2204 = vst [vmem:[#allocation5 + $0x40] sm:$0xff] %v2095
  %2205 = vst [vmem:[#allocation5 + $0x48] sm:$0xff] %v2097
  %2206 = vst [vmem:[#allocation5 + $0x50] sm:$0xff] %v2168
  %2207 = vst [vmem:[#allocation5 + $0x58] sm:$0xff] %v2170
  %2208 = vst [vmem:[#allocation5 + $0x60] sm:$0xff] %v2099
  %2209 = vst [vmem:[#allocation5 + $0x68] sm:$0xff] %v2101
  %2210 = vst [vmem:[#allocation5 + $0x70] sm:$0xff] %v2172
  %2211 = vst [vmem:[#allocation5 + $0x78] sm:$0xff] %v2174
  %2212 = vst [vmem:[#allocation5 + $0x80] sm:$0xff] %v2105
  %2213 = vst [vmem:[#allocation5 + $0x88] sm:$0xff] %v2107
  %2214 = vst [vmem:[#allocation5 + $0x90] sm:$0xff] %v2178
  %2215 = vst [vmem:[#allocation5 + $0x98] sm:$0xff] %v2180
  %2216 = vst [vmem:[#allocation5 + $0xa0] sm:$0xff] %v2109
  %2217 = vst [vmem:[#allocation5 + $0xa8] sm:$0xff] %v2111
  %2218 = vst [vmem:[#allocation5 + $0xb0] sm:$0xff] %v2182
  %2219 = vst [vmem:[#allocation5 + $0xb8] sm:$0xff] %v2184
  %2220 = vst [vmem:[#allocation5 + $0xc0] sm:$0xff] %v2115
  %2221 = vst [vmem:[#allocation5 + $0xc8] sm:$0xff] %v2117
  %2222 = vst [vmem:[#allocation5 + $0xd0] sm:$0xff] %v2188
  %2223 = vst [vmem:[#allocation5 + $0xd8] sm:$0xff] %v2190
  %2224 = vst [vmem:[#allocation5 + $0xe0] sm:$0xff] %v2119
  %2225 = vst [vmem:[#allocation5 + $0xe8] sm:$0xff] %v2121
  %2226 = vst [vmem:[#allocation5 + $0xf0] sm:$0xff] %v2192
  %2227 = vst [vmem:[#allocation5 + $0xf8] sm:$0xff] %v2194
  %s2228 = scalar_lea.vmem [#allocation4], 256
  %v2229 = vld [vmem:[%s2228] sm:$0xff]
  %v2230 = vld [vmem:[%s2228 + $0x8] sm:$0xff]
  %v2231 = vld [vmem:[%s2228 + $0x10] sm:$0xff]
  %v2232 = vld [vmem:[%s2228 + $0x18] sm:$0xff]
  %v2233 = vld [vmem:[%s2228 + $0x20] sm:$0xff]
  %v2234 = vld [vmem:[%s2228 + $0x28] sm:$0xff]
  %v2235 = vld [vmem:[%s2228 + $0x30] sm:$0xff]
  %v2236 = vld [vmem:[%s2228 + $0x38] sm:$0xff]
  %v2237 = vld [vmem:[%s2228 + $0x40] sm:$0xff]
  %v2238 = vld [vmem:[%s2228 + $0x48] sm:$0xff]
  %v2239 = vld [vmem:[%s2228 + $0x50] sm:$0xff]
  %v2240 = vld [vmem:[%s2228 + $0x58] sm:$0xff]
  %v2241 = vld [vmem:[%s2228 + $0x60] sm:$0xff]
  %v2242 = vld [vmem:[%s2228 + $0x68] sm:$0xff]
  %v2243 = vld [vmem:[%s2228 + $0x70] sm:$0xff]
  %v2244 = vld [vmem:[%s2228 + $0x78] sm:$0xff]
  %v2245 = vld [vmem:[%s2228 + $0x80] sm:$0xff]
  %v2246 = vld [vmem:[%s2228 + $0x88] sm:$0xff]
  %v2247 = vld [vmem:[%s2228 + $0x90] sm:$0xff]
  %v2248 = vld [vmem:[%s2228 + $0x98] sm:$0xff]
  %v2249 = vld [vmem:[%s2228 + $0xa0] sm:$0xff]
  %v2250 = vld [vmem:[%s2228 + $0xa8] sm:$0xff]
  %v2251 = vld [vmem:[%s2228 + $0xb0] sm:$0xff]
  %v2252 = vld [vmem:[%s2228 + $0xb8] sm:$0xff]
  %v2253 = vld [vmem:[%s2228 + $0xc0] sm:$0xff]
  %v2254 = vld [vmem:[%s2228 + $0xc8] sm:$0xff]
  %v2255 = vld [vmem:[%s2228 + $0xd0] sm:$0xff]
  %v2256 = vld [vmem:[%s2228 + $0xd8] sm:$0xff]
  %v2257 = vld [vmem:[%s2228 + $0xe0] sm:$0xff]
  %v2258 = vld [vmem:[%s2228 + $0xe8] sm:$0xff]
  %v2259 = vld [vmem:[%s2228 + $0xf0] sm:$0xff]
  %v2260 = vld [vmem:[%s2228 + $0xf8] sm:$0xff]
  %s2261 = scalar_lea.vmem %s4, 4
  %v2262 = vld [vmem:[%s2261] sm:$0xf]
  %s2263 = scalar_lea.vmem [#allocation7], 8
  %v2264 = vld [vmem:[%s2263] sm:$0xff]
  %s2265 = scalar_lea.vmem [#allocation8], 8
  %v2266 = vld [vmem:[%s2265] sm:$0xff]
  %v2267 = vld [vmem:[%s618] sm:$0xff]
  %v2268 = vld [vmem:[%s618 + $0x8] sm:$0xff]
  %v2269 = vld [vmem:[%s618 + $0x10] sm:$0xff]
  %v2270 = vld [vmem:[%s618 + $0x18] sm:$0xff]
  %v2271 = vpack.c.bf16 %v2264, %v2264
  %v2304 = vunpack.c.l.b16 %v2229
  %v2305 = vunpack.c.h.b16 %v2229
  %v2306 = vunpack.c.l.b16 %v2230
  %v2307 = vunpack.c.h.b16 %v2230
  %v2308 = vunpack.c.l.b16 %v2231
  %v2309 = vunpack.c.h.b16 %v2231
  %v2310 = vunpack.c.l.b16 %v2232
  %v2311 = vunpack.c.h.b16 %v2232
  %v2312 = vunpack.c.l.b16 %v2233
  %v2313 = vunpack.c.h.b16 %v2233
  %v2314 = vunpack.c.l.b16 %v2234
  %v2315 = vunpack.c.h.b16 %v2234
  %v2316 = vunpack.c.l.b16 %v2235
  %v2317 = vunpack.c.h.b16 %v2235
  %v2318 = vunpack.c.l.b16 %v2236
  %v2319 = vunpack.c.h.b16 %v2236
  %v2320 = vunpack.c.l.b16 %v2237
  %v2321 = vunpack.c.h.b16 %v2237
  %v2322 = vunpack.c.l.b16 %v2238
  %v2323 = vunpack.c.h.b16 %v2238
  %v2324 = vunpack.c.l.b16 %v2239
  %v2325 = vunpack.c.h.b16 %v2239
  %v2326 = vunpack.c.l.b16 %v2240
  %v2327 = vunpack.c.h.b16 %v2240
  %v2328 = vunpack.c.l.b16 %v2241
  %v2329 = vunpack.c.h.b16 %v2241
  %v2330 = vunpack.c.l.b16 %v2242
  %v2331 = vunpack.c.h.b16 %v2242
  %v2332 = vunpack.c.l.b16 %v2243
  %v2333 = vunpack.c.h.b16 %v2243
  %v2334 = vunpack.c.l.b16 %v2244
  %v2335 = vunpack.c.h.b16 %v2244
  %v2336 = vunpack.c.l.b16 %v2245
  %v2337 = vunpack.c.h.b16 %v2245
  %v2338 = vunpack.c.l.b16 %v2246
  %v2339 = vunpack.c.h.b16 %v2246
  %v2340 = vunpack.c.l.b16 %v2247
  %v2341 = vunpack.c.h.b16 %v2247
  %v2342 = vunpack.c.l.b16 %v2248
  %v2343 = vunpack.c.h.b16 %v2248
  %v2344 = vunpack.c.l.b16 %v2249
  %v2345 = vunpack.c.h.b16 %v2249
  %v2346 = vunpack.c.l.b16 %v2250
  %v2347 = vunpack.c.h.b16 %v2250
  %v2348 = vunpack.c.l.b16 %v2251
  %v2349 = vunpack.c.h.b16 %v2251
  %v2350 = vunpack.c.l.b16 %v2252
  %v2351 = vunpack.c.h.b16 %v2252
  %v2352 = vunpack.c.l.b16 %v2253
  %v2353 = vunpack.c.h.b16 %v2253
  %v2354 = vunpack.c.l.b16 %v2254
  %v2355 = vunpack.c.h.b16 %v2254
  %v2356 = vunpack.c.l.b16 %v2255
  %v2357 = vunpack.c.h.b16 %v2255
  %v2358 = vunpack.c.l.b16 %v2256
  %v2359 = vunpack.c.h.b16 %v2256
  %v2360 = vunpack.c.l.b16 %v2257
  %v2361 = vunpack.c.h.b16 %v2257
  %v2362 = vunpack.c.l.b16 %v2258
  %v2363 = vunpack.c.h.b16 %v2258
  %v2364 = vunpack.c.l.b16 %v2259
  %v2365 = vunpack.c.h.b16 %v2259
  %v2366 = vunpack.c.l.b16 %v2260
  %v2367 = vunpack.c.h.b16 %v2260
  %v2368 = vpack.c.b16 %v2308, %v2304
  %v2369 = vpack.c.b16 %v2309, %v2305
  %v2370 = vpack.c.b16 %v2310, %v2306
  %v2371 = vpack.c.b16 %v2311, %v2307
  %v2372 = vpack.c.b16 %v2316, %v2312
  %v2373 = vpack.c.b16 %v2317, %v2313
  %v2374 = vpack.c.b16 %v2318, %v2314
  %v2375 = vpack.c.b16 %v2319, %v2315
  %v2376 = vpack.c.b16 %v2324, %v2320
  %v2377 = vpack.c.b16 %v2325, %v2321
  %v2378 = vpack.c.b16 %v2326, %v2322
  %v2379 = vpack.c.b16 %v2327, %v2323
  %v2380 = vpack.c.b16 %v2332, %v2328
  %v2381 = vpack.c.b16 %v2333, %v2329
  %v2382 = vpack.c.b16 %v2334, %v2330
  %v2383 = vpack.c.b16 %v2335, %v2331
  %v2384 = vpack.c.b16 %v2340, %v2336
  %v2385 = vpack.c.b16 %v2341, %v2337
  %v2386 = vpack.c.b16 %v2342, %v2338
  %v2387 = vpack.c.b16 %v2343, %v2339
  %v2388 = vpack.c.b16 %v2348, %v2344
  %v2389 = vpack.c.b16 %v2349, %v2345
  %v2390 = vpack.c.b16 %v2350, %v2346
  %v2391 = vpack.c.b16 %v2351, %v2347
  %v2392 = vpack.c.b16 %v2356, %v2352
  %v2393 = vpack.c.b16 %v2357, %v2353
  %v2394 = vpack.c.b16 %v2358, %v2354
  %v2395 = vpack.c.b16 %v2359, %v2355
  %v2396 = vpack.c.b16 %v2364, %v2360
  %v2397 = vpack.c.b16 %v2365, %v2361
  %v2398 = vpack.c.b16 %v2366, %v2362
  %v2399 = vpack.c.b16 %v2367, %v2363
  %2432 = vmatprep.subr.bf16.mxu0 %v2397
  %2433 = vmatpush1.bf16.msra.mxu0 %v2396
  %2434 = vmatprep.subr.bf16.mxu0 %v2393
  %2435 = vmatpush1.bf16.msra.mxu0 %v2392
  %2436 = vmatprep.subr.bf16.mxu0 %v2389
  %2437 = vmatpush1.bf16.msra.mxu0 %v2388
  %2438 = vmatprep.subr.bf16.mxu0 %v2385
  %2439 = vmatpush1.bf16.msra.mxu0 %v2384
  %2440 = vmatprep.subr.bf16.mxu0 %v2381
  %2441 = vmatpush1.bf16.msra.mxu0 %v2380
  %2442 = vmatprep.subr.bf16.mxu0 %v2377
  %2443 = vmatpush1.bf16.msra.mxu0 %v2376
  %2444 = vmatprep.subr.bf16.mxu0 %v2373
  %2445 = vmatpush1.bf16.msra.mxu0 %v2372
  %2446 = vmatprep.subr.bf16.mxu0 %v2369
  %2447 = vmatpush1.bf16.msra.mxu0 %v2368
  %2448 = vmatprep.subr.bf16.mxu0 0
  %2449 = vmatpush2.bf16.msra.mxu0 0
  %2450 = vmatprep.subr.bf16.mxu0 0
  %2451 = vmatpush2.bf16.msra.mxu0 0
  %2452 = vmatprep.subr.bf16.mxu0 0
  %2453 = vmatpush2.bf16.msra.mxu0 0
  %2454 = vmatprep.subr.bf16.mxu0 0
  %2455 = vmatpush2.bf16.msra.mxu0 0
  %2456 = vmatprep.subr.bf16.mxu0 0
  %2457 = vmatpush2.bf16.msra.mxu0 0
  %2458 = vmatprep.subr.bf16.mxu0 0
  %2459 = vmatpush2.bf16.msra.mxu0 0
  %2460 = vmatprep.subr.bf16.mxu0 0
  %2461 = vmatpush2.bf16.msra.mxu0 0
  %2462 = vmatprep.subr.bf16.mxu0 0
  %2463 = vmatpush2.bf16.msra.mxu0 0
  %2464 = vmatprep.mubr.bf16.mxu0 0
  %2465 = vmatmul.mubr.bf16.gmra.mxu0 %v2271
  %v2466 = vpop.f32.mrf.mxu0
  %v2467 = vadd.f32 0.0, %v2466
  %v2468 = vpop.f32.mrf.mxu0
  %v2469 = vadd.f32 0.0, %v2468
  %v2470 = vpop.f32.mrf.mxu0
  %v2471 = vpop.f32.mrf.mxu0
  %2472 = vdwg.mxu0
  %2473 = vmatprep.subr.bf16.mxu0 %v2399
  %2474 = vmatpush1.bf16.msra.mxu0 %v2398
  %2475 = vmatprep.subr.bf16.mxu0 %v2395
  %2476 = vmatpush1.bf16.msra.mxu0 %v2394
  %2477 = vmatprep.subr.bf16.mxu0 %v2391
  %2478 = vmatpush1.bf16.msra.mxu0 %v2390
  %2479 = vmatprep.subr.bf16.mxu0 %v2387
  %2480 = vmatpush1.bf16.msra.mxu0 %v2386
  %2481 = vmatprep.subr.bf16.mxu0 %v2383
  %2482 = vmatpush1.bf16.msra.mxu0 %v2382
  %2483 = vmatprep.subr.bf16.mxu0 %v2379
  %2484 = vmatpush1.bf16.msra.mxu0 %v2378
  %2485 = vmatprep.subr.bf16.mxu0 %v2375
  %2486 = vmatpush1.bf16.msra.mxu0 %v2374
  %2487 = vmatprep.subr.bf16.mxu0 %v2371
  %2488 = vmatpush1.bf16.msra.mxu0 %v2370
  %2489 = vmatprep.subr.bf16.mxu0 0
  %2490 = vmatpush2.bf16.msra.mxu0 0
  %2491 = vmatprep.subr.bf16.mxu0 0
  %2492 = vmatpush2.bf16.msra.mxu0 0
  %2493 = vmatprep.subr.bf16.mxu0 0
  %2494 = vmatpush2.bf16.msra.mxu0 0
  %2495 = vmatprep.subr.bf16.mxu0 0
  %2496 = vmatpush2.bf16.msra.mxu0 0
  %2497 = vmatprep.subr.bf16.mxu0 0
  %2498 = vmatpush2.bf16.msra.mxu0 0
  %2499 = vmatprep.subr.bf16.mxu0 0
  %2500 = vmatpush2.bf16.msra.mxu0 0
  %2501 = vmatprep.subr.bf16.mxu0 0
  %2502 = vmatpush2.bf16.msra.mxu0 0
  %2503 = vmatprep.subr.bf16.mxu0 0
  %2504 = vmatpush2.bf16.msra.mxu0 0
  %2505 = vmatprep.mubr.bf16.mxu0 0
  %2506 = vmatmul.mubr.bf16.gmra.mxu0 %v2271
  %v2507 = vpop.f32.mrf.mxu0
  %v2508 = vadd.f32 0.0, %v2507
  %v2509 = vpop.f32.mrf.mxu0
  %v2510 = vadd.f32 0.0, %v2509
  %v2511 = vpop.f32.mrf.mxu0
  %v2512 = vpop.f32.mrf.mxu0
  %2513 = vdwg.mxu0
  %v2514 = vadd.f32 %v2267, %v2467
  %v2515 = vadd.f32 %v2268, %v2469
  %v2516 = vadd.f32 %v2269, %v2508
  %v2517 = vadd.f32 %v2270, %v2510
  %v2519 = vlaneseq
  %v2520 = vshrl.u32 %v2519, 7
  %v2521 = vsub.s32 0, %v2520
  %v2522 = vrot.slane %v2262, %v2521
  %v2523 = vlaneseq
  %v2524 = vshrl.u32 %v2523, 7
  %v2525 = vsub.s32 1, %v2524
  %v2526 = vrot.slane %v2262, %v2525
  %v2527 = vlaneseq
  %v2528 = vshrl.u32 %v2527, 7
  %v2529 = vsub.s32 2, %v2528
  %v2530 = vrot.slane %v2262, %v2529
  %v2531 = vlaneseq
  %v2532 = vshrl.u32 %v2531, 7
  %v2533 = vsub.s32 3, %v2532
  %v2534 = vrot.slane %v2262, %v2533
  %v2539 = vadd.f32 %v2514, %v2522
  %v2540 = vadd.f32 %v2515, %v2526
  %v2541 = vadd.f32 %v2516, %v2530
  %v2542 = vadd.f32 %v2517, %v2534
  %v2543 = vxor.u32 %v2539, 2147483648
  %v2544 = vmul.f32 %v2543, 1.442695
  %v2545 = vpow.pop %v2544
  %v2546 = vadd.f32 %v2545, 1.0
  %v2547 = vrcp.pop %v2546
  %v2548 = vmul.f32 1.0, %v2547
  %v2549 = vxor.u32 %v2540, 2147483648
  %v2550 = vmul.f32 %v2549, 1.442695
  %v2551 = vpow.pop %v2550
  %v2552 = vadd.f32 %v2551, 1.0
  %v2553 = vrcp.pop %v2552
  %v2554 = vmul.f32 1.0, %v2553
  %v2555 = vtanh.pop %v2541
  %v2556 = vxor.u32 %v2542, 2147483648
  %v2557 = vmul.f32 %v2556, 1.442695
  %v2558 = vpow.pop %v2557
  %v2559 = vadd.f32 %v2558, 1.0
  %v2560 = vrcp.pop %v2559
  %v2561 = vmul.f32 1.0, %v2560
  %v2562 = vmul.f32 %v2554, %v2266
  %v2563 = vmul.f32 %v2548, %v2555
  %v2564 = vadd.f32 %v2562, %v2563
  %v2565 = vtanh.pop %v2564
  %v2566 = vmul.f32 %v2561, %v2565
  %2567 = vst [vmem:[%s2263] sm:$0xff] %v2566
  %2568 = vst [vmem:[%s2265] sm:$0xff] %v2564
  %v2569 = vpack.c.bf16 %v2566, %v2566
  %2570 = vst [vmem:[%s7] sm:$0xf] %v2569
  %v2571 = vld [vmem:[%s2263] sm:$0xff]
  %v2572 = vld [vmem:[%s2265] sm:$0xff]
  %v2573 = vld [vmem:[%s927] sm:$0xff]
  %v2574 = vld [vmem:[%s927 + $0x8] sm:$0xff]
  %v2575 = vld [vmem:[%s927 + $0x10] sm:$0xff]
  %v2576 = vld [vmem:[%s927 + $0x18] sm:$0xff]
  %v2577 = vpack.c.bf16 %v2571, %v2571
  %2578 = vmatprep.subr.bf16.mxu0 %v2397
  %2579 = vmatpush1.bf16.msra.mxu0 %v2396
  %2580 = vmatprep.subr.bf16.mxu0 %v2393
  %2581 = vmatpush1.bf16.msra.mxu0 %v2392
  %2582 = vmatprep.subr.bf16.mxu0 %v2389
  %2583 = vmatpush1.bf16.msra.mxu0 %v2388
  %2584 = vmatprep.subr.bf16.mxu0 %v2385
  %2585 = vmatpush1.bf16.msra.mxu0 %v2384
  %2586 = vmatprep.subr.bf16.mxu0 %v2381
  %2587 = vmatpush1.bf16.msra.mxu0 %v2380
  %2588 = vmatprep.subr.bf16.mxu0 %v2377
  %2589 = vmatpush1.bf16.msra.mxu0 %v2376
  %2590 = vmatprep.subr.bf16.mxu0 %v2373
  %2591 = vmatpush1.bf16.msra.mxu0 %v2372
  %2592 = vmatprep.subr.bf16.mxu0 %v2369
  %2593 = vmatpush1.bf16.msra.mxu0 %v2368
  %2594 = vmatprep.subr.bf16.mxu0 0
  %2595 = vmatpush2.bf16.msra.mxu0 0
  %2596 = vmatprep.subr.bf16.mxu0 0
  %2597 = vmatpush2.bf16.msra.mxu0 0
  %2598 = vmatprep.subr.bf16.mxu0 0
  %2599 = vmatpush2.bf16.msra.mxu0 0
  %2600 = vmatprep.subr.bf16.mxu0 0
  %2601 = vmatpush2.bf16.msra.mxu0 0
  %2602 = vmatprep.subr.bf16.mxu0 0
  %2603 = vmatpush2.bf16.msra.mxu0 0
  %2604 = vmatprep.subr.bf16.mxu0 0
  %2605 = vmatpush2.bf16.msra.mxu0 0
  %2606 = vmatprep.subr.bf16.mxu0 0
  %2607 = vmatpush2.bf16.msra.mxu0 0
  %2608 = vmatprep.subr.bf16.mxu0 0
  %2609 = vmatpush2.bf16.msra.mxu0 0
  %2610 = vmatprep.mubr.bf16.mxu0 0
  %2611 = vmatmul.mubr.bf16.gmra.mxu0 %v2577
  %v2612 = vpop.f32.mrf.mxu0
  %v2613 = vadd.f32 0.0, %v2612
  %v2614 = vpop.f32.mrf.mxu0
  %v2615 = vadd.f32 0.0, %v2614
  %v2616 = vpop.f32.mrf.mxu0
  %v2617 = vpop.f32.mrf.mxu0
  %2618 = vdwg.mxu0
  %2619 = vmatprep.subr.bf16.mxu0 %v2399
  %2620 = vmatpush1.bf16.msra.mxu0 %v2398
  %2621 = vmatprep.subr.bf16.mxu0 %v2395
  %2622 = vmatpush1.bf16.msra.mxu0 %v2394
  %2623 = vmatprep.subr.bf16.mxu0 %v2391
  %2624 = vmatpush1.bf16.msra.mxu0 %v2390
  %2625 = vmatprep.subr.bf16.mxu0 %v2387
  %2626 = vmatpush1.bf16.msra.mxu0 %v2386
  %2627 = vmatprep.subr.bf16.mxu0 %v2383
  %2628 = vmatpush1.bf16.msra.mxu0 %v2382
  %2629 = vmatprep.subr.bf16.mxu0 %v2379
  %2630 = vmatpush1.bf16.msra.mxu0 %v2378
  %2631 = vmatprep.subr.bf16.mxu0 %v2375
  %2632 = vmatpush1.bf16.msra.mxu0 %v2374
  %2633 = vmatprep.subr.bf16.mxu0 %v2371
  %2634 = vmatpush1.bf16.msra.mxu0 %v2370
  %2635 = vmatprep.subr.bf16.mxu0 0
  %2636 = vmatpush2.bf16.msra.mxu0 0
  %2637 = vmatprep.subr.bf16.mxu0 0
  %2638 = vmatpush2.bf16.msra.mxu0 0
  %2639 = vmatprep.subr.bf16.mxu0 0
  %2640 = vmatpush2.bf16.msra.mxu0 0
  %2641 = vmatprep.subr.bf16.mxu0 0
  %2642 = vmatpush2.bf16.msra.mxu0 0
  %2643 = vmatprep.subr.bf16.mxu0 0
  %2644 = vmatpush2.bf16.msra.mxu0 0
  %2645 = vmatprep.subr.bf16.mxu0 0
  %2646 = vmatpush2.bf16.msra.mxu0 0
  %2647 = vmatprep.subr.bf16.mxu0 0
  %2648 = vmatpush2.bf16.msra.mxu0 0
  %2649 = vmatprep.subr.bf16.mxu0 0
  %2650 = vmatpush2.bf16.msra.mxu0 0
  %2651 = vmatprep.mubr.bf16.mxu0 0
  %2652 = vmatmul.mubr.bf16.gmra.mxu0 %v2577
  %v2653 = vpop.f32.mrf.mxu0
  %v2654 = vadd.f32 0.0, %v2653
  %v2655 = vpop.f32.mrf.mxu0
  %v2656 = vadd.f32 0.0, %v2655
  %v2657 = vpop.f32.mrf.mxu0
  %v2658 = vpop.f32.mrf.mxu0
  %2659 = vdwg.mxu0
  %v2660 = vadd.f32 %v2573, %v2613
  %v2661 = vadd.f32 %v2574, %v2615
  %v2662 = vadd.f32 %v2575, %v2654
  %v2663 = vadd.f32 %v2576, %v2656
  %v2664 = vadd.f32 %v2660, %v2522
  %v2665 = vadd.f32 %v2661, %v2526
  %v2666 = vadd.f32 %v2662, %v2530
  %v2667 = vadd.f32 %v2663, %v2534
  %v2668 = vxor.u32 %v2664, 2147483648
  %v2669 = vmul.f32 %v2668, 1.442695
  %v2670 = vpow.pop %v2669
  %v2671 = vadd.f32 %v2670, 1.0
  %v2672 = vrcp.pop %v2671
  %v2673 = vmul.f32 1.0, %v2672
  %v2674 = vxor.u32 %v2665, 2147483648
  %v2675 = vmul.f32 %v2674, 1.442695
  %v2676 = vpow.pop %v2675
  %v2677 = vadd.f32 %v2676, 1.0
  %v2678 = vrcp.pop %v2677
  %v2679 = vmul.f32 1.0, %v2678
  %v2680 = vtanh.pop %v2666
  %v2681 = vxor.u32 %v2667, 2147483648
  %v2682 = vmul.f32 %v2681, 1.442695
  %v2683 = vpow.pop %v2682
  %v2684 = vadd.f32 %v2683, 1.0
  %v2685 = vrcp.pop %v2684
  %v2686 = vmul.f32 1.0, %v2685
  %v2687 = vmul.f32 %v2679, %v2572
  %v2688 = vmul.f32 %v2673, %v2680
  %v2689 = vadd.f32 %v2687, %v2688
  %v2690 = vtanh.pop %v2689
  %v2691 = vmul.f32 %v2686, %v2690
  %2692 = vst [vmem:[%s2263] sm:$0xff] %v2691
  %2693 = vst [vmem:[%s2265] sm:$0xff] %v2689
  %v2694 = vpack.c.bf16 %v2691, %v2691
  %s2695 = scalar_lea.vmem %s7, 4
  %2696 = vst [vmem:[%s2695] sm:$0xf] %v2694
  %v2697 = vld [vmem:[%s2263] sm:$0xff]
  %v2698 = vld [vmem:[%s2265] sm:$0xff]
  %v2699 = vld [vmem:[%s1056] sm:$0xff]
  %v2700 = vld [vmem:[%s1056 + $0x8] sm:$0xff]
  %v2701 = vld [vmem:[%s1056 + $0x10] sm:$0xff]
  %v2702 = vld [vmem:[%s1056 + $0x18] sm:$0xff]
  %v2703 = vpack.c.bf16 %v2697, %v2697
  %2704 = vmatprep.subr.bf16.mxu0 %v2397
  %2705 = vmatpush1.bf16.msra.mxu0 %v2396
  %2706 = vmatprep.subr.bf16.mxu0 %v2393
  %2707 = vmatpush1.bf16.msra.mxu0 %v2392
  %2708 = vmatprep.subr.bf16.mxu0 %v2389
  %2709 = vmatpush1.bf16.msra.mxu0 %v2388
  %2710 = vmatprep.subr.bf16.mxu0 %v2385
  %2711 = vmatpush1.bf16.msra.mxu0 %v2384
  %2712 = vmatprep.subr.bf16.mxu0 %v2381
  %2713 = vmatpush1.bf16.msra.mxu0 %v2380
  %2714 = vmatprep.subr.bf16.mxu0 %v2377
  %2715 = vmatpush1.bf16.msra.mxu0 %v2376
  %2716 = vmatprep.subr.bf16.mxu0 %v2373
  %2717 = vmatpush1.bf16.msra.mxu0 %v2372
  %2718 = vmatprep.subr.bf16.mxu0 %v2369
  %2719 = vmatpush1.bf16.msra.mxu0 %v2368
  %2720 = vmatprep.subr.bf16.mxu0 0
  %2721 = vmatpush2.bf16.msra.mxu0 0
  %2722 = vmatprep.subr.bf16.mxu0 0
  %2723 = vmatpush2.bf16.msra.mxu0 0
  %2724 = vmatprep.subr.bf16.mxu0 0
  %2725 = vmatpush2.bf16.msra.mxu0 0
  %2726 = vmatprep.subr.bf16.mxu0 0
  %2727 = vmatpush2.bf16.msra.mxu0 0
  %2728 = vmatprep.subr.bf16.mxu0 0
  %2729 = vmatpush2.bf16.msra.mxu0 0
  %2730 = vmatprep.subr.bf16.mxu0 0
  %2731 = vmatpush2.bf16.msra.mxu0 0
  %2732 = vmatprep.subr.bf16.mxu0 0
  %2733 = vmatpush2.bf16.msra.mxu0 0
  %2734 = vmatprep.subr.bf16.mxu0 0
  %2735 = vmatpush2.bf16.msra.mxu0 0
  %2736 = vmatprep.mubr.bf16.mxu0 0
  %2737 = vmatmul.mubr.bf16.gmra.mxu0 %v2703
  %v2738 = vpop.f32.mrf.mxu0
  %v2739 = vadd.f32 0.0, %v2738
  %v2740 = vpop.f32.mrf.mxu0
  %v2741 = vadd.f32 0.0, %v2740
  %v2742 = vpop.f32.mrf.mxu0
  %v2743 = vpop.f32.mrf.mxu0
  %2744 = vdwg.mxu0
  %2745 = vmatprep.subr.bf16.mxu0 %v2399
  %2746 = vmatpush1.bf16.msra.mxu0 %v2398
  %2747 = vmatprep.subr.bf16.mxu0 %v2395
  %2748 = vmatpush1.bf16.msra.mxu0 %v2394
  %2749 = vmatprep.subr.bf16.mxu0 %v2391
  %2750 = vmatpush1.bf16.msra.mxu0 %v2390
  %2751 = vmatprep.subr.bf16.mxu0 %v2387
  %2752 = vmatpush1.bf16.msra.mxu0 %v2386
  %2753 = vmatprep.subr.bf16.mxu0 %v2383
  %2754 = vmatpush1.bf16.msra.mxu0 %v2382
  %2755 = vmatprep.subr.bf16.mxu0 %v2379
  %2756 = vmatpush1.bf16.msra.mxu0 %v2378
  %2757 = vmatprep.subr.bf16.mxu0 %v2375
  %2758 = vmatpush1.bf16.msra.mxu0 %v2374
  %2759 = vmatprep.subr.bf16.mxu0 %v2371
  %2760 = vmatpush1.bf16.msra.mxu0 %v2370
  %2761 = vmatprep.subr.bf16.mxu0 0
  %2762 = vmatpush2.bf16.msra.mxu0 0
  %2763 = vmatprep.subr.bf16.mxu0 0
  %2764 = vmatpush2.bf16.msra.mxu0 0
  %2765 = vmatprep.subr.bf16.mxu0 0
  %2766 = vmatpush2.bf16.msra.mxu0 0
  %2767 = vmatprep.subr.bf16.mxu0 0
  %2768 = vmatpush2.bf16.msra.mxu0 0
  %2769 = vmatprep.subr.bf16.mxu0 0
  %2770 = vmatpush2.bf16.msra.mxu0 0
  %2771 = vmatprep.subr.bf16.mxu0 0
  %2772 = vmatpush2.bf16.msra.mxu0 0
  %2773 = vmatprep.subr.bf16.mxu0 0
  %2774 = vmatpush2.bf16.msra.mxu0 0
  %2775 = vmatprep.subr.bf16.mxu0 0
  %2776 = vmatpush2.bf16.msra.mxu0 0
  %2777 = vmatprep.mubr.bf16.mxu0 0
  %2778 = vmatmul.mubr.bf16.gmra.mxu0 %v2703
  %v2779 = vpop.f32.mrf.mxu0
  %v2780 = vadd.f32 0.0, %v2779
  %v2781 = vpop.f32.mrf.mxu0
  %v2782 = vadd.f32 0.0, %v2781
  %v2783 = vpop.f32.mrf.mxu0
  %v2784 = vpop.f32.mrf.mxu0
  %2785 = vdwg.mxu0
  %v2786 = vadd.f32 %v2699, %v2739
  %v2787 = vadd.f32 %v2700, %v2741
  %v2788 = vadd.f32 %v2701, %v2780
  %v2789 = vadd.f32 %v2702, %v2782
  %v2790 = vadd.f32 %v2786, %v2522
  %v2791 = vadd.f32 %v2787, %v2526
  %v2792 = vadd.f32 %v2788, %v2530
  %v2793 = vadd.f32 %v2789, %v2534
  %v2794 = vxor.u32 %v2790, 2147483648
  %v2795 = vmul.f32 %v2794, 1.442695
  %v2796 = vpow.pop %v2795
  %v2797 = vadd.f32 %v2796, 1.0
  %v2798 = vrcp.pop %v2797
  %v2799 = vmul.f32 1.0, %v2798
  %v2800 = vxor.u32 %v2791, 2147483648
  %v2801 = vmul.f32 %v2800, 1.442695
  %v2802 = vpow.pop %v2801
  %v2803 = vadd.f32 %v2802, 1.0
  %v2804 = vrcp.pop %v2803
  %v2805 = vmul.f32 1.0, %v2804
  %v2806 = vtanh.pop %v2792
  %v2807 = vxor.u32 %v2793, 2147483648
  %v2808 = vmul.f32 %v2807, 1.442695
  %v2809 = vpow.pop %v2808
  %v2810 = vadd.f32 %v2809, 1.0
  %v2811 = vrcp.pop %v2810
  %v2812 = vmul.f32 1.0, %v2811
  %v2813 = vmul.f32 %v2805, %v2698
  %v2814 = vmul.f32 %v2799, %v2806
  %v2815 = vadd.f32 %v2813, %v2814
  %v2816 = vtanh.pop %v2815
  %v2817 = vmul.f32 %v2812, %v2816
  %2818 = vst [vmem:[%s2263] sm:$0xff] %v2817
  %2819 = vst [vmem:[%s2265] sm:$0xff] %v2815
  %v2820 = vpack.c.bf16 %v2817, %v2817
  %s2821 = scalar_lea.vmem %s7, 8
  %2822 = vst [vmem:[%s2821] sm:$0xf] %v2820
  %v2823 = vld [vmem:[%s2263] sm:$0xff]
  %v2824 = vld [vmem:[%s2265] sm:$0xff]
  %v2825 = vld [vmem:[%s1185] sm:$0xff]
  %v2826 = vld [vmem:[%s1185 + $0x8] sm:$0xff]
  %v2827 = vld [vmem:[%s1185 + $0x10] sm:$0xff]
  %v2828 = vld [vmem:[%s1185 + $0x18] sm:$0xff]
  %v2829 = vpack.c.bf16 %v2823, %v2823
  %2830 = vmatprep.subr.bf16.mxu0 %v2397
  %2831 = vmatpush1.bf16.msra.mxu0 %v2396
  %2832 = vmatprep.subr.bf16.mxu0 %v2393
  %2833 = vmatpush1.bf16.msra.mxu0 %v2392
  %2834 = vmatprep.subr.bf16.mxu0 %v2389
  %2835 = vmatpush1.bf16.msra.mxu0 %v2388
  %2836 = vmatprep.subr.bf16.mxu0 %v2385
  %2837 = vmatpush1.bf16.msra.mxu0 %v2384
  %2838 = vmatprep.subr.bf16.mxu0 %v2381
  %2839 = vmatpush1.bf16.msra.mxu0 %v2380
  %2840 = vmatprep.subr.bf16.mxu0 %v2377
  %2841 = vmatpush1.bf16.msra.mxu0 %v2376
  %2842 = vmatprep.subr.bf16.mxu0 %v2373
  %2843 = vmatpush1.bf16.msra.mxu0 %v2372
  %2844 = vmatprep.subr.bf16.mxu0 %v2369
  %2845 = vmatpush1.bf16.msra.mxu0 %v2368
  %2846 = vmatprep.subr.bf16.mxu0 0
  %2847 = vmatpush2.bf16.msra.mxu0 0
  %2848 = vmatprep.subr.bf16.mxu0 0
  %2849 = vmatpush2.bf16.msra.mxu0 0
  %2850 = vmatprep.subr.bf16.mxu0 0
  %2851 = vmatpush2.bf16.msra.mxu0 0
  %2852 = vmatprep.subr.bf16.mxu0 0
  %2853 = vmatpush2.bf16.msra.mxu0 0
  %2854 = vmatprep.subr.bf16.mxu0 0
  %2855 = vmatpush2.bf16.msra.mxu0 0
  %2856 = vmatprep.subr.bf16.mxu0 0
  %2857 = vmatpush2.bf16.msra.mxu0 0
  %2858 = vmatprep.subr.bf16.mxu0 0
  %2859 = vmatpush2.bf16.msra.mxu0 0
  %2860 = vmatprep.subr.bf16.mxu0 0
  %2861 = vmatpush2.bf16.msra.mxu0 0
  %2862 = vmatprep.mubr.bf16.mxu0 0
  %2863 = vmatmul.mubr.bf16.gmra.mxu0 %v2829
  %v2864 = vpop.f32.mrf.mxu0
  %v2865 = vadd.f32 0.0, %v2864
  %v2866 = vpop.f32.mrf.mxu0
  %v2867 = vadd.f32 0.0, %v2866
  %v2868 = vpop.f32.mrf.mxu0
  %v2869 = vpop.f32.mrf.mxu0
  %2870 = vdwg.mxu0
  %2871 = vmatprep.subr.bf16.mxu0 %v2399
  %2872 = vmatpush1.bf16.msra.mxu0 %v2398
  %2873 = vmatprep.subr.bf16.mxu0 %v2395
  %2874 = vmatpush1.bf16.msra.mxu0 %v2394
  %2875 = vmatprep.subr.bf16.mxu0 %v2391
  %2876 = vmatpush1.bf16.msra.mxu0 %v2390
  %2877 = vmatprep.subr.bf16.mxu0 %v2387
  %2878 = vmatpush1.bf16.msra.mxu0 %v2386
  %2879 = vmatprep.subr.bf16.mxu0 %v2383
  %2880 = vmatpush1.bf16.msra.mxu0 %v2382
  %2881 = vmatprep.subr.bf16.mxu0 %v2379
  %2882 = vmatpush1.bf16.msra.mxu0 %v2378
  %2883 = vmatprep.subr.bf16.mxu0 %v2375
  %2884 = vmatpush1.bf16.msra.mxu0 %v2374
  %2885 = vmatprep.subr.bf16.mxu0 %v2371
  %2886 = vmatpush1.bf16.msra.mxu0 %v2370
  %2887 = vmatprep.subr.bf16.mxu0 0
  %2888 = vmatpush2.bf16.msra.mxu0 0
  %2889 = vmatprep.subr.bf16.mxu0 0
  %2890 = vmatpush2.bf16.msra.mxu0 0
  %2891 = vmatprep.subr.bf16.mxu0 0
  %2892 = vmatpush2.bf16.msra.mxu0 0
  %2893 = vmatprep.subr.bf16.mxu0 0
  %2894 = vmatpush2.bf16.msra.mxu0 0
  %2895 = vmatprep.subr.bf16.mxu0 0
  %2896 = vmatpush2.bf16.msra.mxu0 0
  %2897 = vmatprep.subr.bf16.mxu0 0
  %2898 = vmatpush2.bf16.msra.mxu0 0
  %2899 = vmatprep.subr.bf16.mxu0 0
  %2900 = vmatpush2.bf16.msra.mxu0 0
  %2901 = vmatprep.subr.bf16.mxu0 0
  %2902 = vmatpush2.bf16.msra.mxu0 0
  %2903 = vmatprep.mubr.bf16.mxu0 0
  %2904 = vmatmul.mubr.bf16.gmra.mxu0 %v2829
  %v2905 = vpop.f32.mrf.mxu0
  %v2906 = vadd.f32 0.0, %v2905
  %v2907 = vpop.f32.mrf.mxu0
  %v2908 = vadd.f32 0.0, %v2907
  %v2909 = vpop.f32.mrf.mxu0
  %v2910 = vpop.f32.mrf.mxu0
  %2911 = vdwg.mxu0
  %v2912 = vadd.f32 %v2825, %v2865
  %v2913 = vadd.f32 %v2826, %v2867
  %v2914 = vadd.f32 %v2827, %v2906
  %v2915 = vadd.f32 %v2828, %v2908
  %v2916 = vadd.f32 %v2912, %v2522
  %v2917 = vadd.f32 %v2913, %v2526
  %v2918 = vadd.f32 %v2914, %v2530
  %v2919 = vadd.f32 %v2915, %v2534
  %v2920 = vxor.u32 %v2916, 2147483648
  %v2921 = vmul.f32 %v2920, 1.442695
  %v2922 = vpow.pop %v2921
  %v2923 = vadd.f32 %v2922, 1.0
  %v2924 = vrcp.pop %v2923
  %v2925 = vmul.f32 1.0, %v2924
  %v2926 = vxor.u32 %v2917, 2147483648
  %v2927 = vmul.f32 %v2926, 1.442695
  %v2928 = vpow.pop %v2927
  %v2929 = vadd.f32 %v2928, 1.0
  %v2930 = vrcp.pop %v2929
  %v2931 = vmul.f32 1.0, %v2930
  %v2932 = vtanh.pop %v2918
  %v2933 = vxor.u32 %v2919, 2147483648
  %v2934 = vmul.f32 %v2933, 1.442695
  %v2935 = vpow.pop %v2934
  %v2936 = vadd.f32 %v2935, 1.0
  %v2937 = vrcp.pop %v2936
  %v2938 = vmul.f32 1.0, %v2937
  %v2939 = vmul.f32 %v2931, %v2824
  %v2940 = vmul.f32 %v2925, %v2932
  %v2941 = vadd.f32 %v2939, %v2940
  %v2942 = vtanh.pop %v2941
  %v2943 = vmul.f32 %v2938, %v2942
  %2944 = vst [vmem:[%s2263] sm:$0xff] %v2943
  %2945 = vst [vmem:[%s2265] sm:$0xff] %v2941
  %v2946 = vpack.c.bf16 %v2943, %v2943
  %s2947 = scalar_lea.vmem %s7, 12
  %2948 = vst [vmem:[%s2947] sm:$0xf] %v2946
  %v2949 = vld [vmem:[%s2263] sm:$0xff]
  %v2950 = vld [vmem:[%s2265] sm:$0xff]
  %v2951 = vld [vmem:[%s1314] sm:$0xff]
  %v2952 = vld [vmem:[%s1314 + $0x8] sm:$0xff]
  %v2953 = vld [vmem:[%s1314 + $0x10] sm:$0xff]
  %v2954 = vld [vmem:[%s1314 + $0x18] sm:$0xff]
  %v2955 = vpack.c.bf16 %v2949, %v2949
  %2956 = vmatprep.subr.bf16.mxu0 %v2397
  %2957 = vmatpush1.bf16.msra.mxu0 %v2396
  %2958 = vmatprep.subr.bf16.mxu0 %v2393
  %2959 = vmatpush1.bf16.msra.mxu0 %v2392
  %2960 = vmatprep.subr.bf16.mxu0 %v2389
  %2961 = vmatpush1.bf16.msra.mxu0 %v2388
  %2962 = vmatprep.subr.bf16.mxu0 %v2385
  %2963 = vmatpush1.bf16.msra.mxu0 %v2384
  %2964 = vmatprep.subr.bf16.mxu0 %v2381
  %2965 = vmatpush1.bf16.msra.mxu0 %v2380
  %2966 = vmatprep.subr.bf16.mxu0 %v2377
  %2967 = vmatpush1.bf16.msra.mxu0 %v2376
  %2968 = vmatprep.subr.bf16.mxu0 %v2373
  %2969 = vmatpush1.bf16.msra.mxu0 %v2372
  %2970 = vmatprep.subr.bf16.mxu0 %v2369
  %2971 = vmatpush1.bf16.msra.mxu0 %v2368
  %2972 = vmatprep.subr.bf16.mxu0 0
  %2973 = vmatpush2.bf16.msra.mxu0 0
  %2974 = vmatprep.subr.bf16.mxu0 0
  %2975 = vmatpush2.bf16.msra.mxu0 0
  %2976 = vmatprep.subr.bf16.mxu0 0
  %2977 = vmatpush2.bf16.msra.mxu0 0
  %2978 = vmatprep.subr.bf16.mxu0 0
  %2979 = vmatpush2.bf16.msra.mxu0 0
  %2980 = vmatprep.subr.bf16.mxu0 0
  %2981 = vmatpush2.bf16.msra.mxu0 0
  %2982 = vmatprep.subr.bf16.mxu0 0
  %2983 = vmatpush2.bf16.msra.mxu0 0
  %2984 = vmatprep.subr.bf16.mxu0 0
  %2985 = vmatpush2.bf16.msra.mxu0 0
  %2986 = vmatprep.subr.bf16.mxu0 0
  %2987 = vmatpush2.bf16.msra.mxu0 0
  %2988 = vmatprep.mubr.bf16.mxu0 0
  %2989 = vmatmul.mubr.bf16.gmra.mxu0 %v2955
  %v2990 = vpop.f32.mrf.mxu0
  %v2991 = vadd.f32 0.0, %v2990
  %v2992 = vpop.f32.mrf.mxu0
  %v2993 = vadd.f32 0.0, %v2992
  %v2994 = vpop.f32.mrf.mxu0
  %v2995 = vpop.f32.mrf.mxu0
  %2996 = vdwg.mxu0
  %2997 = vmatprep.subr.bf16.mxu0 %v2399
  %2998 = vmatpush1.bf16.msra.mxu0 %v2398
  %2999 = vmatprep.subr.bf16.mxu0 %v2395
  %3000 = vmatpush1.bf16.msra.mxu0 %v2394
  %3001 = vmatprep.subr.bf16.mxu0 %v2391
  %3002 = vmatpush1.bf16.msra.mxu0 %v2390
  %3003 = vmatprep.subr.bf16.mxu0 %v2387
  %3004 = vmatpush1.bf16.msra.mxu0 %v2386
  %3005 = vmatprep.subr.bf16.mxu0 %v2383
  %3006 = vmatpush1.bf16.msra.mxu0 %v2382
  %3007 = vmatprep.subr.bf16.mxu0 %v2379
  %3008 = vmatpush1.bf16.msra.mxu0 %v2378
  %3009 = vmatprep.subr.bf16.mxu0 %v2375
  %3010 = vmatpush1.bf16.msra.mxu0 %v2374
  %3011 = vmatprep.subr.bf16.mxu0 %v2371
  %3012 = vmatpush1.bf16.msra.mxu0 %v2370
  %3013 = vmatprep.subr.bf16.mxu0 0
  %3014 = vmatpush2.bf16.msra.mxu0 0
  %3015 = vmatprep.subr.bf16.mxu0 0
  %3016 = vmatpush2.bf16.msra.mxu0 0
  %3017 = vmatprep.subr.bf16.mxu0 0
  %3018 = vmatpush2.bf16.msra.mxu0 0
  %3019 = vmatprep.subr.bf16.mxu0 0
  %3020 = vmatpush2.bf16.msra.mxu0 0
  %3021 = vmatprep.subr.bf16.mxu0 0
  %3022 = vmatpush2.bf16.msra.mxu0 0
  %3023 = vmatprep.subr.bf16.mxu0 0
  %3024 = vmatpush2.bf16.msra.mxu0 0
  %3025 = vmatprep.subr.bf16.mxu0 0
  %3026 = vmatpush2.bf16.msra.mxu0 0
  %3027 = vmatprep.subr.bf16.mxu0 0
  %3028 = vmatpush2.bf16.msra.mxu0 0
  %3029 = vmatprep.mubr.bf16.mxu0 0
  %3030 = vmatmul.mubr.bf16.gmra.mxu0 %v2955
  %v3031 = vpop.f32.mrf.mxu0
  %v3032 = vadd.f32 0.0, %v3031
  %v3033 = vpop.f32.mrf.mxu0
  %v3034 = vadd.f32 0.0, %v3033
  %v3035 = vpop.f32.mrf.mxu0
  %v3036 = vpop.f32.mrf.mxu0
  %3037 = vdwg.mxu0
  %v3038 = vadd.f32 %v2951, %v2991
  %v3039 = vadd.f32 %v2952, %v2993
  %v3040 = vadd.f32 %v2953, %v3032
  %v3041 = vadd.f32 %v2954, %v3034
  %v3042 = vadd.f32 %v3038, %v2522
  %v3043 = vadd.f32 %v3039, %v2526
  %v3044 = vadd.f32 %v3040, %v2530
  %v3045 = vadd.f32 %v3041, %v2534
  %v3046 = vxor.u32 %v3042, 2147483648
  %v3047 = vmul.f32 %v3046, 1.442695
  %v3048 = vpow.pop %v3047
  %v3049 = vadd.f32 %v3048, 1.0
  %v3050 = vrcp.pop %v3049
  %v3051 = vmul.f32 1.0, %v3050
  %v3052 = vxor.u32 %v3043, 2147483648
  %v3053 = vmul.f32 %v3052, 1.442695
  %v3054 = vpow.pop %v3053
  %v3055 = vadd.f32 %v3054, 1.0
  %v3056 = vrcp.pop %v3055
  %v3057 = vmul.f32 1.0, %v3056
  %v3058 = vtanh.pop %v3044
  %v3059 = vxor.u32 %v3045, 2147483648
  %v3060 = vmul.f32 %v3059, 1.442695
  %v3061 = vpow.pop %v3060
  %v3062 = vadd.f32 %v3061, 1.0
  %v3063 = vrcp.pop %v3062
  %v3064 = vmul.f32 1.0, %v3063
  %v3065 = vmul.f32 %v3057, %v2950
  %v3066 = vmul.f32 %v3051, %v3058
  %v3067 = vadd.f32 %v3065, %v3066
  %v3068 = vtanh.pop %v3067
  %v3069 = vmul.f32 %v3064, %v3068
  %3070 = vst [vmem:[%s2263] sm:$0xff] %v3069
  %3071 = vst [vmem:[%s2265] sm:$0xff] %v3067
  %v3072 = vpack.c.bf16 %v3069, %v3069
  %s3073 = scalar_lea.vmem %s7, 16
  %3074 = vst [vmem:[%s3073] sm:$0xf] %v3072
  %v3075 = vld [vmem:[%s2263] sm:$0xff]
  %v3076 = vld [vmem:[%s2265] sm:$0xff]
  %v3077 = vld [vmem:[%s1443] sm:$0xff]
  %v3078 = vld [vmem:[%s1443 + $0x8] sm:$0xff]
  %v3079 = vld [vmem:[%s1443 + $0x10] sm:$0xff]
  %v3080 = vld [vmem:[%s1443 + $0x18] sm:$0xff]
  %v3081 = vpack.c.bf16 %v3075, %v3075
  %3082 = vmatprep.subr.bf16.mxu0 %v2397
  %3083 = vmatpush1.bf16.msra.mxu0 %v2396
  %3084 = vmatprep.subr.bf16.mxu0 %v2393
  %3085 = vmatpush1.bf16.msra.mxu0 %v2392
  %3086 = vmatprep.subr.bf16.mxu0 %v2389
  %3087 = vmatpush1.bf16.msra.mxu0 %v2388
  %3088 = vmatprep.subr.bf16.mxu0 %v2385
  %3089 = vmatpush1.bf16.msra.mxu0 %v2384
  %3090 = vmatprep.subr.bf16.mxu0 %v2381
  %3091 = vmatpush1.bf16.msra.mxu0 %v2380
  %3092 = vmatprep.subr.bf16.mxu0 %v2377
  %3093 = vmatpush1.bf16.msra.mxu0 %v2376
  %3094 = vmatprep.subr.bf16.mxu0 %v2373
  %3095 = vmatpush1.bf16.msra.mxu0 %v2372
  %3096 = vmatprep.subr.bf16.mxu0 %v2369
  %3097 = vmatpush1.bf16.msra.mxu0 %v2368
  %3098 = vmatprep.subr.bf16.mxu0 0
  %3099 = vmatpush2.bf16.msra.mxu0 0
  %3100 = vmatprep.subr.bf16.mxu0 0
  %3101 = vmatpush2.bf16.msra.mxu0 0
  %3102 = vmatprep.subr.bf16.mxu0 0
  %3103 = vmatpush2.bf16.msra.mxu0 0
  %3104 = vmatprep.subr.bf16.mxu0 0
  %3105 = vmatpush2.bf16.msra.mxu0 0
  %3106 = vmatprep.subr.bf16.mxu0 0
  %3107 = vmatpush2.bf16.msra.mxu0 0
  %3108 = vmatprep.subr.bf16.mxu0 0
  %3109 = vmatpush2.bf16.msra.mxu0 0
  %3110 = vmatprep.subr.bf16.mxu0 0
  %3111 = vmatpush2.bf16.msra.mxu0 0
  %3112 = vmatprep.subr.bf16.mxu0 0
  %3113 = vmatpush2.bf16.msra.mxu0 0
  %3114 = vmatprep.mubr.bf16.mxu0 0
  %3115 = vmatmul.mubr.bf16.gmra.mxu0 %v3081
  %v3116 = vpop.f32.mrf.mxu0
  %v3117 = vadd.f32 0.0, %v3116
  %v3118 = vpop.f32.mrf.mxu0
  %v3119 = vadd.f32 0.0, %v3118
  %v3120 = vpop.f32.mrf.mxu0
  %v3121 = vpop.f32.mrf.mxu0
  %3122 = vdwg.mxu0
  %3123 = vmatprep.subr.bf16.mxu0 %v2399
  %3124 = vmatpush1.bf16.msra.mxu0 %v2398
  %3125 = vmatprep.subr.bf16.mxu0 %v2395
  %3126 = vmatpush1.bf16.msra.mxu0 %v2394
  %3127 = vmatprep.subr.bf16.mxu0 %v2391
  %3128 = vmatpush1.bf16.msra.mxu0 %v2390
  %3129 = vmatprep.subr.bf16.mxu0 %v2387
  %3130 = vmatpush1.bf16.msra.mxu0 %v2386
  %3131 = vmatprep.subr.bf16.mxu0 %v2383
  %3132 = vmatpush1.bf16.msra.mxu0 %v2382
  %3133 = vmatprep.subr.bf16.mxu0 %v2379
  %3134 = vmatpush1.bf16.msra.mxu0 %v2378
  %3135 = vmatprep.subr.bf16.mxu0 %v2375
  %3136 = vmatpush1.bf16.msra.mxu0 %v2374
  %3137 = vmatprep.subr.bf16.mxu0 %v2371
  %3138 = vmatpush1.bf16.msra.mxu0 %v2370
  %3139 = vmatprep.subr.bf16.mxu0 0
  %3140 = vmatpush2.bf16.msra.mxu0 0
  %3141 = vmatprep.subr.bf16.mxu0 0
  %3142 = vmatpush2.bf16.msra.mxu0 0
  %3143 = vmatprep.subr.bf16.mxu0 0
  %3144 = vmatpush2.bf16.msra.mxu0 0
  %3145 = vmatprep.subr.bf16.mxu0 0
  %3146 = vmatpush2.bf16.msra.mxu0 0
  %3147 = vmatprep.subr.bf16.mxu0 0
  %3148 = vmatpush2.bf16.msra.mxu0 0
  %3149 = vmatprep.subr.bf16.mxu0 0
  %3150 = vmatpush2.bf16.msra.mxu0 0
  %3151 = vmatprep.subr.bf16.mxu0 0
  %3152 = vmatpush2.bf16.msra.mxu0 0
  %3153 = vmatprep.subr.bf16.mxu0 0
  %3154 = vmatpush2.bf16.msra.mxu0 0
  %3155 = vmatprep.mubr.bf16.mxu0 0
  %3156 = vmatmul.mubr.bf16.gmra.mxu0 %v3081
  %v3157 = vpop.f32.mrf.mxu0
  %v3158 = vadd.f32 0.0, %v3157
  %v3159 = vpop.f32.mrf.mxu0
  %v3160 = vadd.f32 0.0, %v3159
  %v3161 = vpop.f32.mrf.mxu0
  %v3162 = vpop.f32.mrf.mxu0
  %3163 = vdwg.mxu0
  %v3164 = vadd.f32 %v3077, %v3117
  %v3165 = vadd.f32 %v3078, %v3119
  %v3166 = vadd.f32 %v3079, %v3158
  %v3167 = vadd.f32 %v3080, %v3160
  %v3168 = vadd.f32 %v3164, %v2522
  %v3169 = vadd.f32 %v3165, %v2526
  %v3170 = vadd.f32 %v3166, %v2530
  %v3171 = vadd.f32 %v3167, %v2534
  %v3172 = vxor.u32 %v3168, 2147483648
  %v3173 = vmul.f32 %v3172, 1.442695
  %v3174 = vpow.pop %v3173
  %v3175 = vadd.f32 %v3174, 1.0
  %v3176 = vrcp.pop %v3175
  %v3177 = vmul.f32 1.0, %v3176
  %v3178 = vxor.u32 %v3169, 2147483648
  %v3179 = vmul.f32 %v3178, 1.442695
  %v3180 = vpow.pop %v3179
  %v3181 = vadd.f32 %v3180, 1.0
  %v3182 = vrcp.pop %v3181
  %v3183 = vmul.f32 1.0, %v3182
  %v3184 = vtanh.pop %v3170
  %v3185 = vxor.u32 %v3171, 2147483648
  %v3186 = vmul.f32 %v3185, 1.442695
  %v3187 = vpow.pop %v3186
  %v3188 = vadd.f32 %v3187, 1.0
  %v3189 = vrcp.pop %v3188
  %v3190 = vmul.f32 1.0, %v3189
  %v3191 = vmul.f32 %v3183, %v3076
  %v3192 = vmul.f32 %v3177, %v3184
  %v3193 = vadd.f32 %v3191, %v3192
  %v3194 = vtanh.pop %v3193
  %v3195 = vmul.f32 %v3190, %v3194
  %3196 = vst [vmem:[%s2263] sm:$0xff] %v3195
  %3197 = vst [vmem:[%s2265] sm:$0xff] %v3193
  %v3198 = vpack.c.bf16 %v3195, %v3195
  %s3199 = scalar_lea.vmem %s7, 20
  %3200 = vst [vmem:[%s3199] sm:$0xf] %v3198
  %v3201 = vld [vmem:[%s2263] sm:$0xff]
  %v3202 = vld [vmem:[%s2265] sm:$0xff]
  %v3203 = vld [vmem:[%s1572] sm:$0xff]
  %v3204 = vld [vmem:[%s1572 + $0x8] sm:$0xff]
  %v3205 = vld [vmem:[%s1572 + $0x10] sm:$0xff]
  %v3206 = vld [vmem:[%s1572 + $0x18] sm:$0xff]
  %v3207 = vpack.c.bf16 %v3201, %v3201
  %3208 = vmatprep.subr.bf16.mxu0 %v2397
  %3209 = vmatpush1.bf16.msra.mxu0 %v2396
  %3210 = vmatprep.subr.bf16.mxu0 %v2393
  %3211 = vmatpush1.bf16.msra.mxu0 %v2392
  %3212 = vmatprep.subr.bf16.mxu0 %v2389
  %3213 = vmatpush1.bf16.msra.mxu0 %v2388
  %3214 = vmatprep.subr.bf16.mxu0 %v2385
  %3215 = vmatpush1.bf16.msra.mxu0 %v2384
  %3216 = vmatprep.subr.bf16.mxu0 %v2381
  %3217 = vmatpush1.bf16.msra.mxu0 %v2380
  %3218 = vmatprep.subr.bf16.mxu0 %v2377
  %3219 = vmatpush1.bf16.msra.mxu0 %v2376
  %3220 = vmatprep.subr.bf16.mxu0 %v2373
  %3221 = vmatpush1.bf16.msra.mxu0 %v2372
  %3222 = vmatprep.subr.bf16.mxu0 %v2369
  %3223 = vmatpush1.bf16.msra.mxu0 %v2368
  %3224 = vmatprep.subr.bf16.mxu0 0
  %3225 = vmatpush2.bf16.msra.mxu0 0
  %3226 = vmatprep.subr.bf16.mxu0 0
  %3227 = vmatpush2.bf16.msra.mxu0 0
  %3228 = vmatprep.subr.bf16.mxu0 0
  %3229 = vmatpush2.bf16.msra.mxu0 0
  %3230 = vmatprep.subr.bf16.mxu0 0
  %3231 = vmatpush2.bf16.msra.mxu0 0
  %3232 = vmatprep.subr.bf16.mxu0 0
  %3233 = vmatpush2.bf16.msra.mxu0 0
  %3234 = vmatprep.subr.bf16.mxu0 0
  %3235 = vmatpush2.bf16.msra.mxu0 0
  %3236 = vmatprep.subr.bf16.mxu0 0
  %3237 = vmatpush2.bf16.msra.mxu0 0
  %3238 = vmatprep.subr.bf16.mxu0 0
  %3239 = vmatpush2.bf16.msra.mxu0 0
  %3240 = vmatprep.mubr.bf16.mxu0 0
  %3241 = vmatmul.mubr.bf16.gmra.mxu0 %v3207
  %v3242 = vpop.f32.mrf.mxu0
  %v3243 = vadd.f32 0.0, %v3242
  %v3244 = vpop.f32.mrf.mxu0
  %v3245 = vadd.f32 0.0, %v3244
  %v3246 = vpop.f32.mrf.mxu0
  %v3247 = vpop.f32.mrf.mxu0
  %3248 = vdwg.mxu0
  %3249 = vmatprep.subr.bf16.mxu0 %v2399
  %3250 = vmatpush1.bf16.msra.mxu0 %v2398
  %3251 = vmatprep.subr.bf16.mxu0 %v2395
  %3252 = vmatpush1.bf16.msra.mxu0 %v2394
  %3253 = vmatprep.subr.bf16.mxu0 %v2391
  %3254 = vmatpush1.bf16.msra.mxu0 %v2390
  %3255 = vmatprep.subr.bf16.mxu0 %v2387
  %3256 = vmatpush1.bf16.msra.mxu0 %v2386
  %3257 = vmatprep.subr.bf16.mxu0 %v2383
  %3258 = vmatpush1.bf16.msra.mxu0 %v2382
  %3259 = vmatprep.subr.bf16.mxu0 %v2379
  %3260 = vmatpush1.bf16.msra.mxu0 %v2378
  %3261 = vmatprep.subr.bf16.mxu0 %v2375
  %3262 = vmatpush1.bf16.msra.mxu0 %v2374
  %3263 = vmatprep.subr.bf16.mxu0 %v2371
  %3264 = vmatpush1.bf16.msra.mxu0 %v2370
  %3265 = vmatprep.subr.bf16.mxu0 0
  %3266 = vmatpush2.bf16.msra.mxu0 0
  %3267 = vmatprep.subr.bf16.mxu0 0
  %3268 = vmatpush2.bf16.msra.mxu0 0
  %3269 = vmatprep.subr.bf16.mxu0 0
  %3270 = vmatpush2.bf16.msra.mxu0 0
  %3271 = vmatprep.subr.bf16.mxu0 0
  %3272 = vmatpush2.bf16.msra.mxu0 0
  %3273 = vmatprep.subr.bf16.mxu0 0
  %3274 = vmatpush2.bf16.msra.mxu0 0
  %3275 = vmatprep.subr.bf16.mxu0 0
  %3276 = vmatpush2.bf16.msra.mxu0 0
  %3277 = vmatprep.subr.bf16.mxu0 0
  %3278 = vmatpush2.bf16.msra.mxu0 0
  %3279 = vmatprep.subr.bf16.mxu0 0
  %3280 = vmatpush2.bf16.msra.mxu0 0
  %3281 = vmatprep.mubr.bf16.mxu0 0
  %3282 = vmatmul.mubr.bf16.gmra.mxu0 %v3207
  %v3283 = vpop.f32.mrf.mxu0
  %v3284 = vadd.f32 0.0, %v3283
  %v3285 = vpop.f32.mrf.mxu0
  %v3286 = vadd.f32 0.0, %v3285
  %v3287 = vpop.f32.mrf.mxu0
  %v3288 = vpop.f32.mrf.mxu0
  %3289 = vdwg.mxu0
  %v3290 = vadd.f32 %v3203, %v3243
  %v3291 = vadd.f32 %v3204, %v3245
  %v3292 = vadd.f32 %v3205, %v3284
  %v3293 = vadd.f32 %v3206, %v3286
  %v3294 = vadd.f32 %v3290, %v2522
  %v3295 = vadd.f32 %v3291, %v2526
  %v3296 = vadd.f32 %v3292, %v2530
  %v3297 = vadd.f32 %v3293, %v2534
  %v3298 = vxor.u32 %v3294, 2147483648
  %v3299 = vmul.f32 %v3298, 1.442695
  %v3300 = vpow.pop %v3299
  %v3301 = vadd.f32 %v3300, 1.0
  %v3302 = vrcp.pop %v3301
  %v3303 = vmul.f32 1.0, %v3302
  %v3304 = vxor.u32 %v3295, 2147483648
  %v3305 = vmul.f32 %v3304, 1.442695
  %v3306 = vpow.pop %v3305
  %v3307 = vadd.f32 %v3306, 1.0
  %v3308 = vrcp.pop %v3307
  %v3309 = vmul.f32 1.0, %v3308
  %v3310 = vtanh.pop %v3296
  %v3311 = vxor.u32 %v3297, 2147483648
  %v3312 = vmul.f32 %v3311, 1.442695
  %v3313 = vpow.pop %v3312
  %v3314 = vadd.f32 %v3313, 1.0
  %v3315 = vrcp.pop %v3314
  %v3316 = vmul.f32 1.0, %v3315
  %v3317 = vmul.f32 %v3309, %v3202
  %v3318 = vmul.f32 %v3303, %v3310
  %v3319 = vadd.f32 %v3317, %v3318
  %v3320 = vtanh.pop %v3319
  %v3321 = vmul.f32 %v3316, %v3320
  %3322 = vst [vmem:[%s2263] sm:$0xff] %v3321
  %3323 = vst [vmem:[%s2265] sm:$0xff] %v3319
  %v3324 = vpack.c.bf16 %v3321, %v3321
  %s3325 = scalar_lea.vmem %s7, 24
  %3326 = vst [vmem:[%s3325] sm:$0xf] %v3324
  %v3327 = vld [vmem:[%s2263] sm:$0xff]
  %v3328 = vld [vmem:[%s2265] sm:$0xff]
  %v3329 = vld [vmem:[%s1701] sm:$0xff]
  %v3330 = vld [vmem:[%s1701 + $0x8] sm:$0xff]
  %v3331 = vld [vmem:[%s1701 + $0x10] sm:$0xff]
  %v3332 = vld [vmem:[%s1701 + $0x18] sm:$0xff]
  %v3333 = vpack.c.bf16 %v3327, %v3327
  %3334 = vmatprep.subr.bf16.mxu0 %v2397
  %3335 = vmatpush1.bf16.msra.mxu0 %v2396
  %3336 = vmatprep.subr.bf16.mxu0 %v2393
  %3337 = vmatpush1.bf16.msra.mxu0 %v2392
  %3338 = vmatprep.subr.bf16.mxu0 %v2389
  %3339 = vmatpush1.bf16.msra.mxu0 %v2388
  %3340 = vmatprep.subr.bf16.mxu0 %v2385
  %3341 = vmatpush1.bf16.msra.mxu0 %v2384
  %3342 = vmatprep.subr.bf16.mxu0 %v2381
  %3343 = vmatpush1.bf16.msra.mxu0 %v2380
  %3344 = vmatprep.subr.bf16.mxu0 %v2377
  %3345 = vmatpush1.bf16.msra.mxu0 %v2376
  %3346 = vmatprep.subr.bf16.mxu0 %v2373
  %3347 = vmatpush1.bf16.msra.mxu0 %v2372
  %3348 = vmatprep.subr.bf16.mxu0 %v2369
  %3349 = vmatpush1.bf16.msra.mxu0 %v2368
  %3350 = vmatprep.subr.bf16.mxu0 0
  %3351 = vmatpush2.bf16.msra.mxu0 0
  %3352 = vmatprep.subr.bf16.mxu0 0
  %3353 = vmatpush2.bf16.msra.mxu0 0
  %3354 = vmatprep.subr.bf16.mxu0 0
  %3355 = vmatpush2.bf16.msra.mxu0 0
  %3356 = vmatprep.subr.bf16.mxu0 0
  %3357 = vmatpush2.bf16.msra.mxu0 0
  %3358 = vmatprep.subr.bf16.mxu0 0
  %3359 = vmatpush2.bf16.msra.mxu0 0
  %3360 = vmatprep.subr.bf16.mxu0 0
  %3361 = vmatpush2.bf16.msra.mxu0 0
  %3362 = vmatprep.subr.bf16.mxu0 0
  %3363 = vmatpush2.bf16.msra.mxu0 0
  %3364 = vmatprep.subr.bf16.mxu0 0
  %3365 = vmatpush2.bf16.msra.mxu0 0
  %3366 = vmatprep.mubr.bf16.mxu0 0
  %3367 = vmatmul.mubr.bf16.gmra.mxu0 %v3333
  %v3368 = vpop.f32.mrf.mxu0
  %v3369 = vadd.f32 0.0, %v3368
  %v3370 = vpop.f32.mrf.mxu0
  %v3371 = vadd.f32 0.0, %v3370
  %v3372 = vpop.f32.mrf.mxu0
  %v3373 = vpop.f32.mrf.mxu0
  %3374 = vdwg.mxu0
  %3375 = vmatprep.subr.bf16.mxu0 %v2399
  %3376 = vmatpush1.bf16.msra.mxu0 %v2398
  %3377 = vmatprep.subr.bf16.mxu0 %v2395
  %3378 = vmatpush1.bf16.msra.mxu0 %v2394
  %3379 = vmatprep.subr.bf16.mxu0 %v2391
  %3380 = vmatpush1.bf16.msra.mxu0 %v2390
  %3381 = vmatprep.subr.bf16.mxu0 %v2387
  %3382 = vmatpush1.bf16.msra.mxu0 %v2386
  %3383 = vmatprep.subr.bf16.mxu0 %v2383
  %3384 = vmatpush1.bf16.msra.mxu0 %v2382
  %3385 = vmatprep.subr.bf16.mxu0 %v2379
  %3386 = vmatpush1.bf16.msra.mxu0 %v2378
  %3387 = vmatprep.subr.bf16.mxu0 %v2375
  %3388 = vmatpush1.bf16.msra.mxu0 %v2374
  %3389 = vmatprep.subr.bf16.mxu0 %v2371
  %3390 = vmatpush1.bf16.msra.mxu0 %v2370
  %3391 = vmatprep.subr.bf16.mxu0 0
  %3392 = vmatpush2.bf16.msra.mxu0 0
  %3393 = vmatprep.subr.bf16.mxu0 0
  %3394 = vmatpush2.bf16.msra.mxu0 0
  %3395 = vmatprep.subr.bf16.mxu0 0
  %3396 = vmatpush2.bf16.msra.mxu0 0
  %3397 = vmatprep.subr.bf16.mxu0 0
  %3398 = vmatpush2.bf16.msra.mxu0 0
  %3399 = vmatprep.subr.bf16.mxu0 0
  %3400 = vmatpush2.bf16.msra.mxu0 0
  %3401 = vmatprep.subr.bf16.mxu0 0
  %3402 = vmatpush2.bf16.msra.mxu0 0
  %3403 = vmatprep.subr.bf16.mxu0 0
  %3404 = vmatpush2.bf16.msra.mxu0 0
  %3405 = vmatprep.subr.bf16.mxu0 0
  %3406 = vmatpush2.bf16.msra.mxu0 0
  %3407 = vmatprep.mubr.bf16.mxu0 0
  %3408 = vmatmul.mubr.bf16.gmra.mxu0 %v3333
  %v3409 = vpop.f32.mrf.mxu0
  %v3410 = vadd.f32 0.0, %v3409
  %v3411 = vpop.f32.mrf.mxu0
  %v3412 = vadd.f32 0.0, %v3411
  %v3413 = vpop.f32.mrf.mxu0
  %v3414 = vpop.f32.mrf.mxu0
  %3415 = vdwg.mxu0
  %v3416 = vadd.f32 %v3329, %v3369
  %v3417 = vadd.f32 %v3330, %v3371
  %v3418 = vadd.f32 %v3331, %v3410
  %v3419 = vadd.f32 %v3332, %v3412
  %v3420 = vadd.f32 %v3416, %v2522
  %v3421 = vadd.f32 %v3417, %v2526
  %v3422 = vadd.f32 %v3418, %v2530
  %v3423 = vadd.f32 %v3419, %v2534
  %v3424 = vxor.u32 %v3420, 2147483648
  %v3425 = vmul.f32 %v3424, 1.442695
  %v3426 = vpow.pop %v3425
  %v3427 = vadd.f32 %v3426, 1.0
  %v3428 = vrcp.pop %v3427
  %v3429 = vmul.f32 1.0, %v3428
  %v3430 = vxor.u32 %v3421, 2147483648
  %v3431 = vmul.f32 %v3430, 1.442695
  %v3432 = vpow.pop %v3431
  %v3433 = vadd.f32 %v3432, 1.0
  %v3434 = vrcp.pop %v3433
  %v3435 = vmul.f32 1.0, %v3434
  %v3436 = vtanh.pop %v3422
  %v3437 = vxor.u32 %v3423, 2147483648
  %v3438 = vmul.f32 %v3437, 1.442695
  %v3439 = vpow.pop %v3438
  %v3440 = vadd.f32 %v3439, 1.0
  %v3441 = vrcp.pop %v3440
  %v3442 = vmul.f32 1.0, %v3441
  %v3443 = vmul.f32 %v3435, %v3328
  %v3444 = vmul.f32 %v3429, %v3436
  %v3445 = vadd.f32 %v3443, %v3444
  %v3446 = vtanh.pop %v3445
  %v3447 = vmul.f32 %v3442, %v3446
  %3448 = vst [vmem:[%s2263] sm:$0xff] %v3447
  %3449 = vst [vmem:[%s2265] sm:$0xff] %v3445
  %v3450 = vpack.c.bf16 %v3447, %v3447
  %s3451 = scalar_lea.vmem %s7, 28
  %3452 = vst [vmem:[%s3451] sm:$0xf] %v3450
  // Predicated region
  $region64: #{rnn_model_forward.2} parent=0 // pred_check
    %p3453 = pneg %p24
  $region65: #{rnn_model_forward.2} parent=0 // pred_check_branch
    %3455 = sbr.rel (%p3453) target = $region67
  $region66: #{rnn_model_forward.2} parent=0 // pred_region
    %v3456 = vld [vmem:[#allocation7] sm:$0xff]
    %v3457 = vld [vmem:[#allocation7 + $0x8] sm:$0xff]
    %3458 = vst [vmem:[%s8] sm:$0xff] %v3456
    %3459 = vst [vmem:[%s8 + $0x8] sm:$0xff] %v3457
    %v3460 = vld [vmem:[#allocation8] sm:$0xff]
    %v3461 = vld [vmem:[#allocation8 + $0x8] sm:$0xff]
    %3462 = vst [vmem:[%s9] sm:$0xff] %v3460
    %3463 = vst [vmem:[%s9 + $0x8] sm:$0xff] %v3461
  $region67: #{rnn_model_forward.2} parent=0 // pred_fallthru
    _
  // Predicated region
  $region68: #{rnn_model_forward.2} parent=0 // pred_check
    _
  $region69: #{rnn_model_forward.2} parent=0 // pred_check_branch
    %3465 = sbr.rel (0) target = $region71
  $region70: #{rnn_model_forward.2} parent=0 // pred_region
    _
  $region71: #{rnn_model_forward.2} parent=0 // pred_fallthru
    _
  // Predicated region
  $region72: #{rnn_model_forward.2} parent=0 // pred_check
    _
  $region73: #{rnn_model_forward.2} parent=0 // pred_check_branch
    %3467 = sbr.rel (0) target = $region75
  $region74: #{rnn_model_forward.2} parent=0 // pred_region
    _
  $region75: #{rnn_model_forward.2} parent=0 // pred_fallthru
    _
  // Predicated region
  $region76: #{rnn_model_forward.2} parent=0 // pred_check
    _
  $region77: #{rnn_model_forward.2} parent=0 // pred_check_branch
    %3469 = sbr.rel (0) target = $region79
  $region78: #{rnn_model_forward.2} parent=0 // pred_region
    _
  $region79: #{rnn_model_forward.2} parent=0 // pred_fallthru
    _
  // Predicated region
  $region80: #{rnn_model_forward.2} parent=0 // pred_check
    _
  $region81: #{rnn_model_forward.2} parent=0 // pred_check_branch
    %3471 = sbr.rel (0) target = $region83
  $region82: #{rnn_model_forward.2} parent=0 // pred_region
    _
  $region83: #{rnn_model_forward.2} parent=0 // pred_fallthru
    _
  // Predicated region
  $region84: #{rnn_model_forward.2} parent=0 // pred_check
    _
  $region85: #{rnn_model_forward.2} parent=0 // pred_check_branch
    %3473 = sbr.rel (0) target = $region87
  $region86: #{rnn_model_forward.2} parent=0 // pred_region
    _
  $region87: #{rnn_model_forward.2} parent=0 // pred_fallthru
    _
  // Predicated region
  $region88: #{rnn_model_forward.2} parent=0 // pred_check
    _
  $region89: #{rnn_model_forward.2} parent=0 // pred_check_branch
    %3475 = sbr.rel (0) target = $region91
  $region90: #{rnn_model_forward.2} parent=0 // pred_region
    _
  $region91: #{rnn_model_forward.2} parent=0 // pred_fallthru
    _
  %3476 = vsyncmov [#allocation9]
  %s3477 = vpop.sfrf %3476
  %p3478 = scmp.eq.s32.totalorder %s3477, 0
  %p3479 = pneg %p3478
  %3481 = shalt.err (%p3479)
  %s3482 = scalar_lea.sflag [#allocation9], 1
  %3483 = vsyncmov %s3482
  %s3484 = vpop.sfrf %3483
  %p3485 = scmp.eq.s32.totalorder %s3484, 0
  %p3486 = pneg %p3485
  %3488 = shalt.err (%p3486)
  %s3489 = scalar_lea.sflag [#allocation9], 2
  %3490 = vsyncmov %s3489
  %s3491 = vpop.sfrf %3490
  %p3492 = scmp.eq.s32.totalorder %s3491, 0
  %p3493 = pneg %p3492
  %3495 = shalt.err (%p3493)

</llo_original>
